<compile_context>
chip_gen: v5e
topology: v5e:2x2
jax: 0.10.0
libtpu: 0.0.40
codegen_flags: <defaults>
</compile_context>

<pallas_src>
import jax
import jax.numpy as jnp
from jax import lax
from jax.experimental import pallas as pl
from jax.experimental.pallas import tpu as pltpu


def _round_up(x, m):
    return (x + m - 1) // m * m


def _make_rdb_conv_kernel(tm, cp, offsets, center_off):
    """Fused k*k conv + bias + ReLU + concat(x, .) over flattened padded rows."""

    def kernel(x_ref, w_ref, bias_ref, o_ref):
        base = pl.multiple_of(pl.program_id(0) * tm, tm)
        acc = jnp.zeros((tm, cp), jnp.float32)
        # Output row r needs input rows r + dy*Wp + dx for each tap (dy, dx).
        for t, off in enumerate(offsets):
            a = x_ref[pl.ds(base + off, tm), :]                  # (tm, cp) f32
            acc = acc + jnp.dot(a.astype(jnp.bfloat16), w_ref[t],
                                preferred_element_type=jnp.float32)
        y = jnp.maximum(acc + bias_ref[...], 0.0)                # ReLU(conv + b)
        # torch.cat((x, out), 1): input lives in columns [0:Cin], conv weights
        # only populate columns [Cin:Cin+G], so an exact f32 add is the concat.
        y = y + x_ref[pl.ds(base + center_off, tm), :]
        o_ref[...] = y

    return kernel


def rdb_conv_forward(x_nchw, w_oihw, bias, *, tm=512):
    """Pallas forward of RDB_Conv: cat((x, relu(conv2d(x))), dim=1). NCHW in/out."""
    n, cin, h, w = x_nchw.shape
    g, cin_w, kh, kw = w_oihw.shape
    assert cin == cin_w and kh == kw and kh % 2 == 1
    pad = (kh - 1) // 2
    hp, wp = h + 2 * pad, w + 2 * pad

    # Lane-dense channel width shared by the input pass-through and conv output.
    cp = max(128, _round_up(cin + g, 128))

    # Tiling over the flattened pixel rows of the *padded* image.
    m_valid = n * hp * wp
    tm = min(tm, _round_up(m_valid, 8))
    num_tiles = pl.cdiv(m_valid, tm)
    mp = num_tiles * tm

    # Row offsets of the k*k taps and of the window center in the flattened
    # padded image (row-major over (n, i, j)).
    offsets = tuple(dy * wp + dx for dy in range(kh) for dx in range(kw))
    center_off = pad * wp + pad
    max_off = max(offsets)
    ra = _round_up(mp + max_off, 8)

    # A: (rows, Cp) f32 -- NHWC, spatially zero-padded, channel-padded to Cp once.
    x_nhwc = jnp.transpose(x_nchw, (0, 2, 3, 1)).astype(jnp.float32)
    x_sp = jnp.pad(x_nhwc, ((0, 0), (pad, pad), (pad, pad), (0, cp - cin)))
    a = x_sp.reshape(m_valid, cp)
    a = jnp.pad(a, ((0, ra - m_valid), (0, 0)))

    # Per-tap (Cp, Cp) bf16 weights: real block at rows [0:Cin] x cols [Cin:Cin+G].
    w_taps = jnp.transpose(w_oihw, (2, 3, 1, 0)).reshape(kh * kw, cin, g)
    w_full = jnp.zeros((kh * kw, cp, cp), jnp.float32)
    w_full = w_full.at[:, :cin, cin:cin + g].set(w_taps).astype(jnp.bfloat16)
    bias_pad = jnp.zeros((1, cp), jnp.float32).at[0, cin:cin + g].set(
        bias.astype(jnp.float32))

    y = pl.pallas_call(
        _make_rdb_conv_kernel(tm, cp, offsets, center_off),
        out_shape=jax.ShapeDtypeStruct((mp, cp), jnp.float32),
        grid_spec=pltpu.PrefetchScalarGridSpec(
            num_scalar_prefetch=0,
            grid=(num_tiles,),
            in_specs=[
                # Whole padded image stays VMEM-resident across grid steps.
                pl.BlockSpec((ra, cp), lambda i: (0, 0)),
                pl.BlockSpec((kh * kw, cp, cp), lambda i: (0, 0, 0)),
                pl.BlockSpec((1, cp), lambda i: (0, 0)),
            ],
            out_specs=pl.BlockSpec((tm, cp), lambda i: (i, 0)),
        ),
        compiler_params=pltpu.CompilerParams(
            dimension_semantics=("parallel",),
        ),
    )(a, w_full, bias_pad)

    # Valid output pixels are the top-left (h, w) window of each padded image.
    y = y[:m_valid].reshape(n, hp, wp, cp)[:, :h, :w, :cin + g]
    return jnp.transpose(y, (0, 3, 1, 2))  # NHWC -> NCHW


# ----------------------------------------------------------------------------
# Pure-JAX reference (lax conv) for correctness check
# ----------------------------------------------------------------------------
def rdb_conv_reference(x_nchw, w_oihw, bias):
    kh = w_oihw.shape[2]
    pad = (kh - 1) // 2
    x = jnp.transpose(x_nchw, (0, 2, 3, 1))
    w_hwio = jnp.transpose(w_oihw, (2, 3, 1, 0))
    y = lax.conv_general_dilated(
        x, w_hwio, (1, 1), [(pad, pad), (pad, pad)],
        dimension_numbers=("NHWC", "HWIO", "NHWC"))
    y = jnp.maximum(y + bias.reshape(1, 1, 1, -1), 0.0)
    out = jnp.concatenate([x, y], axis=-1)
    return jnp.transpose(out, (0, 3, 1, 2))


if __name__ == "__main__":
    key = jax.random.PRNGKey(0)
    kx, kw_, kb = jax.random.split(key, 3)

    batch, in_ch, grow, ksize, hh, ww = 2, 16, 8, 3, 16, 16
    x = jax.random.normal(kx, (batch, in_ch, hh, ww), jnp.float32)
    weight = jax.random.normal(kw_, (grow, in_ch, ksize, ksize), jnp.float32)
    weight = weight / jnp.sqrt(float(in_ch * ksize * ksize))
    b = 0.01 * jax.random.normal(kb, (grow,), jnp.float32)

    fwd = jax.jit(rdb_conv_forward)
    out = jax.block_until_ready(fwd(x, weight, b))
    assert out.shape == (batch, in_ch + grow, hh, ww), out.shape

    ref = jax.block_until_ready(rdb_conv_reference(x, weight, b))
    # Channels [0:in_ch] are the concatenated input: exact f32 pass-through.
    err_x = float(jnp.max(jnp.abs(out[:, :in_ch] - ref[:, :in_ch])))
    assert err_x <= 1e-6, err_x
    # Channels [in_ch:] use bf16 MXU operands (f32 accumulation) -> looser tol.
    assert jnp.allclose(out[:, in_ch:], ref[:, in_ch:], rtol=2e-2, atol=2e-2), (
        float(jnp.max(jnp.abs(out[:, in_ch:] - ref[:, in_ch:]))))
    print("KERNEL_OK")
</pallas_src>

<mosaic_0001>
module attributes {stable_mosaic.version = 11 : i64} {
  func.func @kernel(%arg0: i32, %arg1: memref<1064x128xf32, #tpu.memory_space<vmem>>, %arg2: memref<9x128x128xbf16, #tpu.memory_space<vmem>>, %arg3: memref<1x128xf32, #tpu.memory_space<vmem>>, %arg4: memref<512x128xf32, #tpu.memory_space<vmem>>) attributes {dimension_semantics = [#tpu.dimension_semantics<parallel>], iteration_bounds = array<i64: 2>, scalar_prefetch = 0 : i64, scratch_operands = 0 : i64, tpu.core_type = #tpu.core_type<tc>, window_params = [{pipeline_mode = #tpu.pipeline_mode<synchronous>, transform_indices = @transform_0, window_bounds = array<i64: 1064, 128>}, {pipeline_mode = #tpu.pipeline_mode<synchronous>, transform_indices = @transform_1, window_bounds = array<i64: 9, 128, 128>}, {pipeline_mode = #tpu.pipeline_mode<synchronous>, transform_indices = @transform_2, window_bounds = array<i64: 1, 128>}, {transform_indices = @transform_3, window_bounds = array<i64: 512, 128>}]} {
    %c512_i32 = arith.constant 512 : i32
    %0 = arith.muli %arg0, %c512_i32 : i32
    %1 = tpu.assume_multiple %0, 512 : i32
    %cst = arith.constant 0.000000e+00 : f32
    %2 = vector.broadcast %cst : f32 to vector<512x128xf32>
    %c0_i32 = arith.constant 0 : i32
    %3 = arith.addi %1, %c0_i32 : i32
    %4 = arith.index_cast %3 : i32 to index
    %c0 = arith.constant 0 : index
    %5 = vector.load %arg1[%4, %c0] : memref<1064x128xf32, #tpu.memory_space<vmem>>, vector<512x128xf32>
    %6 = arith.truncf %5 : vector<512x128xf32> to vector<512x128xbf16>
    %c0_0 = arith.constant 0 : index
    %c0_1 = arith.constant 0 : index
    %c0_2 = arith.constant 0 : index
    %7 = vector.load %arg2[%c0_0, %c0_1, %c0_2] : memref<9x128x128xbf16, #tpu.memory_space<vmem>>, vector<1x128x128xbf16>
    %8 = vector.shape_cast %7 : vector<1x128x128xbf16> to vector<128x128xbf16>
    %cst_3 = arith.constant dense<0.000000e+00> : vector<512x128xf32>
    %9 = tpu.matmul %6, %8, %cst_3 {dimension_numbers = #tpu.dot_dimension_numbers<[1], [0], [0], [1], [0, 0, 1, 1], [], []>} : vector<512x128xbf16>, vector<128x128xbf16>, vector<512x128xf32> -> vector<512x128xf32>
    %10 = arith.addf %2, %9 : vector<512x128xf32>
    %c1_i32 = arith.constant 1 : i32
    %11 = arith.addi %1, %c1_i32 : i32
    %12 = arith.index_cast %11 : i32 to index
    %c0_4 = arith.constant 0 : index
    %13 = vector.load %arg1[%12, %c0_4] : memref<1064x128xf32, #tpu.memory_space<vmem>>, vector<512x128xf32>
    %14 = arith.truncf %13 : vector<512x128xf32> to vector<512x128xbf16>
    %c1 = arith.constant 1 : index
    %c0_5 = arith.constant 0 : index
    %c0_6 = arith.constant 0 : index
    %15 = vector.load %arg2[%c1, %c0_5, %c0_6] : memref<9x128x128xbf16, #tpu.memory_space<vmem>>, vector<1x128x128xbf16>
    %16 = vector.shape_cast %15 : vector<1x128x128xbf16> to vector<128x128xbf16>
    %cst_7 = arith.constant dense<0.000000e+00> : vector<512x128xf32>
    %17 = tpu.matmul %14, %16, %cst_7 {dimension_numbers = #tpu.dot_dimension_numbers<[1], [0], [0], [1], [0, 0, 1, 1], [], []>} : vector<512x128xbf16>, vector<128x128xbf16>, vector<512x128xf32> -> vector<512x128xf32>
    %18 = arith.addf %10, %17 : vector<512x128xf32>
    %c2_i32 = arith.constant 2 : i32
    %19 = arith.addi %1, %c2_i32 : i32
    %20 = arith.index_cast %19 : i32 to index
    %c0_8 = arith.constant 0 : index
    %21 = vector.load %arg1[%20, %c0_8] : memref<1064x128xf32, #tpu.memory_space<vmem>>, vector<512x128xf32>
    %22 = arith.truncf %21 : vector<512x128xf32> to vector<512x128xbf16>
    %c2 = arith.constant 2 : index
    %c0_9 = arith.constant 0 : index
    %c0_10 = arith.constant 0 : index
    %23 = vector.load %arg2[%c2, %c0_9, %c0_10] : memref<9x128x128xbf16, #tpu.memory_space<vmem>>, vector<1x128x128xbf16>
    %24 = vector.shape_cast %23 : vector<1x128x128xbf16> to vector<128x128xbf16>
    %cst_11 = arith.constant dense<0.000000e+00> : vector<512x128xf32>
    %25 = tpu.matmul %22, %24, %cst_11 {dimension_numbers = #tpu.dot_dimension_numbers<[1], [0], [0], [1], [0, 0, 1, 1], [], []>} : vector<512x128xbf16>, vector<128x128xbf16>, vector<512x128xf32> -> vector<512x128xf32>
    %26 = arith.addf %18, %25 : vector<512x128xf32>
    %c18_i32 = arith.constant 18 : i32
    %27 = arith.addi %1, %c18_i32 : i32
    %28 = arith.index_cast %27 : i32 to index
    %c0_12 = arith.constant 0 : index
    %29 = vector.load %arg1[%28, %c0_12] : memref<1064x128xf32, #tpu.memory_space<vmem>>, vector<512x128xf32>
    %30 = arith.truncf %29 : vector<512x128xf32> to vector<512x128xbf16>
    %c3 = arith.constant 3 : index
    %c0_13 = arith.constant 0 : index
    %c0_14 = arith.constant 0 : index
    %31 = vector.load %arg2[%c3, %c0_13, %c0_14] : memref<9x128x128xbf16, #tpu.memory_space<vmem>>, vector<1x128x128xbf16>
    %32 = vector.shape_cast %31 : vector<1x128x128xbf16> to vector<128x128xbf16>
    %cst_15 = arith.constant dense<0.000000e+00> : vector<512x128xf32>
    %33 = tpu.matmul %30, %32, %cst_15 {dimension_numbers = #tpu.dot_dimension_numbers<[1], [0], [0], [1], [0, 0, 1, 1], [], []>} : vector<512x128xbf16>, vector<128x128xbf16>, vector<512x128xf32> -> vector<512x128xf32>
    %34 = arith.addf %26, %33 : vector<512x128xf32>
    %c19_i32 = arith.constant 19 : i32
    %35 = arith.addi %1, %c19_i32 : i32
    %36 = arith.index_cast %35 : i32 to index
    %c0_16 = arith.constant 0 : index
    %37 = vector.load %arg1[%36, %c0_16] : memref<1064x128xf32, #tpu.memory_space<vmem>>, vector<512x128xf32>
    %38 = arith.truncf %37 : vector<512x128xf32> to vector<512x128xbf16>
    %c4 = arith.constant 4 : index
    %c0_17 = arith.constant 0 : index
    %c0_18 = arith.constant 0 : index
    %39 = vector.load %arg2[%c4, %c0_17, %c0_18] : memref<9x128x128xbf16, #tpu.memory_space<vmem>>, vector<1x128x128xbf16>
    %40 = vector.shape_cast %39 : vector<1x128x128xbf16> to vector<128x128xbf16>
    %cst_19 = arith.constant dense<0.000000e+00> : vector<512x128xf32>
    %41 = tpu.matmul %38, %40, %cst_19 {dimension_numbers = #tpu.dot_dimension_numbers<[1], [0], [0], [1], [0, 0, 1, 1], [], []>} : vector<512x128xbf16>, vector<128x128xbf16>, vector<512x128xf32> -> vector<512x128xf32>
    %42 = arith.addf %34, %41 : vector<512x128xf32>
    %c20_i32 = arith.constant 20 : i32
    %43 = arith.addi %1, %c20_i32 : i32
    %44 = arith.index_cast %43 : i32 to index
    %c0_20 = arith.constant 0 : index
    %45 = vector.load %arg1[%44, %c0_20] : memref<1064x128xf32, #tpu.memory_space<vmem>>, vector<512x128xf32>
    %46 = arith.truncf %45 : vector<512x128xf32> to vector<512x128xbf16>
    %c5 = arith.constant 5 : index
    %c0_21 = arith.constant 0 : index
    %c0_22 = arith.constant 0 : index
    %47 = vector.load %arg2[%c5, %c0_21, %c0_22] : memref<9x128x128xbf16, #tpu.memory_space<vmem>>, vector<1x128x128xbf16>
    %48 = vector.shape_cast %47 : vector<1x128x128xbf16> to vector<128x128xbf16>
    %cst_23 = arith.constant dense<0.000000e+00> : vector<512x128xf32>
    %49 = tpu.matmul %46, %48, %cst_23 {dimension_numbers = #tpu.dot_dimension_numbers<[1], [0], [0], [1], [0, 0, 1, 1], [], []>} : vector<512x128xbf16>, vector<128x128xbf16>, vector<512x128xf32> -> vector<512x128xf32>
    %50 = arith.addf %42, %49 : vector<512x128xf32>
    %c36_i32 = arith.constant 36 : i32
    %51 = arith.addi %1, %c36_i32 : i32
    %52 = arith.index_cast %51 : i32 to index
    %c0_24 = arith.constant 0 : index
    %53 = vector.load %arg1[%52, %c0_24] : memref<1064x128xf32, #tpu.memory_space<vmem>>, vector<512x128xf32>
    %54 = arith.truncf %53 : vector<512x128xf32> to vector<512x128xbf16>
    %c6 = arith.constant 6 : index
    %c0_25 = arith.constant 0 : index
    %c0_26 = arith.constant 0 : index
    %55 = vector.load %arg2[%c6, %c0_25, %c0_26] : memref<9x128x128xbf16, #tpu.memory_space<vmem>>, vector<1x128x128xbf16>
    %56 = vector.shape_cast %55 : vector<1x128x128xbf16> to vector<128x128xbf16>
    %cst_27 = arith.constant dense<0.000000e+00> : vector<512x128xf32>
    %57 = tpu.matmul %54, %56, %cst_27 {dimension_numbers = #tpu.dot_dimension_numbers<[1], [0], [0], [1], [0, 0, 1, 1], [], []>} : vector<512x128xbf16>, vector<128x128xbf16>, vector<512x128xf32> -> vector<512x128xf32>
    %58 = arith.addf %50, %57 : vector<512x128xf32>
    %c37_i32 = arith.constant 37 : i32
    %59 = arith.addi %1, %c37_i32 : i32
    %60 = arith.index_cast %59 : i32 to index
    %c0_28 = arith.constant 0 : index
    %61 = vector.load %arg1[%60, %c0_28] : memref<1064x128xf32, #tpu.memory_space<vmem>>, vector<512x128xf32>
    %62 = arith.truncf %61 : vector<512x128xf32> to vector<512x128xbf16>
    %c7 = arith.constant 7 : index
    %c0_29 = arith.constant 0 : index
    %c0_30 = arith.constant 0 : index
    %63 = vector.load %arg2[%c7, %c0_29, %c0_30] : memref<9x128x128xbf16, #tpu.memory_space<vmem>>, vector<1x128x128xbf16>
    %64 = vector.shape_cast %63 : vector<1x128x128xbf16> to vector<128x128xbf16>
    %cst_31 = arith.constant dense<0.000000e+00> : vector<512x128xf32>
    %65 = tpu.matmul %62, %64, %cst_31 {dimension_numbers = #tpu.dot_dimension_numbers<[1], [0], [0], [1], [0, 0, 1, 1], [], []>} : vector<512x128xbf16>, vector<128x128xbf16>, vector<512x128xf32> -> vector<512x128xf32>
    %66 = arith.addf %58, %65 : vector<512x128xf32>
    %c38_i32 = arith.constant 38 : i32
    %67 = arith.addi %1, %c38_i32 : i32
    %68 = arith.index_cast %67 : i32 to index
    %c0_32 = arith.constant 0 : index
    %69 = vector.load %arg1[%68, %c0_32] : memref<1064x128xf32, #tpu.memory_space<vmem>>, vector<512x128xf32>
    %70 = arith.truncf %69 : vector<512x128xf32> to vector<512x128xbf16>
    %c8 = arith.constant 8 : index
    %c0_33 = arith.constant 0 : index
    %c0_34 = arith.constant 0 : index
    %71 = vector.load %arg2[%c8, %c0_33, %c0_34] : memref<9x128x128xbf16, #tpu.memory_space<vmem>>, vector<1x128x128xbf16>
    %72 = vector.shape_cast %71 : vector<1x128x128xbf16> to vector<128x128xbf16>
    %cst_35 = arith.constant dense<0.000000e+00> : vector<512x128xf32>
    %73 = tpu.matmul %70, %72, %cst_35 {dimension_numbers = #tpu.dot_dimension_numbers<[1], [0], [0], [1], [0, 0, 1, 1], [], []>} : vector<512x128xbf16>, vector<128x128xbf16>, vector<512x128xf32> -> vector<512x128xf32>
    %74 = arith.addf %66, %73 : vector<512x128xf32>
    %c0_36 = arith.constant 0 : index
    %c0_37 = arith.constant 0 : index
    %75 = vector.load %arg3[%c0_36, %c0_37] : memref<1x128xf32, #tpu.memory_space<vmem>>, vector<1x128xf32>
    %76 = vector.broadcast %75 : vector<1x128xf32> to vector<512x128xf32>
    %77 = arith.addf %74, %76 : vector<512x128xf32>
    %cst_38 = arith.constant 0.000000e+00 : f32
    %78 = vector.broadcast %cst_38 : f32 to vector<512x128xf32>
    %79 = arith.maximumf %77, %78 : vector<512x128xf32>
    %c19_i32_39 = arith.constant 19 : i32
    %80 = arith.addi %1, %c19_i32_39 : i32
    %81 = arith.index_cast %80 : i32 to index
    %c0_40 = arith.constant 0 : index
    %82 = vector.load %arg1[%81, %c0_40] : memref<1064x128xf32, #tpu.memory_space<vmem>>, vector<512x128xf32>
    %83 = arith.addf %79, %82 : vector<512x128xf32>
    %c0_41 = arith.constant 0 : index
    %c0_42 = arith.constant 0 : index
    %84 = vector.load %arg4[%c0_41, %c0_42] : memref<512x128xf32, #tpu.memory_space<vmem>>, vector<512x128xf32>
    tpu.vector_store %arg4[%c0_41, %c0_42], %83 {strides = array<i32>} : memref<512x128xf32, #tpu.memory_space<vmem>>, vector<512x128xf32>,
    return
  }
  func.func @transform_0(%arg0: i32) -> (i32, i32) {
    %c0_i32 = arith.constant 0 : i32
    %c0_i32_0 = arith.constant 0 : i32
    %c0_i32_1 = arith.constant 0 : i32
    return %c0_i32, %c0_i32_0 : i32, i32
  }
  func.func @transform_1(%arg0: i32) -> (i32, i32, i32) {
    %c0_i32 = arith.constant 0 : i32
    %c0_i32_0 = arith.constant 0 : i32
    %c0_i32_1 = arith.constant 0 : i32
    %c0_i32_2 = arith.constant 0 : i32
    return %c0_i32, %c0_i32_0, %c0_i32_1 : i32, i32, i32
  }
  func.func @transform_2(%arg0: i32) -> (i32, i32) {
    %c0_i32 = arith.constant 0 : i32
    %c0_i32_0 = arith.constant 0 : i32
    %c0_i32_1 = arith.constant 0 : i32
    return %c0_i32, %c0_i32_0 : i32, i32
  }
  func.func @transform_3(%arg0: i32) -> (i32, i32) {
    %c0_i32 = arith.constant 0 : i32
    %c0_i32_0 = arith.constant 0 : i32
    return %arg0, %c0_i32 : i32, i32
  }
}

</mosaic_0001>

<llo_original>
// kernel: rdb_conv_forward.1
$region0: #{rdb_conv_forward.1}
  #allocation0 [shape = 'u32[]', space=smem, size = 0x4, offset = 0x4, fixed_abs, tag = 'smem constant byte address 0x4 - core index']
  #allocation1 [shape = 'u32[72,128]{1,0:T(1,128)}', space=vmem, size = 0x9000, scoped, tag = 'internal scratch']
  %s0 = inlined_call_operand.vmem [shape: f32[1064,128], index: 0, kind: input, shape index: {}]
  %s1 = inlined_call_operand.vmem [shape: bf16[9,128,128], index: 1, kind: input, shape index: {}]
  %s2 = inlined_call_operand.vmem [shape: f32[1,128], index: 2, kind: input, shape index: {}]
  %s3 = inlined_call_operand.vmem [shape: f32[1024,128], index: 3, kind: output, shape index: {}]
  %s4 = sld [smem:[#allocation0]]
  $region45: #{rdb_conv_forward.1} parent=0
    _
  %s6 = ssub.s32 1, %s4
  %s7 = scalar_select 0, %s6, %s4
  loop: start=0, step=1, limit=4
  $region2: #{rdb_conv_forward.1} parent=0 // loop_pre_header
    _
  $region3: #{rdb_conv_forward.1} parent=0 // loop_header
    %s9 = sphi 0, %s13
    %p10 = scmp.ge.s32.totalorder %s9, 4
    %s17 = sphi 0, %s17
    %s19 = sphi 0, %s17
    %s20 = sphi 0, %s19
    %s34 = sphi 0, %s20
    %s38 = sphi 0, %s38
    %s40 = sphi 0, %s38
    %s41 = sphi 0, %s40
    %s55 = sphi 0, %s41
    %s59 = sphi 0, %s59
    %s61 = sphi 0, %s59
    %s62 = sphi 0, %s61
    %s76 = sphi 0, %s62
    %s82 = sphi 0, %s84
    %s85 = sphi 0, %s82
    %s86 = sphi 0, %s85
    %s102 = sphi 0, %s86
  $region4: #{rdb_conv_forward.1} parent=0 // loop_header_branch
    %12 = sbr.rel (%p10) target = $region8
  $region5: #{rdb_conv_forward.1} parent=0 // loop_body
    %s14 = ssub.s32 %s9, 1
    %s15 = ssub.s32 %s9, 2
    %s16 = sadd.s32 %s9, 1
    %s18 = sadd.s32 %s17, 1
    %p21 = scmp.eq.s32.totalorder %s9, 1
    %p22 = scmp.ne.s32.totalorder %s17, %s19
    %p23 = scmp.eq.s32.totalorder %s9, 0
    %p24 = por %p22, %p23
    %p25 = scmp.ne.s32.totalorder %s17, %s19
    %p26 = scmp.eq.s32.totalorder %s14, 1
    %p27 = por %p25, %p26
    %p28 = scmp.ne.s32.totalorder %s19, %s20
    %p29 = scmp.eq.s32.totalorder %s14, 0
    %p30 = por %p28, %p29
    %p31 = scmp.ne.s32.totalorder %s19, %s20
    %p32 = scmp.eq.s32.totalorder %s15, 1
    %p33 = por %p31, %p32
    %p35 = scmp.ne.s32.totalorder %s20, %s34
    %p36 = scmp.eq.s32.totalorder %s15, 0
    %p37 = por %p35, %p36
    %s39 = sadd.s32 %s38, 1
    %p42 = scmp.eq.s32.totalorder %s9, 1
    %p43 = scmp.ne.s32.totalorder %s38, %s40
    %p44 = scmp.eq.s32.totalorder %s9, 0
    %p45 = por %p43, %p44
    %p46 = scmp.ne.s32.totalorder %s38, %s40
    %p47 = scmp.eq.s32.totalorder %s14, 1
    %p48 = por %p46, %p47
    %p49 = scmp.ne.s32.totalorder %s40, %s41
    %p50 = scmp.eq.s32.totalorder %s14, 0
    %p51 = por %p49, %p50
    %p52 = scmp.ne.s32.totalorder %s40, %s41
    %p53 = scmp.eq.s32.totalorder %s15, 1
    %p54 = por %p52, %p53
    %p56 = scmp.ne.s32.totalorder %s41, %s55
    %p57 = scmp.eq.s32.totalorder %s15, 0
    %p58 = por %p56, %p57
    %s60 = sadd.s32 %s59, 1
    %p63 = scmp.eq.s32.totalorder %s9, 1
    %p64 = scmp.ne.s32.totalorder %s59, %s61
    %p65 = scmp.eq.s32.totalorder %s9, 0
    %p66 = por %p64, %p65
    %p67 = scmp.ne.s32.totalorder %s59, %s61
    %p68 = scmp.eq.s32.totalorder %s14, 1
    %p69 = por %p67, %p68
    %p70 = scmp.ne.s32.totalorder %s61, %s62
    %p71 = scmp.eq.s32.totalorder %s14, 0
    %p72 = por %p70, %p71
    %p73 = scmp.ne.s32.totalorder %s61, %s62
    %p74 = scmp.eq.s32.totalorder %s15, 1
    %p75 = por %p73, %p74
    %p77 = scmp.ne.s32.totalorder %s62, %s76
    %p78 = scmp.eq.s32.totalorder %s15, 0
    %p79 = por %p77, %p78
    %s80 = ssub.s32 %s9, %s16
    %p81 = scmp.eq.s32.totalorder %s80, 0
    %s83 = sadd.s32 %s82, 1
    %s84 = scalar_select %p81, %s82, %s83
    %p87 = pneg %p81
    %p88 = scmp.eq.s32.totalorder %s9, 1
    %p89 = por %p87, %p88
    %p90 = scmp.ne.s32.totalorder %s82, %s85
    %p91 = scmp.eq.s32.totalorder %s9, 0
    %p92 = por %p90, %p91
    %p93 = scmp.ne.s32.totalorder %s82, %s85
    %p94 = scmp.eq.s32.totalorder %s14, 1
    %p95 = por %p93, %p94
    %p96 = scmp.ne.s32.totalorder %s85, %s86
    %p97 = scmp.eq.s32.totalorder %s14, 0
    %p98 = por %p96, %p97
    %p99 = scmp.ne.s32.totalorder %s85, %s86
    %p100 = scmp.eq.s32.totalorder %s15, 1
    %p101 = por %p99, %p100
    %p103 = scmp.ne.s32.totalorder %s86, %s102
    %p104 = scmp.eq.s32.totalorder %s15, 0
    %p105 = por %p103, %p104
    %p106 = scmp.le.s32.totalorder 1, %s9
    %p107 = scmp.lt.s32.totalorder %s9, 3
    %p108 = pnand %p106, %p107
    %p109 = pneg %p108
    // Predicated region
    $region9: #{rdb_conv_forward.1} parent=5 // pred_check
      _
    $region10: #{rdb_conv_forward.1} parent=5 // pred_check_branch
      %111 = sbr.rel (%p108) target = $region12
    $region11: #{rdb_conv_forward.1} parent=5 // pred_region
      %s112 = ssub.s32 %s9, 1
      // Predicated region
      $region13: #{rdb_conv_forward.1} parent=11 // pred_check
        %p113 = pneg %p30
      $region14: #{rdb_conv_forward.1} parent=11 // pred_check_branch
        %115 = sbr.rel (%p113) target = $region16
      $region15: #{rdb_conv_forward.1} parent=11 // pred_region
        _
      $region16: #{rdb_conv_forward.1} parent=11 // pred_fallthru
        _
      // Predicated region
      $region17: #{rdb_conv_forward.1} parent=11 // pred_check
        %p116 = pneg %p51
      $region18: #{rdb_conv_forward.1} parent=11 // pred_check_branch
        %118 = sbr.rel (%p116) target = $region20
      $region19: #{rdb_conv_forward.1} parent=11 // pred_region
        _
      $region20: #{rdb_conv_forward.1} parent=11 // pred_fallthru
        _
      // Predicated region
      $region21: #{rdb_conv_forward.1} parent=11 // pred_check
        %p119 = pneg %p72
      $region22: #{rdb_conv_forward.1} parent=11 // pred_check_branch
        %121 = sbr.rel (%p119) target = $region24
      $region23: #{rdb_conv_forward.1} parent=11 // pred_region
        _
      $region24: #{rdb_conv_forward.1} parent=11 // pred_fallthru
        _
    $region12: #{rdb_conv_forward.1} parent=5 // pred_fallthru
      _
    %p122 = scmp.lt.s32.totalorder %s9, 2
    // Predicated region
    $region25: #{rdb_conv_forward.1} parent=5 // pred_check
      %p123 = pneg %p122
    $region26: #{rdb_conv_forward.1} parent=5 // pred_check_branch
      %125 = sbr.rel (%p123) target = $region28
    $region27: #{rdb_conv_forward.1} parent=5 // pred_region
      _
    $region28: #{rdb_conv_forward.1} parent=5 // pred_fallthru
      _
    %p126 = scmp.le.s32.totalorder 1, %s9
    %p127 = scmp.lt.s32.totalorder %s9, 3
    %p128 = pnand %p126, %p127
    %p129 = pneg %p128
    // Predicated region
    $region29: #{rdb_conv_forward.1} parent=5 // pred_check
      _
    $region30: #{rdb_conv_forward.1} parent=5 // pred_check_branch
      %131 = sbr.rel (%p128) target = $region32
    $region31: #{rdb_conv_forward.1} parent=5 // pred_region
      %s132 = ssub.s32 %s9, 1
      %p133 = pneg %p30
      %p134 = pneg %p27
      %p135 = pneg %p51
      %p136 = pneg %p48
      %p137 = pneg %p72
      %p138 = pneg %p69
      %p139 = pneg %p98
      %p140 = pneg %p95
      %s141 = smul.u32 64, %s14
      %p142 = scmp.lt.s32.totalorder %s141, 127
      %s143 = scalar_select %p142, %s141, 127
      %s144 = smul.addr %s143, 8
      %s145 = scalar_lea.vmem %s3, %s144
      %s146 = smul.u32 64, %s14
      %p147 = scmp.lt.s32.totalorder %s146, 127
      %s148 = scalar_select %p147, %s146, 127
      %s149 = smul.addr %s148, 8
      %s150 = scalar_lea.vmem %s3, %s149
      %s151 = smul.u32 64, %s14
      %s152 = smul.u32 %s14, 512
      %s153 = scalar_lea.vmem %s0, %s152
      %v154 = vld [vmem:[%s153] sm:$0xff]
      %v155 = vld [vmem:[%s153 + $0x8] sm:$0xff]
      %v156 = vld [vmem:[%s153 + $0x10] sm:$0xff]
      %v157 = vld [vmem:[%s153 + $0x18] sm:$0xff]
      %v158 = vld [vmem:[%s153 + $0x20] sm:$0xff]
      %v159 = vld [vmem:[%s153 + $0x28] sm:$0xff]
      %v160 = vld [vmem:[%s153 + $0x30] sm:$0xff]
      %v161 = vld [vmem:[%s153 + $0x38] sm:$0xff]
      %v162 = vld [vmem:[%s153 + $0x40] sm:$0xff]
      %v163 = vld [vmem:[%s153 + $0x48] sm:$0xff]
      %v164 = vld [vmem:[%s153 + $0x50] sm:$0xff]
      %v165 = vld [vmem:[%s153 + $0x58] sm:$0xff]
      %v166 = vld [vmem:[%s153 + $0x60] sm:$0xff]
      %v167 = vld [vmem:[%s153 + $0x68] sm:$0xff]
      %v168 = vld [vmem:[%s153 + $0x70] sm:$0xff]
      %v169 = vld [vmem:[%s153 + $0x78] sm:$0xff]
      %v170 = vld [vmem:[%s153 + $0x80] sm:$0xff]
      %v171 = vld [vmem:[%s153 + $0x88] sm:$0xff]
      %v172 = vld [vmem:[%s153 + $0x90] sm:$0xff]
      %v173 = vld [vmem:[%s153 + $0x98] sm:$0xff]
      %v174 = vld [vmem:[%s153 + $0xa0] sm:$0xff]
      %v175 = vld [vmem:[%s153 + $0xa8] sm:$0xff]
      %v176 = vld [vmem:[%s153 + $0xb0] sm:$0xff]
      %v177 = vld [vmem:[%s153 + $0xb8] sm:$0xff]
      %v178 = vld [vmem:[%s153 + $0xc0] sm:$0xff]
      %v179 = vld [vmem:[%s153 + $0xc8] sm:$0xff]
      %v180 = vld [vmem:[%s153 + $0xd0] sm:$0xff]
      %v181 = vld [vmem:[%s153 + $0xd8] sm:$0xff]
      %v182 = vld [vmem:[%s153 + $0xe0] sm:$0xff]
      %v183 = vld [vmem:[%s153 + $0xe8] sm:$0xff]
      %v184 = vld [vmem:[%s153 + $0xf0] sm:$0xff]
      %v185 = vld [vmem:[%s153 + $0xf8] sm:$0xff]
      %v186 = vld [vmem:[%s153 + $0x100] sm:$0xff]
      %v187 = vld [vmem:[%s153 + $0x108] sm:$0xff]
      %v188 = vld [vmem:[%s153 + $0x110] sm:$0xff]
      %v189 = vld [vmem:[%s153 + $0x118] sm:$0xff]
      %v190 = vld [vmem:[%s153 + $0x120] sm:$0xff]
      %v191 = vld [vmem:[%s153 + $0x128] sm:$0xff]
      %v192 = vld [vmem:[%s153 + $0x130] sm:$0xff]
      %v193 = vld [vmem:[%s153 + $0x138] sm:$0xff]
      %v194 = vld [vmem:[%s153 + $0x140] sm:$0xff]
      %v195 = vld [vmem:[%s153 + $0x148] sm:$0xff]
      %v196 = vld [vmem:[%s153 + $0x150] sm:$0xff]
      %v197 = vld [vmem:[%s153 + $0x158] sm:$0xff]
      %v198 = vld [vmem:[%s153 + $0x160] sm:$0xff]
      %v199 = vld [vmem:[%s153 + $0x168] sm:$0xff]
      %v200 = vld [vmem:[%s153 + $0x170] sm:$0xff]
      %v201 = vld [vmem:[%s153 + $0x178] sm:$0xff]
      %v202 = vld [vmem:[%s153 + $0x180] sm:$0xff]
      %v203 = vld [vmem:[%s153 + $0x188] sm:$0xff]
      %v204 = vld [vmem:[%s153 + $0x190] sm:$0xff]
      %v205 = vld [vmem:[%s153 + $0x198] sm:$0xff]
      %v206 = vld [vmem:[%s153 + $0x1a0] sm:$0xff]
      %v207 = vld [vmem:[%s153 + $0x1a8] sm:$0xff]
      %v208 = vld [vmem:[%s153 + $0x1b0] sm:$0xff]
      %v209 = vld [vmem:[%s153 + $0x1b8] sm:$0xff]
      %v210 = vld [vmem:[%s153 + $0x1c0] sm:$0xff]
      %v211 = vld [vmem:[%s153 + $0x1c8] sm:$0xff]
      %v212 = vld [vmem:[%s153 + $0x1d0] sm:$0xff]
      %v213 = vld [vmem:[%s153 + $0x1d8] sm:$0xff]
      %v214 = vld [vmem:[%s153 + $0x1e0] sm:$0xff]
      %v215 = vld [vmem:[%s153 + $0x1e8] sm:$0xff]
      %v216 = vld [vmem:[%s153 + $0x1f0] sm:$0xff]
      %v217 = vld [vmem:[%s153 + $0x1f8] sm:$0xff]
      %v218 = vpack.c.bf16 %v155, %v154
      %v219 = vpack.c.bf16 %v157, %v156
      %v220 = vpack.c.bf16 %v159, %v158
      %v221 = vpack.c.bf16 %v161, %v160
      %v222 = vpack.c.bf16 %v163, %v162
      %v223 = vpack.c.bf16 %v165, %v164
      %v224 = vpack.c.bf16 %v167, %v166
      %v225 = vpack.c.bf16 %v169, %v168
      %v226 = vpack.c.bf16 %v171, %v170
      %v227 = vpack.c.bf16 %v173, %v172
      %v228 = vpack.c.bf16 %v175, %v174
      %v229 = vpack.c.bf16 %v177, %v176
      %v230 = vpack.c.bf16 %v179, %v178
      %v231 = vpack.c.bf16 %v181, %v180
      %v232 = vpack.c.bf16 %v183, %v182
      %v233 = vpack.c.bf16 %v185, %v184
      %v234 = vpack.c.bf16 %v187, %v186
      %v235 = vpack.c.bf16 %v189, %v188
      %v236 = vpack.c.bf16 %v191, %v190
      %v237 = vpack.c.bf16 %v193, %v192
      %v238 = vpack.c.bf16 %v195, %v194
      %v239 = vpack.c.bf16 %v197, %v196
      %v240 = vpack.c.bf16 %v199, %v198
      %v241 = vpack.c.bf16 %v201, %v200
      %v242 = vpack.c.bf16 %v203, %v202
      %v243 = vpack.c.bf16 %v205, %v204
      %v244 = vpack.c.bf16 %v207, %v206
      %v245 = vpack.c.bf16 %v209, %v208
      %v246 = vpack.c.bf16 %v211, %v210
      %v247 = vpack.c.bf16 %v213, %v212
      %v248 = vpack.c.bf16 %v215, %v214
      %v249 = vpack.c.bf16 %v217, %v216
      %v250 = vld [vmem:[%s1] sm:$0xf]
      %v251 = vld [vmem:[%s1 + $0x4] sm:$0xf]
      %v252 = vld [vmem:[%s1 + $0x8] sm:$0xf]
      %v253 = vld [vmem:[%s1 + $0xc] sm:$0xf]
      %v254 = vld [vmem:[%s1 + $0x10] sm:$0xf]
      %v255 = vld [vmem:[%s1 + $0x14] sm:$0xf]
      %v256 = vld [vmem:[%s1 + $0x18] sm:$0xf]
      %v257 = vld [vmem:[%s1 + $0x1c] sm:$0xf]
      %v258 = vld [vmem:[%s1 + $0x20] sm:$0xf]
      %v259 = vld [vmem:[%s1 + $0x24] sm:$0xf]
      %v260 = vld [vmem:[%s1 + $0x28] sm:$0xf]
      %v261 = vld [vmem:[%s1 + $0x2c] sm:$0xf]
      %v262 = vld [vmem:[%s1 + $0x30] sm:$0xf]
      %v263 = vld [vmem:[%s1 + $0x34] sm:$0xf]
      %v264 = vld [vmem:[%s1 + $0x38] sm:$0xf]
      %v265 = vld [vmem:[%s1 + $0x3c] sm:$0xf]
      %s266 = sadd.s32 %s152, 1
      %s267 = scalar_lea.vmem %s0, %s266
      %v268 = vld [vmem:[%s267] sm:$0xff]
      %v269 = vld [vmem:[%s267 + $0x8] sm:$0xff]
      %v270 = vld [vmem:[%s267 + $0x10] sm:$0xff]
      %v271 = vld [vmem:[%s267 + $0x18] sm:$0xff]
      %v272 = vld [vmem:[%s267 + $0x20] sm:$0xff]
      %v273 = vld [vmem:[%s267 + $0x28] sm:$0xff]
      %v274 = vld [vmem:[%s267 + $0x30] sm:$0xff]
      %v275 = vld [vmem:[%s267 + $0x38] sm:$0xff]
      %v276 = vld [vmem:[%s267 + $0x40] sm:$0xff]
      %v277 = vld [vmem:[%s267 + $0x48] sm:$0xff]
      %v278 = vld [vmem:[%s267 + $0x50] sm:$0xff]
      %v279 = vld [vmem:[%s267 + $0x58] sm:$0xff]
      %v280 = vld [vmem:[%s267 + $0x60] sm:$0xff]
      %v281 = vld [vmem:[%s267 + $0x68] sm:$0xff]
      %v282 = vld [vmem:[%s267 + $0x70] sm:$0xff]
      %v283 = vld [vmem:[%s267 + $0x78] sm:$0xff]
      %v284 = vld [vmem:[%s267 + $0x80] sm:$0xff]
      %v285 = vld [vmem:[%s267 + $0x88] sm:$0xff]
      %v286 = vld [vmem:[%s267 + $0x90] sm:$0xff]
      %v287 = vld [vmem:[%s267 + $0x98] sm:$0xff]
      %v288 = vld [vmem:[%s267 + $0xa0] sm:$0xff]
      %v289 = vld [vmem:[%s267 + $0xa8] sm:$0xff]
      %v290 = vld [vmem:[%s267 + $0xb0] sm:$0xff]
      %v291 = vld [vmem:[%s267 + $0xb8] sm:$0xff]
      %v292 = vld [vmem:[%s267 + $0xc0] sm:$0xff]
      %v293 = vld [vmem:[%s267 + $0xc8] sm:$0xff]
      %v294 = vld [vmem:[%s267 + $0xd0] sm:$0xff]
      %v295 = vld [vmem:[%s267 + $0xd8] sm:$0xff]
      %v296 = vld [vmem:[%s267 + $0xe0] sm:$0xff]
      %v297 = vld [vmem:[%s267 + $0xe8] sm:$0xff]
      %v298 = vld [vmem:[%s267 + $0xf0] sm:$0xff]
      %v299 = vld [vmem:[%s267 + $0xf8] sm:$0xff]
      %v300 = vld [vmem:[%s267 + $0x100] sm:$0xff]
      %v301 = vld [vmem:[%s267 + $0x108] sm:$0xff]
      %v302 = vld [vmem:[%s267 + $0x110] sm:$0xff]
      %v303 = vld [vmem:[%s267 + $0x118] sm:$0xff]
      %v304 = vld [vmem:[%s267 + $0x120] sm:$0xff]
      %v305 = vld [vmem:[%s267 + $0x128] sm:$0xff]
      %v306 = vld [vmem:[%s267 + $0x130] sm:$0xff]
      %v307 = vld [vmem:[%s267 + $0x138] sm:$0xff]
      %v308 = vld [vmem:[%s267 + $0x140] sm:$0xff]
      %v309 = vld [vmem:[%s267 + $0x148] sm:$0xff]
      %v310 = vld [vmem:[%s267 + $0x150] sm:$0xff]
      %v311 = vld [vmem:[%s267 + $0x158] sm:$0xff]
      %v312 = vld [vmem:[%s267 + $0x160] sm:$0xff]
      %v313 = vld [vmem:[%s267 + $0x168] sm:$0xff]
      %v314 = vld [vmem:[%s267 + $0x170] sm:$0xff]
      %v315 = vld [vmem:[%s267 + $0x178] sm:$0xff]
      %v316 = vld [vmem:[%s267 + $0x180] sm:$0xff]
      %v317 = vld [vmem:[%s267 + $0x188] sm:$0xff]
      %v318 = vld [vmem:[%s267 + $0x190] sm:$0xff]
      %v319 = vld [vmem:[%s267 + $0x198] sm:$0xff]
      %v320 = vld [vmem:[%s267 + $0x1a0] sm:$0xff]
      %v321 = vld [vmem:[%s267 + $0x1a8] sm:$0xff]
      %v322 = vld [vmem:[%s267 + $0x1b0] sm:$0xff]
      %v323 = vld [vmem:[%s267 + $0x1b8] sm:$0xff]
      %v324 = vld [vmem:[%s267 + $0x1c0] sm:$0xff]
      %v325 = vld [vmem:[%s267 + $0x1c8] sm:$0xff]
      %v326 = vld [vmem:[%s267 + $0x1d0] sm:$0xff]
      %v327 = vld [vmem:[%s267 + $0x1d8] sm:$0xff]
      %v328 = vld [vmem:[%s267 + $0x1e0] sm:$0xff]
      %v329 = vld [vmem:[%s267 + $0x1e8] sm:$0xff]
      %v330 = vld [vmem:[%s267 + $0x1f0] sm:$0xff]
      %v331 = vld [vmem:[%s267 + $0x1f8] sm:$0xff]
      %v332 = vpack.c.bf16 %v269, %v268
      %v333 = vpack.c.bf16 %v271, %v270
      %v334 = vpack.c.bf16 %v273, %v272
      %v335 = vpack.c.bf16 %v275, %v274
      %v336 = vpack.c.bf16 %v277, %v276
      %v337 = vpack.c.bf16 %v279, %v278
      %v338 = vpack.c.bf16 %v281, %v280
      %v339 = vpack.c.bf16 %v283, %v282
      %v340 = vpack.c.bf16 %v285, %v284
      %v341 = vpack.c.bf16 %v287, %v286
      %v342 = vpack.c.bf16 %v289, %v288
      %v343 = vpack.c.bf16 %v291, %v290
      %v344 = vpack.c.bf16 %v293, %v292
      %v345 = vpack.c.bf16 %v295, %v294
      %v346 = vpack.c.bf16 %v297, %v296
      %v347 = vpack.c.bf16 %v299, %v298
      %v348 = vpack.c.bf16 %v301, %v300
      %v349 = vpack.c.bf16 %v303, %v302
      %v350 = vpack.c.bf16 %v305, %v304
      %v351 = vpack.c.bf16 %v307, %v306
      %v352 = vpack.c.bf16 %v309, %v308
      %v353 = vpack.c.bf16 %v311, %v310
      %v354 = vpack.c.bf16 %v313, %v312
      %v355 = vpack.c.bf16 %v315, %v314
      %v356 = vpack.c.bf16 %v317, %v316
      %v357 = vpack.c.bf16 %v319, %v318
      %v358 = vpack.c.bf16 %v321, %v320
      %v359 = vpack.c.bf16 %v323, %v322
      %v360 = vpack.c.bf16 %v325, %v324
      %v361 = vpack.c.bf16 %v327, %v326
      %v362 = vpack.c.bf16 %v329, %v328
      %v363 = vpack.c.bf16 %v331, %v330
      %s364 = scalar_lea.vmem %s1, 64
      %v365 = vld [vmem:[%s364] sm:$0xf]
      %v366 = vld [vmem:[%s364 + $0x4] sm:$0xf]
      %v367 = vld [vmem:[%s364 + $0x8] sm:$0xf]
      %v368 = vld [vmem:[%s364 + $0xc] sm:$0xf]
      %v369 = vld [vmem:[%s364 + $0x10] sm:$0xf]
      %v370 = vld [vmem:[%s364 + $0x14] sm:$0xf]
      %v371 = vld [vmem:[%s364 + $0x18] sm:$0xf]
      %v372 = vld [vmem:[%s364 + $0x1c] sm:$0xf]
      %v373 = vld [vmem:[%s364 + $0x20] sm:$0xf]
      %v374 = vld [vmem:[%s364 + $0x24] sm:$0xf]
      %v375 = vld [vmem:[%s364 + $0x28] sm:$0xf]
      %v376 = vld [vmem:[%s364 + $0x2c] sm:$0xf]
      %v377 = vld [vmem:[%s364 + $0x30] sm:$0xf]
      %v378 = vld [vmem:[%s364 + $0x34] sm:$0xf]
      %v379 = vld [vmem:[%s364 + $0x38] sm:$0xf]
      %v380 = vld [vmem:[%s364 + $0x3c] sm:$0xf]
      %v397 = vunpack.c.l.b16 %v365
      %v398 = vunpack.c.l.b16 %v366
      %v399 = vunpack.c.l.b16 %v367
      %v400 = vunpack.c.l.b16 %v368
      %v401 = vunpack.c.l.b16 %v369
      %v402 = vunpack.c.l.b16 %v370
      %v403 = vunpack.c.l.b16 %v371
      %v404 = vunpack.c.l.b16 %v372
      %v405 = vunpack.c.l.b16 %v373
      %v406 = vunpack.c.l.b16 %v374
      %v407 = vunpack.c.l.b16 %v375
      %v408 = vunpack.c.l.b16 %v376
      %v409 = vunpack.c.l.b16 %v377
      %v410 = vunpack.c.l.b16 %v378
      %v411 = vunpack.c.l.b16 %v379
      %v412 = vunpack.c.l.b16 %v380
      %v413 = vpack.c.b16 %v398, %v397
      %v414 = vpack.c.b16 %v400, %v399
      %v415 = vpack.c.b16 %v402, %v401
      %v416 = vpack.c.b16 %v404, %v403
      %v417 = vpack.c.b16 %v406, %v405
      %v418 = vpack.c.b16 %v408, %v407
      %v419 = vpack.c.b16 %v410, %v409
      %v420 = vpack.c.b16 %v412, %v411
      %429 = vmatpush.bf16.msra.mxu0 %v420
      %430 = vmatpush.bf16.msra.mxu0 %v419
      %431 = vmatpush.bf16.msra.mxu0 %v418
      %432 = vmatpush.bf16.msra.mxu0 %v417
      %433 = vmatpush.bf16.msra.mxu0 %v416
      %434 = vmatpush.bf16.msra.mxu0 %v415
      %435 = vmatpush.bf16.msra.mxu0 %v414
      %436 = vmatpush.bf16.msra.mxu0 %v413
      %437 = vmatmul.bf16.gmra.mxu0 %v332
      %v438 = vpop.f32.mrf.mxu0
      %v439 = vadd.f32 0.0, %v438
      %v440 = vpop.f32.mrf.mxu0
      %v441 = vadd.f32 0.0, %v440
      %442 = vmatmul.bf16.gmra.mxu0 %v333
      %v443 = vpop.f32.mrf.mxu0
      %v444 = vadd.f32 0.0, %v443
      %v445 = vpop.f32.mrf.mxu0
      %v446 = vadd.f32 0.0, %v445
      %447 = vmatmul.bf16.gmra.mxu0 %v334
      %v448 = vpop.f32.mrf.mxu0
      %v449 = vadd.f32 0.0, %v448
      %v450 = vpop.f32.mrf.mxu0
      %v451 = vadd.f32 0.0, %v450
      %452 = vmatmul.bf16.gmra.mxu0 %v335
      %v453 = vpop.f32.mrf.mxu0
      %v454 = vadd.f32 0.0, %v453
      %v455 = vpop.f32.mrf.mxu0
      %v456 = vadd.f32 0.0, %v455
      %457 = vmatmul.bf16.gmra.mxu0 %v336
      %v458 = vpop.f32.mrf.mxu0
      %v459 = vadd.f32 0.0, %v458
      %v460 = vpop.f32.mrf.mxu0
      %v461 = vadd.f32 0.0, %v460
      %462 = vmatmul.bf16.gmra.mxu0 %v337
      %v463 = vpop.f32.mrf.mxu0
      %v464 = vadd.f32 0.0, %v463
      %v465 = vpop.f32.mrf.mxu0
      %v466 = vadd.f32 0.0, %v465
      %467 = vmatmul.bf16.gmra.mxu0 %v338
      %v468 = vpop.f32.mrf.mxu0
      %v469 = vadd.f32 0.0, %v468
      %v470 = vpop.f32.mrf.mxu0
      %v471 = vadd.f32 0.0, %v470
      %472 = vmatmul.bf16.gmra.mxu0 %v339
      %v473 = vpop.f32.mrf.mxu0
      %v474 = vadd.f32 0.0, %v473
      %v475 = vpop.f32.mrf.mxu0
      %v476 = vadd.f32 0.0, %v475
      %477 = vmatmul.bf16.gmra.mxu0 %v340
      %v478 = vpop.f32.mrf.mxu0
      %v479 = vadd.f32 0.0, %v478
      %v480 = vpop.f32.mrf.mxu0
      %v481 = vadd.f32 0.0, %v480
      %482 = vmatmul.bf16.gmra.mxu0 %v341
      %v483 = vpop.f32.mrf.mxu0
      %v484 = vadd.f32 0.0, %v483
      %v485 = vpop.f32.mrf.mxu0
      %v486 = vadd.f32 0.0, %v485
      %487 = vmatmul.bf16.gmra.mxu0 %v342
      %v488 = vpop.f32.mrf.mxu0
      %v489 = vadd.f32 0.0, %v488
      %v490 = vpop.f32.mrf.mxu0
      %v491 = vadd.f32 0.0, %v490
      %492 = vmatmul.bf16.gmra.mxu0 %v343
      %v493 = vpop.f32.mrf.mxu0
      %v494 = vadd.f32 0.0, %v493
      %v495 = vpop.f32.mrf.mxu0
      %v496 = vadd.f32 0.0, %v495
      %497 = vmatmul.bf16.gmra.mxu0 %v344
      %v498 = vpop.f32.mrf.mxu0
      %v499 = vadd.f32 0.0, %v498
      %v500 = vpop.f32.mrf.mxu0
      %v501 = vadd.f32 0.0, %v500
      %502 = vmatmul.bf16.gmra.mxu0 %v345
      %v503 = vpop.f32.mrf.mxu0
      %v504 = vadd.f32 0.0, %v503
      %v505 = vpop.f32.mrf.mxu0
      %v506 = vadd.f32 0.0, %v505
      %507 = vmatmul.bf16.gmra.mxu0 %v346
      %v508 = vpop.f32.mrf.mxu0
      %v509 = vadd.f32 0.0, %v508
      %v510 = vpop.f32.mrf.mxu0
      %v511 = vadd.f32 0.0, %v510
      %512 = vmatmul.bf16.gmra.mxu0 %v347
      %v513 = vpop.f32.mrf.mxu0
      %v514 = vadd.f32 0.0, %v513
      %v515 = vpop.f32.mrf.mxu0
      %v516 = vadd.f32 0.0, %v515
      %517 = vmatmul.bf16.gmra.mxu0 %v348
      %v518 = vpop.f32.mrf.mxu0
      %v519 = vadd.f32 0.0, %v518
      %v520 = vpop.f32.mrf.mxu0
      %v521 = vadd.f32 0.0, %v520
      %522 = vmatmul.bf16.gmra.mxu0 %v349
      %v523 = vpop.f32.mrf.mxu0
      %v524 = vadd.f32 0.0, %v523
      %v525 = vpop.f32.mrf.mxu0
      %v526 = vadd.f32 0.0, %v525
      %527 = vmatmul.bf16.gmra.mxu0 %v350
      %v528 = vpop.f32.mrf.mxu0
      %v529 = vadd.f32 0.0, %v528
      %v530 = vpop.f32.mrf.mxu0
      %v531 = vadd.f32 0.0, %v530
      %532 = vmatmul.bf16.gmra.mxu0 %v351
      %v533 = vpop.f32.mrf.mxu0
      %v534 = vadd.f32 0.0, %v533
      %v535 = vpop.f32.mrf.mxu0
      %v536 = vadd.f32 0.0, %v535
      %537 = vmatmul.bf16.gmra.mxu0 %v352
      %v538 = vpop.f32.mrf.mxu0
      %v539 = vadd.f32 0.0, %v538
      %v540 = vpop.f32.mrf.mxu0
      %v541 = vadd.f32 0.0, %v540
      %542 = vmatmul.bf16.gmra.mxu0 %v353
      %v543 = vpop.f32.mrf.mxu0
      %v544 = vadd.f32 0.0, %v543
      %v545 = vpop.f32.mrf.mxu0
      %v546 = vadd.f32 0.0, %v545
      %547 = vmatmul.bf16.gmra.mxu0 %v354
      %v548 = vpop.f32.mrf.mxu0
      %v549 = vadd.f32 0.0, %v548
      %v550 = vpop.f32.mrf.mxu0
      %v551 = vadd.f32 0.0, %v550
      %552 = vmatmul.bf16.gmra.mxu0 %v355
      %v553 = vpop.f32.mrf.mxu0
      %v554 = vadd.f32 0.0, %v553
      %v555 = vpop.f32.mrf.mxu0
      %v556 = vadd.f32 0.0, %v555
      %557 = vmatmul.bf16.gmra.mxu0 %v356
      %v558 = vpop.f32.mrf.mxu0
      %v559 = vadd.f32 0.0, %v558
      %v560 = vpop.f32.mrf.mxu0
      %v561 = vadd.f32 0.0, %v560
      %562 = vmatmul.bf16.gmra.mxu0 %v357
      %v563 = vpop.f32.mrf.mxu0
      %v564 = vadd.f32 0.0, %v563
      %v565 = vpop.f32.mrf.mxu0
      %v566 = vadd.f32 0.0, %v565
      %567 = vmatmul.bf16.gmra.mxu0 %v358
      %v568 = vpop.f32.mrf.mxu0
      %v569 = vadd.f32 0.0, %v568
      %v570 = vpop.f32.mrf.mxu0
      %v571 = vadd.f32 0.0, %v570
      %572 = vmatmul.bf16.gmra.mxu0 %v359
      %v573 = vpop.f32.mrf.mxu0
      %v574 = vadd.f32 0.0, %v573
      %v575 = vpop.f32.mrf.mxu0
      %v576 = vadd.f32 0.0, %v575
      %577 = vmatmul.bf16.gmra.mxu0 %v360
      %v578 = vpop.f32.mrf.mxu0
      %v579 = vadd.f32 0.0, %v578
      %v580 = vpop.f32.mrf.mxu0
      %v581 = vadd.f32 0.0, %v580
      %582 = vmatmul.bf16.gmra.mxu0 %v361
      %v583 = vpop.f32.mrf.mxu0
      %v584 = vadd.f32 0.0, %v583
      %v585 = vpop.f32.mrf.mxu0
      %v586 = vadd.f32 0.0, %v585
      %587 = vmatmul.bf16.gmra.mxu0 %v362
      %v588 = vpop.f32.mrf.mxu0
      %v589 = vadd.f32 0.0, %v588
      %v590 = vpop.f32.mrf.mxu0
      %v591 = vadd.f32 0.0, %v590
      %592 = vmatmul.bf16.gmra.mxu0 %v363
      %v593 = vpop.f32.mrf.mxu0
      %v594 = vadd.f32 0.0, %v593
      %v595 = vpop.f32.mrf.mxu0
      %v596 = vadd.f32 0.0, %v595
      %597 = vdwg.mxu0
      %v614 = vunpack.c.l.b16 %v250
      %v615 = vunpack.c.l.b16 %v251
      %v616 = vunpack.c.l.b16 %v252
      %v617 = vunpack.c.l.b16 %v253
      %v618 = vunpack.c.l.b16 %v254
      %v619 = vunpack.c.l.b16 %v255
      %v620 = vunpack.c.l.b16 %v256
      %v621 = vunpack.c.l.b16 %v257
      %v622 = vunpack.c.l.b16 %v258
      %v623 = vunpack.c.l.b16 %v259
      %v624 = vunpack.c.l.b16 %v260
      %v625 = vunpack.c.l.b16 %v261
      %v626 = vunpack.c.l.b16 %v262
      %v627 = vunpack.c.l.b16 %v263
      %v628 = vunpack.c.l.b16 %v264
      %v629 = vunpack.c.l.b16 %v265
      %v630 = vpack.c.b16 %v615, %v614
      %v631 = vpack.c.b16 %v617, %v616
      %v632 = vpack.c.b16 %v619, %v618
      %v633 = vpack.c.b16 %v621, %v620
      %v634 = vpack.c.b16 %v623, %v622
      %v635 = vpack.c.b16 %v625, %v624
      %v636 = vpack.c.b16 %v627, %v626
      %v637 = vpack.c.b16 %v629, %v628
      %646 = vmatpush.bf16.msra.mxu0 %v637
      %647 = vmatpush.bf16.msra.mxu0 %v636
      %648 = vmatpush.bf16.msra.mxu0 %v635
      %649 = vmatpush.bf16.msra.mxu0 %v634
      %650 = vmatpush.bf16.msra.mxu0 %v633
      %651 = vmatpush.bf16.msra.mxu0 %v632
      %652 = vmatpush.bf16.msra.mxu0 %v631
      %653 = vmatpush.bf16.msra.mxu0 %v630
      %654 = vmatmul.bf16.gmra.mxu0 %v218
      %v655 = vpop.f32.mrf.mxu0
      %v656 = vadd.f32 %v439, %v655
      %v657 = vpop.f32.mrf.mxu0
      %v658 = vadd.f32 %v441, %v657
      %659 = vmatmul.bf16.gmra.mxu0 %v219
      %v660 = vpop.f32.mrf.mxu0
      %v661 = vadd.f32 %v444, %v660
      %v662 = vpop.f32.mrf.mxu0
      %v663 = vadd.f32 %v446, %v662
      %664 = vmatmul.bf16.gmra.mxu0 %v220
      %v665 = vpop.f32.mrf.mxu0
      %v666 = vadd.f32 %v449, %v665
      %v667 = vpop.f32.mrf.mxu0
      %v668 = vadd.f32 %v451, %v667
      %669 = vmatmul.bf16.gmra.mxu0 %v221
      %v670 = vpop.f32.mrf.mxu0
      %v671 = vadd.f32 %v454, %v670
      %v672 = vpop.f32.mrf.mxu0
      %v673 = vadd.f32 %v456, %v672
      %674 = vmatmul.bf16.gmra.mxu0 %v222
      %v675 = vpop.f32.mrf.mxu0
      %v676 = vadd.f32 %v459, %v675
      %v677 = vpop.f32.mrf.mxu0
      %v678 = vadd.f32 %v461, %v677
      %679 = vmatmul.bf16.gmra.mxu0 %v223
      %v680 = vpop.f32.mrf.mxu0
      %v681 = vadd.f32 %v464, %v680
      %v682 = vpop.f32.mrf.mxu0
      %v683 = vadd.f32 %v466, %v682
      %684 = vmatmul.bf16.gmra.mxu0 %v224
      %v685 = vpop.f32.mrf.mxu0
      %v686 = vadd.f32 %v469, %v685
      %v687 = vpop.f32.mrf.mxu0
      %v688 = vadd.f32 %v471, %v687
      %689 = vmatmul.bf16.gmra.mxu0 %v225
      %v690 = vpop.f32.mrf.mxu0
      %v691 = vadd.f32 %v474, %v690
      %v692 = vpop.f32.mrf.mxu0
      %v693 = vadd.f32 %v476, %v692
      %694 = vmatmul.bf16.gmra.mxu0 %v226
      %v695 = vpop.f32.mrf.mxu0
      %v696 = vadd.f32 %v479, %v695
      %v697 = vpop.f32.mrf.mxu0
      %v698 = vadd.f32 %v481, %v697
      %699 = vmatmul.bf16.gmra.mxu0 %v227
      %v700 = vpop.f32.mrf.mxu0
      %v701 = vadd.f32 %v484, %v700
      %v702 = vpop.f32.mrf.mxu0
      %v703 = vadd.f32 %v486, %v702
      %704 = vmatmul.bf16.gmra.mxu0 %v228
      %v705 = vpop.f32.mrf.mxu0
      %v706 = vadd.f32 %v489, %v705
      %v707 = vpop.f32.mrf.mxu0
      %v708 = vadd.f32 %v491, %v707
      %709 = vmatmul.bf16.gmra.mxu0 %v229
      %v710 = vpop.f32.mrf.mxu0
      %v711 = vadd.f32 %v494, %v710
      %v712 = vpop.f32.mrf.mxu0
      %v713 = vadd.f32 %v496, %v712
      %714 = vmatmul.bf16.gmra.mxu0 %v230
      %v715 = vpop.f32.mrf.mxu0
      %v716 = vadd.f32 %v499, %v715
      %v717 = vpop.f32.mrf.mxu0
      %v718 = vadd.f32 %v501, %v717
      %719 = vmatmul.bf16.gmra.mxu0 %v231
      %v720 = vpop.f32.mrf.mxu0
      %v721 = vadd.f32 %v504, %v720
      %v722 = vpop.f32.mrf.mxu0
      %v723 = vadd.f32 %v506, %v722
      %724 = vmatmul.bf16.gmra.mxu0 %v232
      %v725 = vpop.f32.mrf.mxu0
      %v726 = vadd.f32 %v509, %v725
      %v727 = vpop.f32.mrf.mxu0
      %v728 = vadd.f32 %v511, %v727
      %729 = vmatmul.bf16.gmra.mxu0 %v233
      %v730 = vpop.f32.mrf.mxu0
      %v731 = vadd.f32 %v514, %v730
      %v732 = vpop.f32.mrf.mxu0
      %v733 = vadd.f32 %v516, %v732
      %734 = vmatmul.bf16.gmra.mxu0 %v234
      %v735 = vpop.f32.mrf.mxu0
      %v736 = vadd.f32 %v519, %v735
      %v737 = vpop.f32.mrf.mxu0
      %v738 = vadd.f32 %v521, %v737
      %739 = vmatmul.bf16.gmra.mxu0 %v235
      %v740 = vpop.f32.mrf.mxu0
      %v741 = vadd.f32 %v524, %v740
      %v742 = vpop.f32.mrf.mxu0
      %v743 = vadd.f32 %v526, %v742
      %744 = vmatmul.bf16.gmra.mxu0 %v236
      %v745 = vpop.f32.mrf.mxu0
      %v746 = vadd.f32 %v529, %v745
      %v747 = vpop.f32.mrf.mxu0
      %v748 = vadd.f32 %v531, %v747
      %749 = vmatmul.bf16.gmra.mxu0 %v237
      %v750 = vpop.f32.mrf.mxu0
      %v751 = vadd.f32 %v534, %v750
      %v752 = vpop.f32.mrf.mxu0
      %v753 = vadd.f32 %v536, %v752
      %754 = vmatmul.bf16.gmra.mxu0 %v238
      %v755 = vpop.f32.mrf.mxu0
      %v756 = vadd.f32 %v539, %v755
      %v757 = vpop.f32.mrf.mxu0
      %v758 = vadd.f32 %v541, %v757
      %759 = vmatmul.bf16.gmra.mxu0 %v239
      %v760 = vpop.f32.mrf.mxu0
      %v761 = vadd.f32 %v544, %v760
      %v762 = vpop.f32.mrf.mxu0
      %v763 = vadd.f32 %v546, %v762
      %764 = vmatmul.bf16.gmra.mxu0 %v240
      %v765 = vpop.f32.mrf.mxu0
      %v766 = vadd.f32 %v549, %v765
      %v767 = vpop.f32.mrf.mxu0
      %v768 = vadd.f32 %v551, %v767
      %769 = vmatmul.bf16.gmra.mxu0 %v241
      %v770 = vpop.f32.mrf.mxu0
      %v771 = vadd.f32 %v554, %v770
      %v772 = vpop.f32.mrf.mxu0
      %v773 = vadd.f32 %v556, %v772
      %774 = vmatmul.bf16.gmra.mxu0 %v242
      %v775 = vpop.f32.mrf.mxu0
      %v776 = vadd.f32 %v559, %v775
      %v777 = vpop.f32.mrf.mxu0
      %v778 = vadd.f32 %v561, %v777
      %779 = vmatmul.bf16.gmra.mxu0 %v243
      %v780 = vpop.f32.mrf.mxu0
      %v781 = vadd.f32 %v564, %v780
      %v782 = vpop.f32.mrf.mxu0
      %v783 = vadd.f32 %v566, %v782
      %784 = vmatmul.bf16.gmra.mxu0 %v244
      %v785 = vpop.f32.mrf.mxu0
      %v786 = vadd.f32 %v569, %v785
      %v787 = vpop.f32.mrf.mxu0
      %v788 = vadd.f32 %v571, %v787
      %789 = vmatmul.bf16.gmra.mxu0 %v245
      %v790 = vpop.f32.mrf.mxu0
      %v791 = vadd.f32 %v574, %v790
      %v792 = vpop.f32.mrf.mxu0
      %v793 = vadd.f32 %v576, %v792
      %794 = vmatmul.bf16.gmra.mxu0 %v246
      %v795 = vpop.f32.mrf.mxu0
      %v796 = vadd.f32 %v579, %v795
      %v797 = vpop.f32.mrf.mxu0
      %v798 = vadd.f32 %v581, %v797
      %799 = vmatmul.bf16.gmra.mxu0 %v247
      %v800 = vpop.f32.mrf.mxu0
      %v801 = vadd.f32 %v584, %v800
      %v802 = vpop.f32.mrf.mxu0
      %v803 = vadd.f32 %v586, %v802
      %804 = vmatmul.bf16.gmra.mxu0 %v248
      %v805 = vpop.f32.mrf.mxu0
      %v806 = vadd.f32 %v589, %v805
      %v807 = vpop.f32.mrf.mxu0
      %v808 = vadd.f32 %v591, %v807
      %809 = vmatmul.bf16.gmra.mxu0 %v249
      %v810 = vpop.f32.mrf.mxu0
      %v811 = vadd.f32 %v594, %v810
      %v812 = vpop.f32.mrf.mxu0
      %v813 = vadd.f32 %v596, %v812
      %814 = vdwg.mxu0
      %s815 = sadd.s32 %s152, 2
      %s816 = scalar_lea.vmem %s0, %s815
      %v817 = vld [vmem:[%s816] sm:$0xff]
      %v818 = vld [vmem:[%s816 + $0x8] sm:$0xff]
      %v819 = vld [vmem:[%s816 + $0x10] sm:$0xff]
      %v820 = vld [vmem:[%s816 + $0x18] sm:$0xff]
      %v821 = vld [vmem:[%s816 + $0x20] sm:$0xff]
      %v822 = vld [vmem:[%s816 + $0x28] sm:$0xff]
      %v823 = vld [vmem:[%s816 + $0x30] sm:$0xff]
      %v824 = vld [vmem:[%s816 + $0x38] sm:$0xff]
      %v825 = vld [vmem:[%s816 + $0x40] sm:$0xff]
      %v826 = vld [vmem:[%s816 + $0x48] sm:$0xff]
      %v827 = vld [vmem:[%s816 + $0x50] sm:$0xff]
      %v828 = vld [vmem:[%s816 + $0x58] sm:$0xff]
      %v829 = vld [vmem:[%s816 + $0x60] sm:$0xff]
      %v830 = vld [vmem:[%s816 + $0x68] sm:$0xff]
      %v831 = vld [vmem:[%s816 + $0x70] sm:$0xff]
      %v832 = vld [vmem:[%s816 + $0x78] sm:$0xff]
      %v833 = vld [vmem:[%s816 + $0x80] sm:$0xff]
      %v834 = vld [vmem:[%s816 + $0x88] sm:$0xff]
      %v835 = vld [vmem:[%s816 + $0x90] sm:$0xff]
      %v836 = vld [vmem:[%s816 + $0x98] sm:$0xff]
      %v837 = vld [vmem:[%s816 + $0xa0] sm:$0xff]
      %v838 = vld [vmem:[%s816 + $0xa8] sm:$0xff]
      %v839 = vld [vmem:[%s816 + $0xb0] sm:$0xff]
      %v840 = vld [vmem:[%s816 + $0xb8] sm:$0xff]
      %v841 = vld [vmem:[%s816 + $0xc0] sm:$0xff]
      %v842 = vld [vmem:[%s816 + $0xc8] sm:$0xff]
      %v843 = vld [vmem:[%s816 + $0xd0] sm:$0xff]
      %v844 = vld [vmem:[%s816 + $0xd8] sm:$0xff]
      %v845 = vld [vmem:[%s816 + $0xe0] sm:$0xff]
      %v846 = vld [vmem:[%s816 + $0xe8] sm:$0xff]
      %v847 = vld [vmem:[%s816 + $0xf0] sm:$0xff]
      %v848 = vld [vmem:[%s816 + $0xf8] sm:$0xff]
      %v849 = vld [vmem:[%s816 + $0x100] sm:$0xff]
      %v850 = vld [vmem:[%s816 + $0x108] sm:$0xff]
      %v851 = vld [vmem:[%s816 + $0x110] sm:$0xff]
      %v852 = vld [vmem:[%s816 + $0x118] sm:$0xff]
      %v853 = vld [vmem:[%s816 + $0x120] sm:$0xff]
      %v854 = vld [vmem:[%s816 + $0x128] sm:$0xff]
      %v855 = vld [vmem:[%s816 + $0x130] sm:$0xff]
      %v856 = vld [vmem:[%s816 + $0x138] sm:$0xff]
      %v857 = vld [vmem:[%s816 + $0x140] sm:$0xff]
      %v858 = vld [vmem:[%s816 + $0x148] sm:$0xff]
      %v859 = vld [vmem:[%s816 + $0x150] sm:$0xff]
      %v860 = vld [vmem:[%s816 + $0x158] sm:$0xff]
      %v861 = vld [vmem:[%s816 + $0x160] sm:$0xff]
      %v862 = vld [vmem:[%s816 + $0x168] sm:$0xff]
      %v863 = vld [vmem:[%s816 + $0x170] sm:$0xff]
      %v864 = vld [vmem:[%s816 + $0x178] sm:$0xff]
      %v865 = vld [vmem:[%s816 + $0x180] sm:$0xff]
      %v866 = vld [vmem:[%s816 + $0x188] sm:$0xff]
      %v867 = vld [vmem:[%s816 + $0x190] sm:$0xff]
      %v868 = vld [vmem:[%s816 + $0x198] sm:$0xff]
      %v869 = vld [vmem:[%s816 + $0x1a0] sm:$0xff]
      %v870 = vld [vmem:[%s816 + $0x1a8] sm:$0xff]
      %v871 = vld [vmem:[%s816 + $0x1b0] sm:$0xff]
      %v872 = vld [vmem:[%s816 + $0x1b8] sm:$0xff]
      %v873 = vld [vmem:[%s816 + $0x1c0] sm:$0xff]
      %v874 = vld [vmem:[%s816 + $0x1c8] sm:$0xff]
      %v875 = vld [vmem:[%s816 + $0x1d0] sm:$0xff]
      %v876 = vld [vmem:[%s816 + $0x1d8] sm:$0xff]
      %v877 = vld [vmem:[%s816 + $0x1e0] sm:$0xff]
      %v878 = vld [vmem:[%s816 + $0x1e8] sm:$0xff]
      %v879 = vld [vmem:[%s816 + $0x1f0] sm:$0xff]
      %v880 = vld [vmem:[%s816 + $0x1f8] sm:$0xff]
      %v881 = vpack.c.bf16 %v818, %v817
      %v882 = vpack.c.bf16 %v820, %v819
      %v883 = vpack.c.bf16 %v822, %v821
      %v884 = vpack.c.bf16 %v824, %v823
      %v885 = vpack.c.bf16 %v826, %v825
      %v886 = vpack.c.bf16 %v828, %v827
      %v887 = vpack.c.bf16 %v830, %v829
      %v888 = vpack.c.bf16 %v832, %v831
      %v889 = vpack.c.bf16 %v834, %v833
      %v890 = vpack.c.bf16 %v836, %v835
      %v891 = vpack.c.bf16 %v838, %v837
      %v892 = vpack.c.bf16 %v840, %v839
      %v893 = vpack.c.bf16 %v842, %v841
      %v894 = vpack.c.bf16 %v844, %v843
      %v895 = vpack.c.bf16 %v846, %v845
      %v896 = vpack.c.bf16 %v848, %v847
      %v897 = vpack.c.bf16 %v850, %v849
      %v898 = vpack.c.bf16 %v852, %v851
      %v899 = vpack.c.bf16 %v854, %v853
      %v900 = vpack.c.bf16 %v856, %v855
      %v901 = vpack.c.bf16 %v858, %v857
      %v902 = vpack.c.bf16 %v860, %v859
      %v903 = vpack.c.bf16 %v862, %v861
      %v904 = vpack.c.bf16 %v864, %v863
      %v905 = vpack.c.bf16 %v866, %v865
      %v906 = vpack.c.bf16 %v868, %v867
      %v907 = vpack.c.bf16 %v870, %v869
      %v908 = vpack.c.bf16 %v872, %v871
      %v909 = vpack.c.bf16 %v874, %v873
      %v910 = vpack.c.bf16 %v876, %v875
      %v911 = vpack.c.bf16 %v878, %v877
      %v912 = vpack.c.bf16 %v880, %v879
      %s913 = scalar_lea.vmem %s1, 128
      %v914 = vld [vmem:[%s913] sm:$0xf]
      %v915 = vld [vmem:[%s913 + $0x4] sm:$0xf]
      %v916 = vld [vmem:[%s913 + $0x8] sm:$0xf]
      %v917 = vld [vmem:[%s913 + $0xc] sm:$0xf]
      %v918 = vld [vmem:[%s913 + $0x10] sm:$0xf]
      %v919 = vld [vmem:[%s913 + $0x14] sm:$0xf]
      %v920 = vld [vmem:[%s913 + $0x18] sm:$0xf]
      %v921 = vld [vmem:[%s913 + $0x1c] sm:$0xf]
      %v922 = vld [vmem:[%s913 + $0x20] sm:$0xf]
      %v923 = vld [vmem:[%s913 + $0x24] sm:$0xf]
      %v924 = vld [vmem:[%s913 + $0x28] sm:$0xf]
      %v925 = vld [vmem:[%s913 + $0x2c] sm:$0xf]
      %v926 = vld [vmem:[%s913 + $0x30] sm:$0xf]
      %v927 = vld [vmem:[%s913 + $0x34] sm:$0xf]
      %v928 = vld [vmem:[%s913 + $0x38] sm:$0xf]
      %v929 = vld [vmem:[%s913 + $0x3c] sm:$0xf]
      %v946 = vunpack.c.l.b16 %v914
      %v947 = vunpack.c.l.b16 %v915
      %v948 = vunpack.c.l.b16 %v916
      %v949 = vunpack.c.l.b16 %v917
      %v950 = vunpack.c.l.b16 %v918
      %v951 = vunpack.c.l.b16 %v919
      %v952 = vunpack.c.l.b16 %v920
      %v953 = vunpack.c.l.b16 %v921
      %v954 = vunpack.c.l.b16 %v922
      %v955 = vunpack.c.l.b16 %v923
      %v956 = vunpack.c.l.b16 %v924
      %v957 = vunpack.c.l.b16 %v925
      %v958 = vunpack.c.l.b16 %v926
      %v959 = vunpack.c.l.b16 %v927
      %v960 = vunpack.c.l.b16 %v928
      %v961 = vunpack.c.l.b16 %v929
      %v962 = vpack.c.b16 %v947, %v946
      %v963 = vpack.c.b16 %v949, %v948
      %v964 = vpack.c.b16 %v951, %v950
      %v965 = vpack.c.b16 %v953, %v952
      %v966 = vpack.c.b16 %v955, %v954
      %v967 = vpack.c.b16 %v957, %v956
      %v968 = vpack.c.b16 %v959, %v958
      %v969 = vpack.c.b16 %v961, %v960
      %978 = vmatpush.bf16.msra.mxu0 %v969
      %979 = vmatpush.bf16.msra.mxu0 %v968
      %980 = vmatpush.bf16.msra.mxu0 %v967
      %981 = vmatpush.bf16.msra.mxu0 %v966
      %982 = vmatpush.bf16.msra.mxu0 %v965
      %983 = vmatpush.bf16.msra.mxu0 %v964
      %984 = vmatpush.bf16.msra.mxu0 %v963
      %985 = vmatpush.bf16.msra.mxu0 %v962
      %986 = vmatmul.bf16.gmra.mxu0 %v881
      %v987 = vpop.f32.mrf.mxu0
      %v988 = vadd.f32 0.0, %v987
      %v989 = vpop.f32.mrf.mxu0
      %v990 = vadd.f32 0.0, %v989
      %991 = vmatmul.bf16.gmra.mxu0 %v882
      %v992 = vpop.f32.mrf.mxu0
      %v993 = vadd.f32 0.0, %v992
      %v994 = vpop.f32.mrf.mxu0
      %v995 = vadd.f32 0.0, %v994
      %996 = vmatmul.bf16.gmra.mxu0 %v883
      %v997 = vpop.f32.mrf.mxu0
      %v998 = vadd.f32 0.0, %v997
      %v999 = vpop.f32.mrf.mxu0
      %v1000 = vadd.f32 0.0, %v999
      %1001 = vmatmul.bf16.gmra.mxu0 %v884
      %v1002 = vpop.f32.mrf.mxu0
      %v1003 = vadd.f32 0.0, %v1002
      %v1004 = vpop.f32.mrf.mxu0
      %v1005 = vadd.f32 0.0, %v1004
      %1006 = vmatmul.bf16.gmra.mxu0 %v885
      %v1007 = vpop.f32.mrf.mxu0
      %v1008 = vadd.f32 0.0, %v1007
      %v1009 = vpop.f32.mrf.mxu0
      %v1010 = vadd.f32 0.0, %v1009
      %1011 = vmatmul.bf16.gmra.mxu0 %v886
      %v1012 = vpop.f32.mrf.mxu0
      %v1013 = vadd.f32 0.0, %v1012
      %v1014 = vpop.f32.mrf.mxu0
      %v1015 = vadd.f32 0.0, %v1014
      %1016 = vmatmul.bf16.gmra.mxu0 %v887
      %v1017 = vpop.f32.mrf.mxu0
      %v1018 = vadd.f32 0.0, %v1017
      %v1019 = vpop.f32.mrf.mxu0
      %v1020 = vadd.f32 0.0, %v1019
      %1021 = vmatmul.bf16.gmra.mxu0 %v888
      %v1022 = vpop.f32.mrf.mxu0
      %v1023 = vadd.f32 0.0, %v1022
      %v1024 = vpop.f32.mrf.mxu0
      %v1025 = vadd.f32 0.0, %v1024
      %1026 = vmatmul.bf16.gmra.mxu0 %v889
      %v1027 = vpop.f32.mrf.mxu0
      %v1028 = vadd.f32 0.0, %v1027
      %v1029 = vpop.f32.mrf.mxu0
      %v1030 = vadd.f32 0.0, %v1029
      %1031 = vmatmul.bf16.gmra.mxu0 %v890
      %v1032 = vpop.f32.mrf.mxu0
      %v1033 = vadd.f32 0.0, %v1032
      %v1034 = vpop.f32.mrf.mxu0
      %v1035 = vadd.f32 0.0, %v1034
      %1036 = vmatmul.bf16.gmra.mxu0 %v891
      %v1037 = vpop.f32.mrf.mxu0
      %v1038 = vadd.f32 0.0, %v1037
      %v1039 = vpop.f32.mrf.mxu0
      %v1040 = vadd.f32 0.0, %v1039
      %1041 = vmatmul.bf16.gmra.mxu0 %v892
      %v1042 = vpop.f32.mrf.mxu0
      %v1043 = vadd.f32 0.0, %v1042
      %v1044 = vpop.f32.mrf.mxu0
      %v1045 = vadd.f32 0.0, %v1044
      %1046 = vmatmul.bf16.gmra.mxu0 %v893
      %v1047 = vpop.f32.mrf.mxu0
      %v1048 = vadd.f32 0.0, %v1047
      %v1049 = vpop.f32.mrf.mxu0
      %v1050 = vadd.f32 0.0, %v1049
      %1051 = vmatmul.bf16.gmra.mxu0 %v894
      %v1052 = vpop.f32.mrf.mxu0
      %v1053 = vadd.f32 0.0, %v1052
      %v1054 = vpop.f32.mrf.mxu0
      %v1055 = vadd.f32 0.0, %v1054
      %1056 = vmatmul.bf16.gmra.mxu0 %v895
      %v1057 = vpop.f32.mrf.mxu0
      %v1058 = vadd.f32 0.0, %v1057
      %v1059 = vpop.f32.mrf.mxu0
      %v1060 = vadd.f32 0.0, %v1059
      %1061 = vmatmul.bf16.gmra.mxu0 %v896
      %v1062 = vpop.f32.mrf.mxu0
      %v1063 = vadd.f32 0.0, %v1062
      %v1064 = vpop.f32.mrf.mxu0
      %v1065 = vadd.f32 0.0, %v1064
      %1066 = vmatmul.bf16.gmra.mxu0 %v897
      %v1067 = vpop.f32.mrf.mxu0
      %v1068 = vadd.f32 0.0, %v1067
      %v1069 = vpop.f32.mrf.mxu0
      %v1070 = vadd.f32 0.0, %v1069
      %1071 = vmatmul.bf16.gmra.mxu0 %v898
      %v1072 = vpop.f32.mrf.mxu0
      %v1073 = vadd.f32 0.0, %v1072
      %v1074 = vpop.f32.mrf.mxu0
      %v1075 = vadd.f32 0.0, %v1074
      %1076 = vmatmul.bf16.gmra.mxu0 %v899
      %v1077 = vpop.f32.mrf.mxu0
      %v1078 = vadd.f32 0.0, %v1077
      %v1079 = vpop.f32.mrf.mxu0
      %v1080 = vadd.f32 0.0, %v1079
      %1081 = vmatmul.bf16.gmra.mxu0 %v900
      %v1082 = vpop.f32.mrf.mxu0
      %v1083 = vadd.f32 0.0, %v1082
      %v1084 = vpop.f32.mrf.mxu0
      %v1085 = vadd.f32 0.0, %v1084
      %1086 = vmatmul.bf16.gmra.mxu0 %v901
      %v1087 = vpop.f32.mrf.mxu0
      %v1088 = vadd.f32 0.0, %v1087
      %v1089 = vpop.f32.mrf.mxu0
      %v1090 = vadd.f32 0.0, %v1089
      %1091 = vmatmul.bf16.gmra.mxu0 %v902
      %v1092 = vpop.f32.mrf.mxu0
      %v1093 = vadd.f32 0.0, %v1092
      %v1094 = vpop.f32.mrf.mxu0
      %v1095 = vadd.f32 0.0, %v1094
      %1096 = vmatmul.bf16.gmra.mxu0 %v903
      %v1097 = vpop.f32.mrf.mxu0
      %v1098 = vadd.f32 0.0, %v1097
      %v1099 = vpop.f32.mrf.mxu0
      %v1100 = vadd.f32 0.0, %v1099
      %1101 = vmatmul.bf16.gmra.mxu0 %v904
      %v1102 = vpop.f32.mrf.mxu0
      %v1103 = vadd.f32 0.0, %v1102
      %v1104 = vpop.f32.mrf.mxu0
      %v1105 = vadd.f32 0.0, %v1104
      %1106 = vmatmul.bf16.gmra.mxu0 %v905
      %v1107 = vpop.f32.mrf.mxu0
      %v1108 = vadd.f32 0.0, %v1107
      %v1109 = vpop.f32.mrf.mxu0
      %v1110 = vadd.f32 0.0, %v1109
      %1111 = vmatmul.bf16.gmra.mxu0 %v906
      %v1112 = vpop.f32.mrf.mxu0
      %v1113 = vadd.f32 0.0, %v1112
      %v1114 = vpop.f32.mrf.mxu0
      %v1115 = vadd.f32 0.0, %v1114
      %1116 = vmatmul.bf16.gmra.mxu0 %v907
      %v1117 = vpop.f32.mrf.mxu0
      %v1118 = vadd.f32 0.0, %v1117
      %v1119 = vpop.f32.mrf.mxu0
      %v1120 = vadd.f32 0.0, %v1119
      %1121 = vmatmul.bf16.gmra.mxu0 %v908
      %v1122 = vpop.f32.mrf.mxu0
      %v1123 = vadd.f32 0.0, %v1122
      %v1124 = vpop.f32.mrf.mxu0
      %v1125 = vadd.f32 0.0, %v1124
      %1126 = vmatmul.bf16.gmra.mxu0 %v909
      %v1127 = vpop.f32.mrf.mxu0
      %v1128 = vadd.f32 0.0, %v1127
      %v1129 = vpop.f32.mrf.mxu0
      %v1130 = vadd.f32 0.0, %v1129
      %1131 = vmatmul.bf16.gmra.mxu0 %v910
      %v1132 = vpop.f32.mrf.mxu0
      %v1133 = vadd.f32 0.0, %v1132
      %v1134 = vpop.f32.mrf.mxu0
      %v1135 = vadd.f32 0.0, %v1134
      %1136 = vmatmul.bf16.gmra.mxu0 %v911
      %v1137 = vpop.f32.mrf.mxu0
      %v1138 = vadd.f32 0.0, %v1137
      %v1139 = vpop.f32.mrf.mxu0
      %v1140 = vadd.f32 0.0, %v1139
      %1141 = vmatmul.bf16.gmra.mxu0 %v912
      %v1142 = vpop.f32.mrf.mxu0
      %v1143 = vadd.f32 0.0, %v1142
      %v1144 = vpop.f32.mrf.mxu0
      %v1145 = vadd.f32 0.0, %v1144
      %1146 = vdwg.mxu0
      %v1147 = vadd.f32 %v656, %v988
      %v1148 = vadd.f32 %v658, %v990
      %v1149 = vadd.f32 %v661, %v993
      %v1150 = vadd.f32 %v663, %v995
      %v1151 = vadd.f32 %v666, %v998
      %v1152 = vadd.f32 %v668, %v1000
      %v1153 = vadd.f32 %v671, %v1003
      %v1154 = vadd.f32 %v673, %v1005
      %v1155 = vadd.f32 %v676, %v1008
      %v1156 = vadd.f32 %v678, %v1010
      %v1157 = vadd.f32 %v681, %v1013
      %v1158 = vadd.f32 %v683, %v1015
      %v1159 = vadd.f32 %v686, %v1018
      %v1160 = vadd.f32 %v688, %v1020
      %v1161 = vadd.f32 %v691, %v1023
      %v1162 = vadd.f32 %v693, %v1025
      %v1163 = vadd.f32 %v696, %v1028
      %v1164 = vadd.f32 %v698, %v1030
      %v1165 = vadd.f32 %v701, %v1033
      %v1166 = vadd.f32 %v703, %v1035
      %v1167 = vadd.f32 %v706, %v1038
      %v1168 = vadd.f32 %v708, %v1040
      %v1169 = vadd.f32 %v711, %v1043
      %v1170 = vadd.f32 %v713, %v1045
      %v1171 = vadd.f32 %v716, %v1048
      %v1172 = vadd.f32 %v718, %v1050
      %v1173 = vadd.f32 %v721, %v1053
      %v1174 = vadd.f32 %v723, %v1055
      %v1175 = vadd.f32 %v726, %v1058
      %v1176 = vadd.f32 %v728, %v1060
      %v1177 = vadd.f32 %v731, %v1063
      %v1178 = vadd.f32 %v733, %v1065
      %v1179 = vadd.f32 %v736, %v1068
      %v1180 = vadd.f32 %v738, %v1070
      %v1181 = vadd.f32 %v741, %v1073
      %v1182 = vadd.f32 %v743, %v1075
      %v1183 = vadd.f32 %v746, %v1078
      %v1184 = vadd.f32 %v748, %v1080
      %v1185 = vadd.f32 %v751, %v1083
      %v1186 = vadd.f32 %v753, %v1085
      %v1187 = vadd.f32 %v756, %v1088
      %v1188 = vadd.f32 %v758, %v1090
      %v1189 = vadd.f32 %v761, %v1093
      %v1190 = vadd.f32 %v763, %v1095
      %v1191 = vadd.f32 %v766, %v1098
      %v1192 = vadd.f32 %v768, %v1100
      %v1193 = vadd.f32 %v771, %v1103
      %v1194 = vadd.f32 %v773, %v1105
      %v1195 = vadd.f32 %v776, %v1108
      %v1196 = vadd.f32 %v778, %v1110
      %v1197 = vadd.f32 %v781, %v1113
      %v1198 = vadd.f32 %v783, %v1115
      %v1199 = vadd.f32 %v786, %v1118
      %v1200 = vadd.f32 %v788, %v1120
      %v1201 = vadd.f32 %v791, %v1123
      %v1202 = vadd.f32 %v793, %v1125
      %v1203 = vadd.f32 %v796, %v1128
      %v1204 = vadd.f32 %v798, %v1130
      %v1205 = vadd.f32 %v801, %v1133
      %v1206 = vadd.f32 %v803, %v1135
      %v1207 = vadd.f32 %v806, %v1138
      %v1208 = vadd.f32 %v808, %v1140
      %v1209 = vadd.f32 %v811, %v1143
      %v1210 = vadd.f32 %v813, %v1145
      %s1211 = sadd.s32 %s152, 18
      %s1212 = scalar_lea.vmem %s0, %s1211
      %v1213 = vld [vmem:[%s1212] sm:$0xff]
      %v1214 = vld [vmem:[%s1212 + $0x8] sm:$0xff]
      %v1215 = vld [vmem:[%s1212 + $0x10] sm:$0xff]
      %v1216 = vld [vmem:[%s1212 + $0x18] sm:$0xff]
      %v1217 = vld [vmem:[%s1212 + $0x20] sm:$0xff]
      %v1218 = vld [vmem:[%s1212 + $0x28] sm:$0xff]
      %v1219 = vld [vmem:[%s1212 + $0x30] sm:$0xff]
      %v1220 = vld [vmem:[%s1212 + $0x38] sm:$0xff]
      %v1221 = vld [vmem:[%s1212 + $0x40] sm:$0xff]
      %v1222 = vld [vmem:[%s1212 + $0x48] sm:$0xff]
      %v1223 = vld [vmem:[%s1212 + $0x50] sm:$0xff]
      %v1224 = vld [vmem:[%s1212 + $0x58] sm:$0xff]
      %v1225 = vld [vmem:[%s1212 + $0x60] sm:$0xff]
      %v1226 = vld [vmem:[%s1212 + $0x68] sm:$0xff]
      %v1227 = vld [vmem:[%s1212 + $0x70] sm:$0xff]
      %v1228 = vld [vmem:[%s1212 + $0x78] sm:$0xff]
      %v1229 = vld [vmem:[%s1212 + $0x80] sm:$0xff]
      %v1230 = vld [vmem:[%s1212 + $0x88] sm:$0xff]
      %v1231 = vld [vmem:[%s1212 + $0x90] sm:$0xff]
      %v1232 = vld [vmem:[%s1212 + $0x98] sm:$0xff]
      %v1233 = vld [vmem:[%s1212 + $0xa0] sm:$0xff]
      %v1234 = vld [vmem:[%s1212 + $0xa8] sm:$0xff]
      %v1235 = vld [vmem:[%s1212 + $0xb0] sm:$0xff]
      %v1236 = vld [vmem:[%s1212 + $0xb8] sm:$0xff]
      %v1237 = vld [vmem:[%s1212 + $0xc0] sm:$0xff]
      %v1238 = vld [vmem:[%s1212 + $0xc8] sm:$0xff]
      %v1239 = vld [vmem:[%s1212 + $0xd0] sm:$0xff]
      %v1240 = vld [vmem:[%s1212 + $0xd8] sm:$0xff]
      %v1241 = vld [vmem:[%s1212 + $0xe0] sm:$0xff]
      %v1242 = vld [vmem:[%s1212 + $0xe8] sm:$0xff]
      %v1243 = vld [vmem:[%s1212 + $0xf0] sm:$0xff]
      %v1244 = vld [vmem:[%s1212 + $0xf8] sm:$0xff]
      %v1245 = vld [vmem:[%s1212 + $0x100] sm:$0xff]
      %v1246 = vld [vmem:[%s1212 + $0x108] sm:$0xff]
      %v1247 = vld [vmem:[%s1212 + $0x110] sm:$0xff]
      %v1248 = vld [vmem:[%s1212 + $0x118] sm:$0xff]
      %v1249 = vld [vmem:[%s1212 + $0x120] sm:$0xff]
      %v1250 = vld [vmem:[%s1212 + $0x128] sm:$0xff]
      %v1251 = vld [vmem:[%s1212 + $0x130] sm:$0xff]
      %v1252 = vld [vmem:[%s1212 + $0x138] sm:$0xff]
      %v1253 = vld [vmem:[%s1212 + $0x140] sm:$0xff]
      %v1254 = vld [vmem:[%s1212 + $0x148] sm:$0xff]
      %v1255 = vld [vmem:[%s1212 + $0x150] sm:$0xff]
      %v1256 = vld [vmem:[%s1212 + $0x158] sm:$0xff]
      %v1257 = vld [vmem:[%s1212 + $0x160] sm:$0xff]
      %v1258 = vld [vmem:[%s1212 + $0x168] sm:$0xff]
      %v1259 = vld [vmem:[%s1212 + $0x170] sm:$0xff]
      %v1260 = vld [vmem:[%s1212 + $0x178] sm:$0xff]
      %v1261 = vld [vmem:[%s1212 + $0x180] sm:$0xff]
      %v1262 = vld [vmem:[%s1212 + $0x188] sm:$0xff]
      %v1263 = vld [vmem:[%s1212 + $0x190] sm:$0xff]
      %v1264 = vld [vmem:[%s1212 + $0x198] sm:$0xff]
      %v1265 = vld [vmem:[%s1212 + $0x1a0] sm:$0xff]
      %v1266 = vld [vmem:[%s1212 + $0x1a8] sm:$0xff]
      %v1267 = vld [vmem:[%s1212 + $0x1b0] sm:$0xff]
      %v1268 = vld [vmem:[%s1212 + $0x1b8] sm:$0xff]
      %v1269 = vld [vmem:[%s1212 + $0x1c0] sm:$0xff]
      %v1270 = vld [vmem:[%s1212 + $0x1c8] sm:$0xff]
      %v1271 = vld [vmem:[%s1212 + $0x1d0] sm:$0xff]
      %v1272 = vld [vmem:[%s1212 + $0x1d8] sm:$0xff]
      %v1273 = vld [vmem:[%s1212 + $0x1e0] sm:$0xff]
      %v1274 = vld [vmem:[%s1212 + $0x1e8] sm:$0xff]
      %v1275 = vld [vmem:[%s1212 + $0x1f0] sm:$0xff]
      %v1276 = vld [vmem:[%s1212 + $0x1f8] sm:$0xff]
      %v1277 = vpack.c.bf16 %v1214, %v1213
      %v1278 = vpack.c.bf16 %v1216, %v1215
      %v1279 = vpack.c.bf16 %v1218, %v1217
      %v1280 = vpack.c.bf16 %v1220, %v1219
      %v1281 = vpack.c.bf16 %v1222, %v1221
      %v1282 = vpack.c.bf16 %v1224, %v1223
      %v1283 = vpack.c.bf16 %v1226, %v1225
      %v1284 = vpack.c.bf16 %v1228, %v1227
      %v1285 = vpack.c.bf16 %v1230, %v1229
      %v1286 = vpack.c.bf16 %v1232, %v1231
      %v1287 = vpack.c.bf16 %v1234, %v1233
      %v1288 = vpack.c.bf16 %v1236, %v1235
      %v1289 = vpack.c.bf16 %v1238, %v1237
      %v1290 = vpack.c.bf16 %v1240, %v1239
      %v1291 = vpack.c.bf16 %v1242, %v1241
      %v1292 = vpack.c.bf16 %v1244, %v1243
      %v1293 = vpack.c.bf16 %v1246, %v1245
      %v1294 = vpack.c.bf16 %v1248, %v1247
      %v1295 = vpack.c.bf16 %v1250, %v1249
      %v1296 = vpack.c.bf16 %v1252, %v1251
      %v1297 = vpack.c.bf16 %v1254, %v1253
      %v1298 = vpack.c.bf16 %v1256, %v1255
      %v1299 = vpack.c.bf16 %v1258, %v1257
      %v1300 = vpack.c.bf16 %v1260, %v1259
      %v1301 = vpack.c.bf16 %v1262, %v1261
      %v1302 = vpack.c.bf16 %v1264, %v1263
      %v1303 = vpack.c.bf16 %v1266, %v1265
      %v1304 = vpack.c.bf16 %v1268, %v1267
      %v1305 = vpack.c.bf16 %v1270, %v1269
      %v1306 = vpack.c.bf16 %v1272, %v1271
      %v1307 = vpack.c.bf16 %v1274, %v1273
      %v1308 = vpack.c.bf16 %v1276, %v1275
      %s1309 = scalar_lea.vmem %s1, 192
      %v1310 = vld [vmem:[%s1309] sm:$0xf]
      %v1311 = vld [vmem:[%s1309 + $0x4] sm:$0xf]
      %v1312 = vld [vmem:[%s1309 + $0x8] sm:$0xf]
      %v1313 = vld [vmem:[%s1309 + $0xc] sm:$0xf]
      %v1314 = vld [vmem:[%s1309 + $0x10] sm:$0xf]
      %v1315 = vld [vmem:[%s1309 + $0x14] sm:$0xf]
      %v1316 = vld [vmem:[%s1309 + $0x18] sm:$0xf]
      %v1317 = vld [vmem:[%s1309 + $0x1c] sm:$0xf]
      %v1318 = vld [vmem:[%s1309 + $0x20] sm:$0xf]
      %v1319 = vld [vmem:[%s1309 + $0x24] sm:$0xf]
      %v1320 = vld [vmem:[%s1309 + $0x28] sm:$0xf]
      %v1321 = vld [vmem:[%s1309 + $0x2c] sm:$0xf]
      %v1322 = vld [vmem:[%s1309 + $0x30] sm:$0xf]
      %v1323 = vld [vmem:[%s1309 + $0x34] sm:$0xf]
      %v1324 = vld [vmem:[%s1309 + $0x38] sm:$0xf]
      %v1325 = vld [vmem:[%s1309 + $0x3c] sm:$0xf]
      %v1342 = vunpack.c.l.b16 %v1310
      %v1343 = vunpack.c.l.b16 %v1311
      %v1344 = vunpack.c.l.b16 %v1312
      %v1345 = vunpack.c.l.b16 %v1313
      %v1346 = vunpack.c.l.b16 %v1314
      %v1347 = vunpack.c.l.b16 %v1315
      %v1348 = vunpack.c.l.b16 %v1316
      %v1349 = vunpack.c.l.b16 %v1317
      %v1350 = vunpack.c.l.b16 %v1318
      %v1351 = vunpack.c.l.b16 %v1319
      %v1352 = vunpack.c.l.b16 %v1320
      %v1353 = vunpack.c.l.b16 %v1321
      %v1354 = vunpack.c.l.b16 %v1322
      %v1355 = vunpack.c.l.b16 %v1323
      %v1356 = vunpack.c.l.b16 %v1324
      %v1357 = vunpack.c.l.b16 %v1325
      %v1358 = vpack.c.b16 %v1343, %v1342
      %v1359 = vpack.c.b16 %v1345, %v1344
      %v1360 = vpack.c.b16 %v1347, %v1346
      %v1361 = vpack.c.b16 %v1349, %v1348
      %v1362 = vpack.c.b16 %v1351, %v1350
      %v1363 = vpack.c.b16 %v1353, %v1352
      %v1364 = vpack.c.b16 %v1355, %v1354
      %v1365 = vpack.c.b16 %v1357, %v1356
      %1374 = vmatpush.bf16.msra.mxu0 %v1365
      %1375 = vmatpush.bf16.msra.mxu0 %v1364
      %1376 = vmatpush.bf16.msra.mxu0 %v1363
      %1377 = vmatpush.bf16.msra.mxu0 %v1362
      %1378 = vmatpush.bf16.msra.mxu0 %v1361
      %1379 = vmatpush.bf16.msra.mxu0 %v1360
      %1380 = vmatpush.bf16.msra.mxu0 %v1359
      %1381 = vmatpush.bf16.msra.mxu0 %v1358
      %1382 = vmatmul.bf16.gmra.mxu0 %v1277
      %v1383 = vpop.f32.mrf.mxu0
      %v1384 = vadd.f32 0.0, %v1383
      %v1385 = vpop.f32.mrf.mxu0
      %v1386 = vadd.f32 0.0, %v1385
      %1387 = vmatmul.bf16.gmra.mxu0 %v1278
      %v1388 = vpop.f32.mrf.mxu0
      %v1389 = vadd.f32 0.0, %v1388
      %v1390 = vpop.f32.mrf.mxu0
      %v1391 = vadd.f32 0.0, %v1390
      %1392 = vmatmul.bf16.gmra.mxu0 %v1279
      %v1393 = vpop.f32.mrf.mxu0
      %v1394 = vadd.f32 0.0, %v1393
      %v1395 = vpop.f32.mrf.mxu0
      %v1396 = vadd.f32 0.0, %v1395
      %1397 = vmatmul.bf16.gmra.mxu0 %v1280
      %v1398 = vpop.f32.mrf.mxu0
      %v1399 = vadd.f32 0.0, %v1398
      %v1400 = vpop.f32.mrf.mxu0
      %v1401 = vadd.f32 0.0, %v1400
      %1402 = vmatmul.bf16.gmra.mxu0 %v1281
      %v1403 = vpop.f32.mrf.mxu0
      %v1404 = vadd.f32 0.0, %v1403
      %v1405 = vpop.f32.mrf.mxu0
      %v1406 = vadd.f32 0.0, %v1405
      %1407 = vmatmul.bf16.gmra.mxu0 %v1282
      %v1408 = vpop.f32.mrf.mxu0
      %v1409 = vadd.f32 0.0, %v1408
      %v1410 = vpop.f32.mrf.mxu0
      %v1411 = vadd.f32 0.0, %v1410
      %1412 = vmatmul.bf16.gmra.mxu0 %v1283
      %v1413 = vpop.f32.mrf.mxu0
      %v1414 = vadd.f32 0.0, %v1413
      %v1415 = vpop.f32.mrf.mxu0
      %v1416 = vadd.f32 0.0, %v1415
      %1417 = vmatmul.bf16.gmra.mxu0 %v1284
      %v1418 = vpop.f32.mrf.mxu0
      %v1419 = vadd.f32 0.0, %v1418
      %v1420 = vpop.f32.mrf.mxu0
      %v1421 = vadd.f32 0.0, %v1420
      %1422 = vmatmul.bf16.gmra.mxu0 %v1285
      %v1423 = vpop.f32.mrf.mxu0
      %v1424 = vadd.f32 0.0, %v1423
      %v1425 = vpop.f32.mrf.mxu0
      %v1426 = vadd.f32 0.0, %v1425
      %1427 = vmatmul.bf16.gmra.mxu0 %v1286
      %v1428 = vpop.f32.mrf.mxu0
      %v1429 = vadd.f32 0.0, %v1428
      %v1430 = vpop.f32.mrf.mxu0
      %v1431 = vadd.f32 0.0, %v1430
      %1432 = vmatmul.bf16.gmra.mxu0 %v1287
      %v1433 = vpop.f32.mrf.mxu0
      %v1434 = vadd.f32 0.0, %v1433
      %v1435 = vpop.f32.mrf.mxu0
      %v1436 = vadd.f32 0.0, %v1435
      %1437 = vmatmul.bf16.gmra.mxu0 %v1288
      %v1438 = vpop.f32.mrf.mxu0
      %v1439 = vadd.f32 0.0, %v1438
      %v1440 = vpop.f32.mrf.mxu0
      %v1441 = vadd.f32 0.0, %v1440
      %1442 = vmatmul.bf16.gmra.mxu0 %v1289
      %v1443 = vpop.f32.mrf.mxu0
      %v1444 = vadd.f32 0.0, %v1443
      %v1445 = vpop.f32.mrf.mxu0
      %v1446 = vadd.f32 0.0, %v1445
      %1447 = vmatmul.bf16.gmra.mxu0 %v1290
      %v1448 = vpop.f32.mrf.mxu0
      %v1449 = vadd.f32 0.0, %v1448
      %v1450 = vpop.f32.mrf.mxu0
      %v1451 = vadd.f32 0.0, %v1450
      %1452 = vmatmul.bf16.gmra.mxu0 %v1291
      %v1453 = vpop.f32.mrf.mxu0
      %v1454 = vadd.f32 0.0, %v1453
      %v1455 = vpop.f32.mrf.mxu0
      %v1456 = vadd.f32 0.0, %v1455
      %1457 = vmatmul.bf16.gmra.mxu0 %v1292
      %v1458 = vpop.f32.mrf.mxu0
      %v1459 = vadd.f32 0.0, %v1458
      %v1460 = vpop.f32.mrf.mxu0
      %v1461 = vadd.f32 0.0, %v1460
      %1462 = vmatmul.bf16.gmra.mxu0 %v1293
      %v1463 = vpop.f32.mrf.mxu0
      %v1464 = vadd.f32 0.0, %v1463
      %v1465 = vpop.f32.mrf.mxu0
      %v1466 = vadd.f32 0.0, %v1465
      %1467 = vmatmul.bf16.gmra.mxu0 %v1294
      %v1468 = vpop.f32.mrf.mxu0
      %v1469 = vadd.f32 0.0, %v1468
      %v1470 = vpop.f32.mrf.mxu0
      %v1471 = vadd.f32 0.0, %v1470
      %1472 = vmatmul.bf16.gmra.mxu0 %v1295
      %v1473 = vpop.f32.mrf.mxu0
      %v1474 = vadd.f32 0.0, %v1473
      %v1475 = vpop.f32.mrf.mxu0
      %v1476 = vadd.f32 0.0, %v1475
      %1477 = vmatmul.bf16.gmra.mxu0 %v1296
      %v1478 = vpop.f32.mrf.mxu0
      %v1479 = vadd.f32 0.0, %v1478
      %v1480 = vpop.f32.mrf.mxu0
      %v1481 = vadd.f32 0.0, %v1480
      %1482 = vmatmul.bf16.gmra.mxu0 %v1297
      %v1483 = vpop.f32.mrf.mxu0
      %v1484 = vadd.f32 0.0, %v1483
      %v1485 = vpop.f32.mrf.mxu0
      %v1486 = vadd.f32 0.0, %v1485
      %1487 = vmatmul.bf16.gmra.mxu0 %v1298
      %v1488 = vpop.f32.mrf.mxu0
      %v1489 = vadd.f32 0.0, %v1488
      %v1490 = vpop.f32.mrf.mxu0
      %v1491 = vadd.f32 0.0, %v1490
      %1492 = vmatmul.bf16.gmra.mxu0 %v1299
      %v1493 = vpop.f32.mrf.mxu0
      %v1494 = vadd.f32 0.0, %v1493
      %v1495 = vpop.f32.mrf.mxu0
      %v1496 = vadd.f32 0.0, %v1495
      %1497 = vmatmul.bf16.gmra.mxu0 %v1300
      %v1498 = vpop.f32.mrf.mxu0
      %v1499 = vadd.f32 0.0, %v1498
      %v1500 = vpop.f32.mrf.mxu0
      %v1501 = vadd.f32 0.0, %v1500
      %1502 = vmatmul.bf16.gmra.mxu0 %v1301
      %v1503 = vpop.f32.mrf.mxu0
      %v1504 = vadd.f32 0.0, %v1503
      %v1505 = vpop.f32.mrf.mxu0
      %v1506 = vadd.f32 0.0, %v1505
      %1507 = vmatmul.bf16.gmra.mxu0 %v1302
      %v1508 = vpop.f32.mrf.mxu0
      %v1509 = vadd.f32 0.0, %v1508
      %v1510 = vpop.f32.mrf.mxu0
      %v1511 = vadd.f32 0.0, %v1510
      %1512 = vmatmul.bf16.gmra.mxu0 %v1303
      %v1513 = vpop.f32.mrf.mxu0
      %v1514 = vadd.f32 0.0, %v1513
      %v1515 = vpop.f32.mrf.mxu0
      %v1516 = vadd.f32 0.0, %v1515
      %1517 = vmatmul.bf16.gmra.mxu0 %v1304
      %v1518 = vpop.f32.mrf.mxu0
      %v1519 = vadd.f32 0.0, %v1518
      %v1520 = vpop.f32.mrf.mxu0
      %v1521 = vadd.f32 0.0, %v1520
      %1522 = vmatmul.bf16.gmra.mxu0 %v1305
      %v1523 = vpop.f32.mrf.mxu0
      %v1524 = vadd.f32 0.0, %v1523
      %v1525 = vpop.f32.mrf.mxu0
      %v1526 = vadd.f32 0.0, %v1525
      %1527 = vmatmul.bf16.gmra.mxu0 %v1306
      %v1528 = vpop.f32.mrf.mxu0
      %v1529 = vadd.f32 0.0, %v1528
      %v1530 = vpop.f32.mrf.mxu0
      %v1531 = vadd.f32 0.0, %v1530
      %1532 = vmatmul.bf16.gmra.mxu0 %v1307
      %v1533 = vpop.f32.mrf.mxu0
      %v1534 = vadd.f32 0.0, %v1533
      %v1535 = vpop.f32.mrf.mxu0
      %v1536 = vadd.f32 0.0, %v1535
      %1537 = vmatmul.bf16.gmra.mxu0 %v1308
      %v1538 = vpop.f32.mrf.mxu0
      %v1539 = vadd.f32 0.0, %v1538
      %v1540 = vpop.f32.mrf.mxu0
      %v1541 = vadd.f32 0.0, %v1540
      %1542 = vdwg.mxu0
      %v1543 = vadd.f32 %v1147, %v1384
      %v1544 = vadd.f32 %v1148, %v1386
      %v1545 = vadd.f32 %v1149, %v1389
      %v1546 = vadd.f32 %v1150, %v1391
      %v1547 = vadd.f32 %v1151, %v1394
      %v1548 = vadd.f32 %v1152, %v1396
      %v1549 = vadd.f32 %v1153, %v1399
      %v1550 = vadd.f32 %v1154, %v1401
      %v1551 = vadd.f32 %v1155, %v1404
      %v1552 = vadd.f32 %v1156, %v1406
      %v1553 = vadd.f32 %v1157, %v1409
      %v1554 = vadd.f32 %v1158, %v1411
      %v1555 = vadd.f32 %v1159, %v1414
      %v1556 = vadd.f32 %v1160, %v1416
      %v1557 = vadd.f32 %v1161, %v1419
      %v1558 = vadd.f32 %v1162, %v1421
      %v1559 = vadd.f32 %v1163, %v1424
      %v1560 = vadd.f32 %v1164, %v1426
      %v1561 = vadd.f32 %v1165, %v1429
      %v1562 = vadd.f32 %v1166, %v1431
      %v1563 = vadd.f32 %v1167, %v1434
      %v1564 = vadd.f32 %v1168, %v1436
      %v1565 = vadd.f32 %v1169, %v1439
      %v1566 = vadd.f32 %v1170, %v1441
      %v1567 = vadd.f32 %v1171, %v1444
      %v1568 = vadd.f32 %v1172, %v1446
      %v1569 = vadd.f32 %v1173, %v1449
      %v1570 = vadd.f32 %v1174, %v1451
      %v1571 = vadd.f32 %v1175, %v1454
      %v1572 = vadd.f32 %v1176, %v1456
      %v1573 = vadd.f32 %v1177, %v1459
      %v1574 = vadd.f32 %v1178, %v1461
      %v1575 = vadd.f32 %v1179, %v1464
      %v1576 = vadd.f32 %v1180, %v1466
      %v1577 = vadd.f32 %v1181, %v1469
      %v1578 = vadd.f32 %v1182, %v1471
      %v1579 = vadd.f32 %v1183, %v1474
      %v1580 = vadd.f32 %v1184, %v1476
      %v1581 = vadd.f32 %v1185, %v1479
      %v1582 = vadd.f32 %v1186, %v1481
      %v1583 = vadd.f32 %v1187, %v1484
      %v1584 = vadd.f32 %v1188, %v1486
      %v1585 = vadd.f32 %v1189, %v1489
      %v1586 = vadd.f32 %v1190, %v1491
      %v1587 = vadd.f32 %v1191, %v1494
      %v1588 = vadd.f32 %v1192, %v1496
      %v1589 = vadd.f32 %v1193, %v1499
      %v1590 = vadd.f32 %v1194, %v1501
      %v1591 = vadd.f32 %v1195, %v1504
      %v1592 = vadd.f32 %v1196, %v1506
      %v1593 = vadd.f32 %v1197, %v1509
      %v1594 = vadd.f32 %v1198, %v1511
      %v1595 = vadd.f32 %v1199, %v1514
      %v1596 = vadd.f32 %v1200, %v1516
      %v1597 = vadd.f32 %v1201, %v1519
      %v1598 = vadd.f32 %v1202, %v1521
      %v1599 = vadd.f32 %v1203, %v1524
      %v1600 = vadd.f32 %v1204, %v1526
      %v1601 = vadd.f32 %v1205, %v1529
      %v1602 = vadd.f32 %v1206, %v1531
      %v1603 = vadd.f32 %v1207, %v1534
      %v1604 = vadd.f32 %v1208, %v1536
      %v1605 = vadd.f32 %v1209, %v1539
      %v1606 = vadd.f32 %v1210, %v1541
      %s1607 = sadd.s32 %s152, 19
      %s1608 = scalar_lea.vmem %s0, %s1607
      %v1609 = vld [vmem:[%s1608] sm:$0xff]
      %v1610 = vld [vmem:[%s1608 + $0x8] sm:$0xff]
      %v1611 = vld [vmem:[%s1608 + $0x10] sm:$0xff]
      %v1612 = vld [vmem:[%s1608 + $0x18] sm:$0xff]
      %v1613 = vld [vmem:[%s1608 + $0x20] sm:$0xff]
      %v1614 = vld [vmem:[%s1608 + $0x28] sm:$0xff]
      %v1615 = vld [vmem:[%s1608 + $0x30] sm:$0xff]
      %v1616 = vld [vmem:[%s1608 + $0x38] sm:$0xff]
      %v1617 = vld [vmem:[%s1608 + $0x40] sm:$0xff]
      %v1618 = vld [vmem:[%s1608 + $0x48] sm:$0xff]
      %v1619 = vld [vmem:[%s1608 + $0x50] sm:$0xff]
      %v1620 = vld [vmem:[%s1608 + $0x58] sm:$0xff]
      %v1621 = vld [vmem:[%s1608 + $0x60] sm:$0xff]
      %v1622 = vld [vmem:[%s1608 + $0x68] sm:$0xff]
      %v1623 = vld [vmem:[%s1608 + $0x70] sm:$0xff]
      %v1624 = vld [vmem:[%s1608 + $0x78] sm:$0xff]
      %v1625 = vld [vmem:[%s1608 + $0x80] sm:$0xff]
      %v1626 = vld [vmem:[%s1608 + $0x88] sm:$0xff]
      %v1627 = vld [vmem:[%s1608 + $0x90] sm:$0xff]
      %v1628 = vld [vmem:[%s1608 + $0x98] sm:$0xff]
      %v1629 = vld [vmem:[%s1608 + $0xa0] sm:$0xff]
      %v1630 = vld [vmem:[%s1608 + $0xa8] sm:$0xff]
      %v1631 = vld [vmem:[%s1608 + $0xb0] sm:$0xff]
      %v1632 = vld [vmem:[%s1608 + $0xb8] sm:$0xff]
      %v1633 = vld [vmem:[%s1608 + $0xc0] sm:$0xff]
      %v1634 = vld [vmem:[%s1608 + $0xc8] sm:$0xff]
      %v1635 = vld [vmem:[%s1608 + $0xd0] sm:$0xff]
      %v1636 = vld [vmem:[%s1608 + $0xd8] sm:$0xff]
      %v1637 = vld [vmem:[%s1608 + $0xe0] sm:$0xff]
      %v1638 = vld [vmem:[%s1608 + $0xe8] sm:$0xff]
      %v1639 = vld [vmem:[%s1608 + $0xf0] sm:$0xff]
      %v1640 = vld [vmem:[%s1608 + $0xf8] sm:$0xff]
      %v1641 = vld [vmem:[%s1608 + $0x100] sm:$0xff]
      %v1642 = vld [vmem:[%s1608 + $0x108] sm:$0xff]
      %v1643 = vld [vmem:[%s1608 + $0x110] sm:$0xff]
      %v1644 = vld [vmem:[%s1608 + $0x118] sm:$0xff]
      %v1645 = vld [vmem:[%s1608 + $0x120] sm:$0xff]
      %v1646 = vld [vmem:[%s1608 + $0x128] sm:$0xff]
      %v1647 = vld [vmem:[%s1608 + $0x130] sm:$0xff]
      %v1648 = vld [vmem:[%s1608 + $0x138] sm:$0xff]
      %v1649 = vld [vmem:[%s1608 + $0x140] sm:$0xff]
      %v1650 = vld [vmem:[%s1608 + $0x148] sm:$0xff]
      %v1651 = vld [vmem:[%s1608 + $0x150] sm:$0xff]
      %v1652 = vld [vmem:[%s1608 + $0x158] sm:$0xff]
      %v1653 = vld [vmem:[%s1608 + $0x160] sm:$0xff]
      %v1654 = vld [vmem:[%s1608 + $0x168] sm:$0xff]
      %v1655 = vld [vmem:[%s1608 + $0x170] sm:$0xff]
      %v1656 = vld [vmem:[%s1608 + $0x178] sm:$0xff]
      %v1657 = vld [vmem:[%s1608 + $0x180] sm:$0xff]
      %v1658 = vld [vmem:[%s1608 + $0x188] sm:$0xff]
      %v1659 = vld [vmem:[%s1608 + $0x190] sm:$0xff]
      %v1660 = vld [vmem:[%s1608 + $0x198] sm:$0xff]
      %v1661 = vld [vmem:[%s1608 + $0x1a0] sm:$0xff]
      %v1662 = vld [vmem:[%s1608 + $0x1a8] sm:$0xff]
      %v1663 = vld [vmem:[%s1608 + $0x1b0] sm:$0xff]
      %v1664 = vld [vmem:[%s1608 + $0x1b8] sm:$0xff]
      %v1665 = vld [vmem:[%s1608 + $0x1c0] sm:$0xff]
      %v1666 = vld [vmem:[%s1608 + $0x1c8] sm:$0xff]
      %v1667 = vld [vmem:[%s1608 + $0x1d0] sm:$0xff]
      %v1668 = vld [vmem:[%s1608 + $0x1d8] sm:$0xff]
      %v1669 = vld [vmem:[%s1608 + $0x1e0] sm:$0xff]
      %v1670 = vld [vmem:[%s1608 + $0x1e8] sm:$0xff]
      %v1671 = vld [vmem:[%s1608 + $0x1f0] sm:$0xff]
      %v1672 = vld [vmem:[%s1608 + $0x1f8] sm:$0xff]
      %v1673 = vpack.c.bf16 %v1610, %v1609
      %v1674 = vpack.c.bf16 %v1612, %v1611
      %v1675 = vpack.c.bf16 %v1614, %v1613
      %v1676 = vpack.c.bf16 %v1616, %v1615
      %v1677 = vpack.c.bf16 %v1618, %v1617
      %v1678 = vpack.c.bf16 %v1620, %v1619
      %v1679 = vpack.c.bf16 %v1622, %v1621
      %v1680 = vpack.c.bf16 %v1624, %v1623
      %v1681 = vpack.c.bf16 %v1626, %v1625
      %v1682 = vpack.c.bf16 %v1628, %v1627
      %v1683 = vpack.c.bf16 %v1630, %v1629
      %v1684 = vpack.c.bf16 %v1632, %v1631
      %v1685 = vpack.c.bf16 %v1634, %v1633
      %v1686 = vpack.c.bf16 %v1636, %v1635
      %v1687 = vpack.c.bf16 %v1638, %v1637
      %v1688 = vpack.c.bf16 %v1640, %v1639
      %v1689 = vpack.c.bf16 %v1642, %v1641
      %v1690 = vpack.c.bf16 %v1644, %v1643
      %v1691 = vpack.c.bf16 %v1646, %v1645
      %v1692 = vpack.c.bf16 %v1648, %v1647
      %v1693 = vpack.c.bf16 %v1650, %v1649
      %v1694 = vpack.c.bf16 %v1652, %v1651
      %v1695 = vpack.c.bf16 %v1654, %v1653
      %v1696 = vpack.c.bf16 %v1656, %v1655
      %v1697 = vpack.c.bf16 %v1658, %v1657
      %v1698 = vpack.c.bf16 %v1660, %v1659
      %v1699 = vpack.c.bf16 %v1662, %v1661
      %v1700 = vpack.c.bf16 %v1664, %v1663
      %v1701 = vpack.c.bf16 %v1666, %v1665
      %v1702 = vpack.c.bf16 %v1668, %v1667
      %v1703 = vpack.c.bf16 %v1670, %v1669
      %v1704 = vpack.c.bf16 %v1672, %v1671
      %s1705 = scalar_lea.vmem %s1, 256
      %v1706 = vld [vmem:[%s1705] sm:$0xf]
      %v1707 = vld [vmem:[%s1705 + $0x4] sm:$0xf]
      %v1708 = vld [vmem:[%s1705 + $0x8] sm:$0xf]
      %v1709 = vld [vmem:[%s1705 + $0xc] sm:$0xf]
      %v1710 = vld [vmem:[%s1705 + $0x10] sm:$0xf]
      %v1711 = vld [vmem:[%s1705 + $0x14] sm:$0xf]
      %v1712 = vld [vmem:[%s1705 + $0x18] sm:$0xf]
      %v1713 = vld [vmem:[%s1705 + $0x1c] sm:$0xf]
      %v1714 = vld [vmem:[%s1705 + $0x20] sm:$0xf]
      %v1715 = vld [vmem:[%s1705 + $0x24] sm:$0xf]
      %v1716 = vld [vmem:[%s1705 + $0x28] sm:$0xf]
      %v1717 = vld [vmem:[%s1705 + $0x2c] sm:$0xf]
      %v1718 = vld [vmem:[%s1705 + $0x30] sm:$0xf]
      %v1719 = vld [vmem:[%s1705 + $0x34] sm:$0xf]
      %v1720 = vld [vmem:[%s1705 + $0x38] sm:$0xf]
      %v1721 = vld [vmem:[%s1705 + $0x3c] sm:$0xf]
      %v1738 = vunpack.c.l.b16 %v1706
      %v1739 = vunpack.c.l.b16 %v1707
      %v1740 = vunpack.c.l.b16 %v1708
      %v1741 = vunpack.c.l.b16 %v1709
      %v1742 = vunpack.c.l.b16 %v1710
      %v1743 = vunpack.c.l.b16 %v1711
      %v1744 = vunpack.c.l.b16 %v1712
      %v1745 = vunpack.c.l.b16 %v1713
      %v1746 = vunpack.c.l.b16 %v1714
      %v1747 = vunpack.c.l.b16 %v1715
      %v1748 = vunpack.c.l.b16 %v1716
      %v1749 = vunpack.c.l.b16 %v1717
      %v1750 = vunpack.c.l.b16 %v1718
      %v1751 = vunpack.c.l.b16 %v1719
      %v1752 = vunpack.c.l.b16 %v1720
      %v1753 = vunpack.c.l.b16 %v1721
      %v1754 = vpack.c.b16 %v1739, %v1738
      %v1755 = vpack.c.b16 %v1741, %v1740
      %v1756 = vpack.c.b16 %v1743, %v1742
      %v1757 = vpack.c.b16 %v1745, %v1744
      %v1758 = vpack.c.b16 %v1747, %v1746
      %v1759 = vpack.c.b16 %v1749, %v1748
      %v1760 = vpack.c.b16 %v1751, %v1750
      %v1761 = vpack.c.b16 %v1753, %v1752
      %1770 = vmatpush.bf16.msra.mxu0 %v1761
      %1771 = vmatpush.bf16.msra.mxu0 %v1760
      %1772 = vmatpush.bf16.msra.mxu0 %v1759
      %1773 = vmatpush.bf16.msra.mxu0 %v1758
      %1774 = vmatpush.bf16.msra.mxu0 %v1757
      %1775 = vmatpush.bf16.msra.mxu0 %v1756
      %1776 = vmatpush.bf16.msra.mxu0 %v1755
      %1777 = vmatpush.bf16.msra.mxu0 %v1754
      %1778 = vmatmul.bf16.gmra.mxu0 %v1673
      %v1779 = vpop.f32.mrf.mxu0
      %v1780 = vadd.f32 0.0, %v1779
      %v1781 = vpop.f32.mrf.mxu0
      %v1782 = vadd.f32 0.0, %v1781
      %1783 = vmatmul.bf16.gmra.mxu0 %v1674
      %v1784 = vpop.f32.mrf.mxu0
      %v1785 = vadd.f32 0.0, %v1784
      %v1786 = vpop.f32.mrf.mxu0
      %v1787 = vadd.f32 0.0, %v1786
      %1788 = vmatmul.bf16.gmra.mxu0 %v1675
      %v1789 = vpop.f32.mrf.mxu0
      %v1790 = vadd.f32 0.0, %v1789
      %v1791 = vpop.f32.mrf.mxu0
      %v1792 = vadd.f32 0.0, %v1791
      %1793 = vmatmul.bf16.gmra.mxu0 %v1676
      %v1794 = vpop.f32.mrf.mxu0
      %v1795 = vadd.f32 0.0, %v1794
      %v1796 = vpop.f32.mrf.mxu0
      %v1797 = vadd.f32 0.0, %v1796
      %1798 = vmatmul.bf16.gmra.mxu0 %v1677
      %v1799 = vpop.f32.mrf.mxu0
      %v1800 = vadd.f32 0.0, %v1799
      %v1801 = vpop.f32.mrf.mxu0
      %v1802 = vadd.f32 0.0, %v1801
      %1803 = vmatmul.bf16.gmra.mxu0 %v1678
      %v1804 = vpop.f32.mrf.mxu0
      %v1805 = vadd.f32 0.0, %v1804
      %v1806 = vpop.f32.mrf.mxu0
      %v1807 = vadd.f32 0.0, %v1806
      %1808 = vmatmul.bf16.gmra.mxu0 %v1679
      %v1809 = vpop.f32.mrf.mxu0
      %v1810 = vadd.f32 0.0, %v1809
      %v1811 = vpop.f32.mrf.mxu0
      %v1812 = vadd.f32 0.0, %v1811
      %1813 = vmatmul.bf16.gmra.mxu0 %v1680
      %v1814 = vpop.f32.mrf.mxu0
      %v1815 = vadd.f32 0.0, %v1814
      %v1816 = vpop.f32.mrf.mxu0
      %v1817 = vadd.f32 0.0, %v1816
      %1818 = vmatmul.bf16.gmra.mxu0 %v1681
      %v1819 = vpop.f32.mrf.mxu0
      %v1820 = vadd.f32 0.0, %v1819
      %v1821 = vpop.f32.mrf.mxu0
      %v1822 = vadd.f32 0.0, %v1821
      %1823 = vmatmul.bf16.gmra.mxu0 %v1682
      %v1824 = vpop.f32.mrf.mxu0
      %v1825 = vadd.f32 0.0, %v1824
      %v1826 = vpop.f32.mrf.mxu0
      %v1827 = vadd.f32 0.0, %v1826
      %1828 = vmatmul.bf16.gmra.mxu0 %v1683
      %v1829 = vpop.f32.mrf.mxu0
      %v1830 = vadd.f32 0.0, %v1829
      %v1831 = vpop.f32.mrf.mxu0
      %v1832 = vadd.f32 0.0, %v1831
      %1833 = vmatmul.bf16.gmra.mxu0 %v1684
      %v1834 = vpop.f32.mrf.mxu0
      %v1835 = vadd.f32 0.0, %v1834
      %v1836 = vpop.f32.mrf.mxu0
      %v1837 = vadd.f32 0.0, %v1836
      %1838 = vmatmul.bf16.gmra.mxu0 %v1685
      %v1839 = vpop.f32.mrf.mxu0
      %v1840 = vadd.f32 0.0, %v1839
      %v1841 = vpop.f32.mrf.mxu0
      %v1842 = vadd.f32 0.0, %v1841
      %1843 = vmatmul.bf16.gmra.mxu0 %v1686
      %v1844 = vpop.f32.mrf.mxu0
      %v1845 = vadd.f32 0.0, %v1844
      %v1846 = vpop.f32.mrf.mxu0
      %v1847 = vadd.f32 0.0, %v1846
      %1848 = vmatmul.bf16.gmra.mxu0 %v1687
      %v1849 = vpop.f32.mrf.mxu0
      %v1850 = vadd.f32 0.0, %v1849
      %v1851 = vpop.f32.mrf.mxu0
      %v1852 = vadd.f32 0.0, %v1851
      %1853 = vmatmul.bf16.gmra.mxu0 %v1688
      %v1854 = vpop.f32.mrf.mxu0
      %v1855 = vadd.f32 0.0, %v1854
      %v1856 = vpop.f32.mrf.mxu0
      %v1857 = vadd.f32 0.0, %v1856
      %1858 = vmatmul.bf16.gmra.mxu0 %v1689
      %v1859 = vpop.f32.mrf.mxu0
      %v1860 = vadd.f32 0.0, %v1859
      %v1861 = vpop.f32.mrf.mxu0
      %v1862 = vadd.f32 0.0, %v1861
      %1863 = vmatmul.bf16.gmra.mxu0 %v1690
      %v1864 = vpop.f32.mrf.mxu0
      %v1865 = vadd.f32 0.0, %v1864
      %v1866 = vpop.f32.mrf.mxu0
      %v1867 = vadd.f32 0.0, %v1866
      %1868 = vmatmul.bf16.gmra.mxu0 %v1691
      %v1869 = vpop.f32.mrf.mxu0
      %v1870 = vadd.f32 0.0, %v1869
      %v1871 = vpop.f32.mrf.mxu0
      %v1872 = vadd.f32 0.0, %v1871
      %1873 = vmatmul.bf16.gmra.mxu0 %v1692
      %v1874 = vpop.f32.mrf.mxu0
      %v1875 = vadd.f32 0.0, %v1874
      %v1876 = vpop.f32.mrf.mxu0
      %v1877 = vadd.f32 0.0, %v1876
      %1878 = vmatmul.bf16.gmra.mxu0 %v1693
      %v1879 = vpop.f32.mrf.mxu0
      %v1880 = vadd.f32 0.0, %v1879
      %v1881 = vpop.f32.mrf.mxu0
      %v1882 = vadd.f32 0.0, %v1881
      %1883 = vmatmul.bf16.gmra.mxu0 %v1694
      %v1884 = vpop.f32.mrf.mxu0
      %v1885 = vadd.f32 0.0, %v1884
      %v1886 = vpop.f32.mrf.mxu0
      %v1887 = vadd.f32 0.0, %v1886
      %1888 = vmatmul.bf16.gmra.mxu0 %v1695
      %v1889 = vpop.f32.mrf.mxu0
      %v1890 = vadd.f32 0.0, %v1889
      %v1891 = vpop.f32.mrf.mxu0
      %v1892 = vadd.f32 0.0, %v1891
      %1893 = vmatmul.bf16.gmra.mxu0 %v1696
      %v1894 = vpop.f32.mrf.mxu0
      %v1895 = vadd.f32 0.0, %v1894
      %v1896 = vpop.f32.mrf.mxu0
      %v1897 = vadd.f32 0.0, %v1896
      %1898 = vmatmul.bf16.gmra.mxu0 %v1697
      %v1899 = vpop.f32.mrf.mxu0
      %v1900 = vadd.f32 0.0, %v1899
      %v1901 = vpop.f32.mrf.mxu0
      %v1902 = vadd.f32 0.0, %v1901
      %1903 = vmatmul.bf16.gmra.mxu0 %v1698
      %v1904 = vpop.f32.mrf.mxu0
      %v1905 = vadd.f32 0.0, %v1904
      %v1906 = vpop.f32.mrf.mxu0
      %v1907 = vadd.f32 0.0, %v1906
      %1908 = vmatmul.bf16.gmra.mxu0 %v1699
      %v1909 = vpop.f32.mrf.mxu0
      %v1910 = vadd.f32 0.0, %v1909
      %v1911 = vpop.f32.mrf.mxu0
      %v1912 = vadd.f32 0.0, %v1911
      %1913 = vmatmul.bf16.gmra.mxu0 %v1700
      %v1914 = vpop.f32.mrf.mxu0
      %v1915 = vadd.f32 0.0, %v1914
      %v1916 = vpop.f32.mrf.mxu0
      %v1917 = vadd.f32 0.0, %v1916
      %1918 = vmatmul.bf16.gmra.mxu0 %v1701
      %v1919 = vpop.f32.mrf.mxu0
      %v1920 = vadd.f32 0.0, %v1919
      %v1921 = vpop.f32.mrf.mxu0
      %v1922 = vadd.f32 0.0, %v1921
      %1923 = vmatmul.bf16.gmra.mxu0 %v1702
      %v1924 = vpop.f32.mrf.mxu0
      %v1925 = vadd.f32 0.0, %v1924
      %v1926 = vpop.f32.mrf.mxu0
      %v1927 = vadd.f32 0.0, %v1926
      %1928 = vmatmul.bf16.gmra.mxu0 %v1703
      %v1929 = vpop.f32.mrf.mxu0
      %v1930 = vadd.f32 0.0, %v1929
      %v1931 = vpop.f32.mrf.mxu0
      %v1932 = vadd.f32 0.0, %v1931
      %1933 = vmatmul.bf16.gmra.mxu0 %v1704
      %v1934 = vpop.f32.mrf.mxu0
      %v1935 = vadd.f32 0.0, %v1934
      %v1936 = vpop.f32.mrf.mxu0
      %v1937 = vadd.f32 0.0, %v1936
      %1938 = vdwg.mxu0
      %v1939 = vadd.f32 %v1543, %v1780
      %v1940 = vadd.f32 %v1544, %v1782
      %v1941 = vadd.f32 %v1545, %v1785
      %v1942 = vadd.f32 %v1546, %v1787
      %v1943 = vadd.f32 %v1547, %v1790
      %v1944 = vadd.f32 %v1548, %v1792
      %v1945 = vadd.f32 %v1549, %v1795
      %v1946 = vadd.f32 %v1550, %v1797
      %v1947 = vadd.f32 %v1551, %v1800
      %v1948 = vadd.f32 %v1552, %v1802
      %v1949 = vadd.f32 %v1553, %v1805
      %v1950 = vadd.f32 %v1554, %v1807
      %v1951 = vadd.f32 %v1555, %v1810
      %v1952 = vadd.f32 %v1556, %v1812
      %v1953 = vadd.f32 %v1557, %v1815
      %v1954 = vadd.f32 %v1558, %v1817
      %v1955 = vadd.f32 %v1559, %v1820
      %v1956 = vadd.f32 %v1560, %v1822
      %v1957 = vadd.f32 %v1561, %v1825
      %v1958 = vadd.f32 %v1562, %v1827
      %v1959 = vadd.f32 %v1563, %v1830
      %v1960 = vadd.f32 %v1564, %v1832
      %v1961 = vadd.f32 %v1565, %v1835
      %v1962 = vadd.f32 %v1566, %v1837
      %v1963 = vadd.f32 %v1567, %v1840
      %v1964 = vadd.f32 %v1568, %v1842
      %v1965 = vadd.f32 %v1569, %v1845
      %v1966 = vadd.f32 %v1570, %v1847
      %v1967 = vadd.f32 %v1571, %v1850
      %v1968 = vadd.f32 %v1572, %v1852
      %v1969 = vadd.f32 %v1573, %v1855
      %v1970 = vadd.f32 %v1574, %v1857
      %v1971 = vadd.f32 %v1575, %v1860
      %v1972 = vadd.f32 %v1576, %v1862
      %v1973 = vadd.f32 %v1577, %v1865
      %v1974 = vadd.f32 %v1578, %v1867
      %v1975 = vadd.f32 %v1579, %v1870
      %v1976 = vadd.f32 %v1580, %v1872
      %v1977 = vadd.f32 %v1581, %v1875
      %v1978 = vadd.f32 %v1582, %v1877
      %v1979 = vadd.f32 %v1583, %v1880
      %v1980 = vadd.f32 %v1584, %v1882
      %v1981 = vadd.f32 %v1585, %v1885
      %v1982 = vadd.f32 %v1586, %v1887
      %v1983 = vadd.f32 %v1587, %v1890
      %v1984 = vadd.f32 %v1588, %v1892
      %v1985 = vadd.f32 %v1589, %v1895
      %v1986 = vadd.f32 %v1590, %v1897
      %v1987 = vadd.f32 %v1591, %v1900
      %v1988 = vadd.f32 %v1592, %v1902
      %v1989 = vadd.f32 %v1593, %v1905
      %v1990 = vadd.f32 %v1594, %v1907
      %v1991 = vadd.f32 %v1595, %v1910
      %v1992 = vadd.f32 %v1596, %v1912
      %v1993 = vadd.f32 %v1597, %v1915
      %v1994 = vadd.f32 %v1598, %v1917
      %v1995 = vadd.f32 %v1599, %v1920
      %v1996 = vadd.f32 %v1600, %v1922
      %v1997 = vadd.f32 %v1601, %v1925
      %v1998 = vadd.f32 %v1602, %v1927
      %v1999 = vadd.f32 %v1603, %v1930
      %v2000 = vadd.f32 %v1604, %v1932
      %v2001 = vadd.f32 %v1605, %v1935
      %v2002 = vadd.f32 %v1606, %v1937
      %s2003 = sadd.s32 %s152, 20
      %s2004 = scalar_lea.vmem %s0, %s2003
      %v2005 = vld [vmem:[%s2004] sm:$0xff]
      %v2006 = vld [vmem:[%s2004 + $0x8] sm:$0xff]
      %v2007 = vld [vmem:[%s2004 + $0x10] sm:$0xff]
      %v2008 = vld [vmem:[%s2004 + $0x18] sm:$0xff]
      %v2009 = vld [vmem:[%s2004 + $0x20] sm:$0xff]
      %v2010 = vld [vmem:[%s2004 + $0x28] sm:$0xff]
      %v2011 = vld [vmem:[%s2004 + $0x30] sm:$0xff]
      %v2012 = vld [vmem:[%s2004 + $0x38] sm:$0xff]
      %v2013 = vld [vmem:[%s2004 + $0x40] sm:$0xff]
      %v2014 = vld [vmem:[%s2004 + $0x48] sm:$0xff]
      %v2015 = vld [vmem:[%s2004 + $0x50] sm:$0xff]
      %v2016 = vld [vmem:[%s2004 + $0x58] sm:$0xff]
      %v2017 = vld [vmem:[%s2004 + $0x60] sm:$0xff]
      %v2018 = vld [vmem:[%s2004 + $0x68] sm:$0xff]
      %v2019 = vld [vmem:[%s2004 + $0x70] sm:$0xff]
      %v2020 = vld [vmem:[%s2004 + $0x78] sm:$0xff]
      %v2021 = vld [vmem:[%s2004 + $0x80] sm:$0xff]
      %v2022 = vld [vmem:[%s2004 + $0x88] sm:$0xff]
      %v2023 = vld [vmem:[%s2004 + $0x90] sm:$0xff]
      %v2024 = vld [vmem:[%s2004 + $0x98] sm:$0xff]
      %v2025 = vld [vmem:[%s2004 + $0xa0] sm:$0xff]
      %v2026 = vld [vmem:[%s2004 + $0xa8] sm:$0xff]
      %v2027 = vld [vmem:[%s2004 + $0xb0] sm:$0xff]
      %v2028 = vld [vmem:[%s2004 + $0xb8] sm:$0xff]
      %v2029 = vld [vmem:[%s2004 + $0xc0] sm:$0xff]
      %v2030 = vld [vmem:[%s2004 + $0xc8] sm:$0xff]
      %v2031 = vld [vmem:[%s2004 + $0xd0] sm:$0xff]
      %v2032 = vld [vmem:[%s2004 + $0xd8] sm:$0xff]
      %v2033 = vld [vmem:[%s2004 + $0xe0] sm:$0xff]
      %v2034 = vld [vmem:[%s2004 + $0xe8] sm:$0xff]
      %v2035 = vld [vmem:[%s2004 + $0xf0] sm:$0xff]
      %v2036 = vld [vmem:[%s2004 + $0xf8] sm:$0xff]
      %v2037 = vld [vmem:[%s2004 + $0x100] sm:$0xff]
      %v2038 = vld [vmem:[%s2004 + $0x108] sm:$0xff]
      %v2039 = vld [vmem:[%s2004 + $0x110] sm:$0xff]
      %v2040 = vld [vmem:[%s2004 + $0x118] sm:$0xff]
      %v2041 = vld [vmem:[%s2004 + $0x120] sm:$0xff]
      %v2042 = vld [vmem:[%s2004 + $0x128] sm:$0xff]
      %v2043 = vld [vmem:[%s2004 + $0x130] sm:$0xff]
      %v2044 = vld [vmem:[%s2004 + $0x138] sm:$0xff]
      %v2045 = vld [vmem:[%s2004 + $0x140] sm:$0xff]
      %v2046 = vld [vmem:[%s2004 + $0x148] sm:$0xff]
      %v2047 = vld [vmem:[%s2004 + $0x150] sm:$0xff]
      %v2048 = vld [vmem:[%s2004 + $0x158] sm:$0xff]
      %v2049 = vld [vmem:[%s2004 + $0x160] sm:$0xff]
      %v2050 = vld [vmem:[%s2004 + $0x168] sm:$0xff]
      %v2051 = vld [vmem:[%s2004 + $0x170] sm:$0xff]
      %v2052 = vld [vmem:[%s2004 + $0x178] sm:$0xff]
      %v2053 = vld [vmem:[%s2004 + $0x180] sm:$0xff]
      %v2054 = vld [vmem:[%s2004 + $0x188] sm:$0xff]
      %v2055 = vld [vmem:[%s2004 + $0x190] sm:$0xff]
      %v2056 = vld [vmem:[%s2004 + $0x198] sm:$0xff]
      %v2057 = vld [vmem:[%s2004 + $0x1a0] sm:$0xff]
      %v2058 = vld [vmem:[%s2004 + $0x1a8] sm:$0xff]
      %v2059 = vld [vmem:[%s2004 + $0x1b0] sm:$0xff]
      %v2060 = vld [vmem:[%s2004 + $0x1b8] sm:$0xff]
      %v2061 = vld [vmem:[%s2004 + $0x1c0] sm:$0xff]
      %v2062 = vld [vmem:[%s2004 + $0x1c8] sm:$0xff]
      %v2063 = vld [vmem:[%s2004 + $0x1d0] sm:$0xff]
      %v2064 = vld [vmem:[%s2004 + $0x1d8] sm:$0xff]
      %v2065 = vld [vmem:[%s2004 + $0x1e0] sm:$0xff]
      %v2066 = vld [vmem:[%s2004 + $0x1e8] sm:$0xff]
      %v2067 = vld [vmem:[%s2004 + $0x1f0] sm:$0xff]
      %v2068 = vld [vmem:[%s2004 + $0x1f8] sm:$0xff]
      %v2069 = vpack.c.bf16 %v2006, %v2005
      %v2070 = vpack.c.bf16 %v2008, %v2007
      %v2071 = vpack.c.bf16 %v2010, %v2009
      %v2072 = vpack.c.bf16 %v2012, %v2011
      %v2073 = vpack.c.bf16 %v2014, %v2013
      %v2074 = vpack.c.bf16 %v2016, %v2015
      %v2075 = vpack.c.bf16 %v2018, %v2017
      %v2076 = vpack.c.bf16 %v2020, %v2019
      %v2077 = vpack.c.bf16 %v2022, %v2021
      %v2078 = vpack.c.bf16 %v2024, %v2023
      %v2079 = vpack.c.bf16 %v2026, %v2025
      %v2080 = vpack.c.bf16 %v2028, %v2027
      %v2081 = vpack.c.bf16 %v2030, %v2029
      %v2082 = vpack.c.bf16 %v2032, %v2031
      %v2083 = vpack.c.bf16 %v2034, %v2033
      %v2084 = vpack.c.bf16 %v2036, %v2035
      %v2085 = vpack.c.bf16 %v2038, %v2037
      %v2086 = vpack.c.bf16 %v2040, %v2039
      %v2087 = vpack.c.bf16 %v2042, %v2041
      %v2088 = vpack.c.bf16 %v2044, %v2043
      %v2089 = vpack.c.bf16 %v2046, %v2045
      %v2090 = vpack.c.bf16 %v2048, %v2047
      %v2091 = vpack.c.bf16 %v2050, %v2049
      %v2092 = vpack.c.bf16 %v2052, %v2051
      %v2093 = vpack.c.bf16 %v2054, %v2053
      %v2094 = vpack.c.bf16 %v2056, %v2055
      %v2095 = vpack.c.bf16 %v2058, %v2057
      %v2096 = vpack.c.bf16 %v2060, %v2059
      %v2097 = vpack.c.bf16 %v2062, %v2061
      %v2098 = vpack.c.bf16 %v2064, %v2063
      %v2099 = vpack.c.bf16 %v2066, %v2065
      %v2100 = vpack.c.bf16 %v2068, %v2067
      %s2101 = scalar_lea.vmem %s1, 320
      %v2102 = vld [vmem:[%s2101] sm:$0xf]
      %v2103 = vld [vmem:[%s2101 + $0x4] sm:$0xf]
      %v2104 = vld [vmem:[%s2101 + $0x8] sm:$0xf]
      %v2105 = vld [vmem:[%s2101 + $0xc] sm:$0xf]
      %v2106 = vld [vmem:[%s2101 + $0x10] sm:$0xf]
      %v2107 = vld [vmem:[%s2101 + $0x14] sm:$0xf]
      %v2108 = vld [vmem:[%s2101 + $0x18] sm:$0xf]
      %v2109 = vld [vmem:[%s2101 + $0x1c] sm:$0xf]
      %v2110 = vld [vmem:[%s2101 + $0x20] sm:$0xf]
      %v2111 = vld [vmem:[%s2101 + $0x24] sm:$0xf]
      %v2112 = vld [vmem:[%s2101 + $0x28] sm:$0xf]
      %v2113 = vld [vmem:[%s2101 + $0x2c] sm:$0xf]
      %v2114 = vld [vmem:[%s2101 + $0x30] sm:$0xf]
      %v2115 = vld [vmem:[%s2101 + $0x34] sm:$0xf]
      %v2116 = vld [vmem:[%s2101 + $0x38] sm:$0xf]
      %v2117 = vld [vmem:[%s2101 + $0x3c] sm:$0xf]
      %v2134 = vunpack.c.l.b16 %v2102
      %v2135 = vunpack.c.l.b16 %v2103
      %v2136 = vunpack.c.l.b16 %v2104
      %v2137 = vunpack.c.l.b16 %v2105
      %v2138 = vunpack.c.l.b16 %v2106
      %v2139 = vunpack.c.l.b16 %v2107
      %v2140 = vunpack.c.l.b16 %v2108
      %v2141 = vunpack.c.l.b16 %v2109
      %v2142 = vunpack.c.l.b16 %v2110
      %v2143 = vunpack.c.l.b16 %v2111
      %v2144 = vunpack.c.l.b16 %v2112
      %v2145 = vunpack.c.l.b16 %v2113
      %v2146 = vunpack.c.l.b16 %v2114
      %v2147 = vunpack.c.l.b16 %v2115
      %v2148 = vunpack.c.l.b16 %v2116
      %v2149 = vunpack.c.l.b16 %v2117
      %v2150 = vpack.c.b16 %v2135, %v2134
      %v2151 = vpack.c.b16 %v2137, %v2136
      %v2152 = vpack.c.b16 %v2139, %v2138
      %v2153 = vpack.c.b16 %v2141, %v2140
      %v2154 = vpack.c.b16 %v2143, %v2142
      %v2155 = vpack.c.b16 %v2145, %v2144
      %v2156 = vpack.c.b16 %v2147, %v2146
      %v2157 = vpack.c.b16 %v2149, %v2148
      %2166 = vmatpush.bf16.msra.mxu0 %v2157
      %2167 = vmatpush.bf16.msra.mxu0 %v2156
      %2168 = vmatpush.bf16.msra.mxu0 %v2155
      %2169 = vmatpush.bf16.msra.mxu0 %v2154
      %2170 = vmatpush.bf16.msra.mxu0 %v2153
      %2171 = vmatpush.bf16.msra.mxu0 %v2152
      %2172 = vmatpush.bf16.msra.mxu0 %v2151
      %2173 = vmatpush.bf16.msra.mxu0 %v2150
      %2174 = vmatmul.bf16.gmra.mxu0 %v2069
      %v2175 = vpop.f32.mrf.mxu0
      %v2176 = vadd.f32 0.0, %v2175
      %v2177 = vpop.f32.mrf.mxu0
      %v2178 = vadd.f32 0.0, %v2177
      %2179 = vmatmul.bf16.gmra.mxu0 %v2070
      %v2180 = vpop.f32.mrf.mxu0
      %v2181 = vadd.f32 0.0, %v2180
      %v2182 = vpop.f32.mrf.mxu0
      %v2183 = vadd.f32 0.0, %v2182
      %2184 = vmatmul.bf16.gmra.mxu0 %v2071
      %v2185 = vpop.f32.mrf.mxu0
      %v2186 = vadd.f32 0.0, %v2185
      %v2187 = vpop.f32.mrf.mxu0
      %v2188 = vadd.f32 0.0, %v2187
      %2189 = vmatmul.bf16.gmra.mxu0 %v2072
      %v2190 = vpop.f32.mrf.mxu0
      %v2191 = vadd.f32 0.0, %v2190
      %v2192 = vpop.f32.mrf.mxu0
      %v2193 = vadd.f32 0.0, %v2192
      %2194 = vmatmul.bf16.gmra.mxu0 %v2073
      %v2195 = vpop.f32.mrf.mxu0
      %v2196 = vadd.f32 0.0, %v2195
      %v2197 = vpop.f32.mrf.mxu0
      %v2198 = vadd.f32 0.0, %v2197
      %2199 = vmatmul.bf16.gmra.mxu0 %v2074
      %v2200 = vpop.f32.mrf.mxu0
      %v2201 = vadd.f32 0.0, %v2200
      %v2202 = vpop.f32.mrf.mxu0
      %v2203 = vadd.f32 0.0, %v2202
      %2204 = vmatmul.bf16.gmra.mxu0 %v2075
      %v2205 = vpop.f32.mrf.mxu0
      %v2206 = vadd.f32 0.0, %v2205
      %v2207 = vpop.f32.mrf.mxu0
      %v2208 = vadd.f32 0.0, %v2207
      %2209 = vmatmul.bf16.gmra.mxu0 %v2076
      %v2210 = vpop.f32.mrf.mxu0
      %v2211 = vadd.f32 0.0, %v2210
      %v2212 = vpop.f32.mrf.mxu0
      %v2213 = vadd.f32 0.0, %v2212
      %2214 = vmatmul.bf16.gmra.mxu0 %v2077
      %v2215 = vpop.f32.mrf.mxu0
      %v2216 = vadd.f32 0.0, %v2215
      %v2217 = vpop.f32.mrf.mxu0
      %v2218 = vadd.f32 0.0, %v2217
      %2219 = vmatmul.bf16.gmra.mxu0 %v2078
      %v2220 = vpop.f32.mrf.mxu0
      %v2221 = vadd.f32 0.0, %v2220
      %v2222 = vpop.f32.mrf.mxu0
      %v2223 = vadd.f32 0.0, %v2222
      %2224 = vmatmul.bf16.gmra.mxu0 %v2079
      %v2225 = vpop.f32.mrf.mxu0
      %v2226 = vadd.f32 0.0, %v2225
      %v2227 = vpop.f32.mrf.mxu0
      %v2228 = vadd.f32 0.0, %v2227
      %2229 = vmatmul.bf16.gmra.mxu0 %v2080
      %v2230 = vpop.f32.mrf.mxu0
      %v2231 = vadd.f32 0.0, %v2230
      %v2232 = vpop.f32.mrf.mxu0
      %v2233 = vadd.f32 0.0, %v2232
      %2234 = vmatmul.bf16.gmra.mxu0 %v2081
      %v2235 = vpop.f32.mrf.mxu0
      %v2236 = vadd.f32 0.0, %v2235
      %v2237 = vpop.f32.mrf.mxu0
      %v2238 = vadd.f32 0.0, %v2237
      %2239 = vmatmul.bf16.gmra.mxu0 %v2082
      %v2240 = vpop.f32.mrf.mxu0
      %v2241 = vadd.f32 0.0, %v2240
      %v2242 = vpop.f32.mrf.mxu0
      %v2243 = vadd.f32 0.0, %v2242
      %2244 = vmatmul.bf16.gmra.mxu0 %v2083
      %v2245 = vpop.f32.mrf.mxu0
      %v2246 = vadd.f32 0.0, %v2245
      %v2247 = vpop.f32.mrf.mxu0
      %v2248 = vadd.f32 0.0, %v2247
      %2249 = vmatmul.bf16.gmra.mxu0 %v2084
      %v2250 = vpop.f32.mrf.mxu0
      %v2251 = vadd.f32 0.0, %v2250
      %v2252 = vpop.f32.mrf.mxu0
      %v2253 = vadd.f32 0.0, %v2252
      %2254 = vmatmul.bf16.gmra.mxu0 %v2085
      %v2255 = vpop.f32.mrf.mxu0
      %v2256 = vadd.f32 0.0, %v2255
      %v2257 = vpop.f32.mrf.mxu0
      %v2258 = vadd.f32 0.0, %v2257
      %2259 = vmatmul.bf16.gmra.mxu0 %v2086
      %v2260 = vpop.f32.mrf.mxu0
      %v2261 = vadd.f32 0.0, %v2260
      %v2262 = vpop.f32.mrf.mxu0
      %v2263 = vadd.f32 0.0, %v2262
      %2264 = vmatmul.bf16.gmra.mxu0 %v2087
      %v2265 = vpop.f32.mrf.mxu0
      %v2266 = vadd.f32 0.0, %v2265
      %v2267 = vpop.f32.mrf.mxu0
      %v2268 = vadd.f32 0.0, %v2267
      %2269 = vmatmul.bf16.gmra.mxu0 %v2088
      %v2270 = vpop.f32.mrf.mxu0
      %v2271 = vadd.f32 0.0, %v2270
      %v2272 = vpop.f32.mrf.mxu0
      %v2273 = vadd.f32 0.0, %v2272
      %2274 = vmatmul.bf16.gmra.mxu0 %v2089
      %v2275 = vpop.f32.mrf.mxu0
      %v2276 = vadd.f32 0.0, %v2275
      %v2277 = vpop.f32.mrf.mxu0
      %v2278 = vadd.f32 0.0, %v2277
      %2279 = vmatmul.bf16.gmra.mxu0 %v2090
      %v2280 = vpop.f32.mrf.mxu0
      %v2281 = vadd.f32 0.0, %v2280
      %v2282 = vpop.f32.mrf.mxu0
      %v2283 = vadd.f32 0.0, %v2282
      %2284 = vmatmul.bf16.gmra.mxu0 %v2091
      %v2285 = vpop.f32.mrf.mxu0
      %v2286 = vadd.f32 0.0, %v2285
      %v2287 = vpop.f32.mrf.mxu0
      %v2288 = vadd.f32 0.0, %v2287
      %2289 = vmatmul.bf16.gmra.mxu0 %v2092
      %v2290 = vpop.f32.mrf.mxu0
      %v2291 = vadd.f32 0.0, %v2290
      %v2292 = vpop.f32.mrf.mxu0
      %v2293 = vadd.f32 0.0, %v2292
      %2294 = vmatmul.bf16.gmra.mxu0 %v2093
      %v2295 = vpop.f32.mrf.mxu0
      %v2296 = vadd.f32 0.0, %v2295
      %v2297 = vpop.f32.mrf.mxu0
      %v2298 = vadd.f32 0.0, %v2297
      %2299 = vmatmul.bf16.gmra.mxu0 %v2094
      %v2300 = vpop.f32.mrf.mxu0
      %v2301 = vadd.f32 0.0, %v2300
      %v2302 = vpop.f32.mrf.mxu0
      %v2303 = vadd.f32 0.0, %v2302
      %2304 = vmatmul.bf16.gmra.mxu0 %v2095
      %v2305 = vpop.f32.mrf.mxu0
      %v2306 = vadd.f32 0.0, %v2305
      %v2307 = vpop.f32.mrf.mxu0
      %v2308 = vadd.f32 0.0, %v2307
      %2309 = vmatmul.bf16.gmra.mxu0 %v2096
      %v2310 = vpop.f32.mrf.mxu0
      %v2311 = vadd.f32 0.0, %v2310
      %v2312 = vpop.f32.mrf.mxu0
      %v2313 = vadd.f32 0.0, %v2312
      %2314 = vmatmul.bf16.gmra.mxu0 %v2097
      %v2315 = vpop.f32.mrf.mxu0
      %v2316 = vadd.f32 0.0, %v2315
      %v2317 = vpop.f32.mrf.mxu0
      %v2318 = vadd.f32 0.0, %v2317
      %2319 = vmatmul.bf16.gmra.mxu0 %v2098
      %v2320 = vpop.f32.mrf.mxu0
      %v2321 = vadd.f32 0.0, %v2320
      %v2322 = vpop.f32.mrf.mxu0
      %v2323 = vadd.f32 0.0, %v2322
      %2324 = vmatmul.bf16.gmra.mxu0 %v2099
      %v2325 = vpop.f32.mrf.mxu0
      %v2326 = vadd.f32 0.0, %v2325
      %v2327 = vpop.f32.mrf.mxu0
      %v2328 = vadd.f32 0.0, %v2327
      %2329 = vmatmul.bf16.gmra.mxu0 %v2100
      %v2330 = vpop.f32.mrf.mxu0
      %v2331 = vadd.f32 0.0, %v2330
      %v2332 = vpop.f32.mrf.mxu0
      %v2333 = vadd.f32 0.0, %v2332
      %2334 = vdwg.mxu0
      %v2335 = vadd.f32 %v1939, %v2176
      %v2336 = vadd.f32 %v1940, %v2178
      %v2337 = vadd.f32 %v1941, %v2181
      %v2338 = vadd.f32 %v1942, %v2183
      %v2339 = vadd.f32 %v1943, %v2186
      %v2340 = vadd.f32 %v1944, %v2188
      %v2341 = vadd.f32 %v1945, %v2191
      %v2342 = vadd.f32 %v1946, %v2193
      %v2343 = vadd.f32 %v1947, %v2196
      %v2344 = vadd.f32 %v1948, %v2198
      %v2345 = vadd.f32 %v1949, %v2201
      %v2346 = vadd.f32 %v1950, %v2203
      %v2347 = vadd.f32 %v1951, %v2206
      %v2348 = vadd.f32 %v1952, %v2208
      %v2349 = vadd.f32 %v1953, %v2211
      %v2350 = vadd.f32 %v1954, %v2213
      %v2351 = vadd.f32 %v1955, %v2216
      %v2352 = vadd.f32 %v1956, %v2218
      %v2353 = vadd.f32 %v1957, %v2221
      %v2354 = vadd.f32 %v1958, %v2223
      %v2355 = vadd.f32 %v1959, %v2226
      %v2356 = vadd.f32 %v1960, %v2228
      %v2357 = vadd.f32 %v1961, %v2231
      %v2358 = vadd.f32 %v1962, %v2233
      %v2359 = vadd.f32 %v1963, %v2236
      %v2360 = vadd.f32 %v1964, %v2238
      %v2361 = vadd.f32 %v1965, %v2241
      %v2362 = vadd.f32 %v1966, %v2243
      %v2363 = vadd.f32 %v1967, %v2246
      %v2364 = vadd.f32 %v1968, %v2248
      %v2365 = vadd.f32 %v1969, %v2251
      %v2366 = vadd.f32 %v1970, %v2253
      %v2367 = vadd.f32 %v1971, %v2256
      %v2368 = vadd.f32 %v1972, %v2258
      %v2369 = vadd.f32 %v1973, %v2261
      %v2370 = vadd.f32 %v1974, %v2263
      %v2371 = vadd.f32 %v1975, %v2266
      %v2372 = vadd.f32 %v1976, %v2268
      %v2373 = vadd.f32 %v1977, %v2271
      %v2374 = vadd.f32 %v1978, %v2273
      %v2375 = vadd.f32 %v1979, %v2276
      %v2376 = vadd.f32 %v1980, %v2278
      %v2377 = vadd.f32 %v1981, %v2281
      %v2378 = vadd.f32 %v1982, %v2283
      %v2379 = vadd.f32 %v1983, %v2286
      %v2380 = vadd.f32 %v1984, %v2288
      %v2381 = vadd.f32 %v1985, %v2291
      %v2382 = vadd.f32 %v1986, %v2293
      %v2383 = vadd.f32 %v1987, %v2296
      %v2384 = vadd.f32 %v1988, %v2298
      %v2385 = vadd.f32 %v1989, %v2301
      %v2386 = vadd.f32 %v1990, %v2303
      %v2387 = vadd.f32 %v1991, %v2306
      %v2388 = vadd.f32 %v1992, %v2308
      %v2389 = vadd.f32 %v1993, %v2311
      %v2390 = vadd.f32 %v1994, %v2313
      %v2391 = vadd.f32 %v1995, %v2316
      %v2392 = vadd.f32 %v1996, %v2318
      %v2393 = vadd.f32 %v1997, %v2321
      %v2394 = vadd.f32 %v1998, %v2323
      %v2395 = vadd.f32 %v1999, %v2326
      %v2396 = vadd.f32 %v2000, %v2328
      %v2397 = vadd.f32 %v2001, %v2331
      %v2398 = vadd.f32 %v2002, %v2333
      %s2399 = sadd.s32 %s152, 36
      %s2400 = scalar_lea.vmem %s0, %s2399
      %v2401 = vld [vmem:[%s2400] sm:$0xff]
      %v2402 = vld [vmem:[%s2400 + $0x8] sm:$0xff]
      %v2403 = vld [vmem:[%s2400 + $0x10] sm:$0xff]
      %v2404 = vld [vmem:[%s2400 + $0x18] sm:$0xff]
      %v2405 = vld [vmem:[%s2400 + $0x20] sm:$0xff]
      %v2406 = vld [vmem:[%s2400 + $0x28] sm:$0xff]
      %v2407 = vld [vmem:[%s2400 + $0x30] sm:$0xff]
      %v2408 = vld [vmem:[%s2400 + $0x38] sm:$0xff]
      %v2409 = vld [vmem:[%s2400 + $0x40] sm:$0xff]
      %v2410 = vld [vmem:[%s2400 + $0x48] sm:$0xff]
      %v2411 = vld [vmem:[%s2400 + $0x50] sm:$0xff]
      %v2412 = vld [vmem:[%s2400 + $0x58] sm:$0xff]
      %v2413 = vld [vmem:[%s2400 + $0x60] sm:$0xff]
      %v2414 = vld [vmem:[%s2400 + $0x68] sm:$0xff]
      %v2415 = vld [vmem:[%s2400 + $0x70] sm:$0xff]
      %v2416 = vld [vmem:[%s2400 + $0x78] sm:$0xff]
      %v2417 = vld [vmem:[%s2400 + $0x80] sm:$0xff]
      %v2418 = vld [vmem:[%s2400 + $0x88] sm:$0xff]
      %v2419 = vld [vmem:[%s2400 + $0x90] sm:$0xff]
      %v2420 = vld [vmem:[%s2400 + $0x98] sm:$0xff]
      %v2421 = vld [vmem:[%s2400 + $0xa0] sm:$0xff]
      %v2422 = vld [vmem:[%s2400 + $0xa8] sm:$0xff]
      %v2423 = vld [vmem:[%s2400 + $0xb0] sm:$0xff]
      %v2424 = vld [vmem:[%s2400 + $0xb8] sm:$0xff]
      %v2425 = vld [vmem:[%s2400 + $0xc0] sm:$0xff]
      %v2426 = vld [vmem:[%s2400 + $0xc8] sm:$0xff]
      %v2427 = vld [vmem:[%s2400 + $0xd0] sm:$0xff]
      %v2428 = vld [vmem:[%s2400 + $0xd8] sm:$0xff]
      %v2429 = vld [vmem:[%s2400 + $0xe0] sm:$0xff]
      %v2430 = vld [vmem:[%s2400 + $0xe8] sm:$0xff]
      %v2431 = vld [vmem:[%s2400 + $0xf0] sm:$0xff]
      %v2432 = vld [vmem:[%s2400 + $0xf8] sm:$0xff]
      %v2433 = vld [vmem:[%s2400 + $0x100] sm:$0xff]
      %v2434 = vld [vmem:[%s2400 + $0x108] sm:$0xff]
      %v2435 = vld [vmem:[%s2400 + $0x110] sm:$0xff]
      %v2436 = vld [vmem:[%s2400 + $0x118] sm:$0xff]
      %v2437 = vld [vmem:[%s2400 + $0x120] sm:$0xff]
      %v2438 = vld [vmem:[%s2400 + $0x128] sm:$0xff]
      %v2439 = vld [vmem:[%s2400 + $0x130] sm:$0xff]
      %v2440 = vld [vmem:[%s2400 + $0x138] sm:$0xff]
      %v2441 = vld [vmem:[%s2400 + $0x140] sm:$0xff]
      %v2442 = vld [vmem:[%s2400 + $0x148] sm:$0xff]
      %v2443 = vld [vmem:[%s2400 + $0x150] sm:$0xff]
      %v2444 = vld [vmem:[%s2400 + $0x158] sm:$0xff]
      %v2445 = vld [vmem:[%s2400 + $0x160] sm:$0xff]
      %v2446 = vld [vmem:[%s2400 + $0x168] sm:$0xff]
      %v2447 = vld [vmem:[%s2400 + $0x170] sm:$0xff]
      %v2448 = vld [vmem:[%s2400 + $0x178] sm:$0xff]
      %v2449 = vld [vmem:[%s2400 + $0x180] sm:$0xff]
      %v2450 = vld [vmem:[%s2400 + $0x188] sm:$0xff]
      %v2451 = vld [vmem:[%s2400 + $0x190] sm:$0xff]
      %v2452 = vld [vmem:[%s2400 + $0x198] sm:$0xff]
      %v2453 = vld [vmem:[%s2400 + $0x1a0] sm:$0xff]
      %v2454 = vld [vmem:[%s2400 + $0x1a8] sm:$0xff]
      %v2455 = vld [vmem:[%s2400 + $0x1b0] sm:$0xff]
      %v2456 = vld [vmem:[%s2400 + $0x1b8] sm:$0xff]
      %v2457 = vld [vmem:[%s2400 + $0x1c0] sm:$0xff]
      %v2458 = vld [vmem:[%s2400 + $0x1c8] sm:$0xff]
      %v2459 = vld [vmem:[%s2400 + $0x1d0] sm:$0xff]
      %v2460 = vld [vmem:[%s2400 + $0x1d8] sm:$0xff]
      %v2461 = vld [vmem:[%s2400 + $0x1e0] sm:$0xff]
      %v2462 = vld [vmem:[%s2400 + $0x1e8] sm:$0xff]
      %v2463 = vld [vmem:[%s2400 + $0x1f0] sm:$0xff]
      %v2464 = vld [vmem:[%s2400 + $0x1f8] sm:$0xff]
      %v2465 = vpack.c.bf16 %v2402, %v2401
      %v2466 = vpack.c.bf16 %v2404, %v2403
      %v2467 = vpack.c.bf16 %v2406, %v2405
      %v2468 = vpack.c.bf16 %v2408, %v2407
      %v2469 = vpack.c.bf16 %v2410, %v2409
      %v2470 = vpack.c.bf16 %v2412, %v2411
      %v2471 = vpack.c.bf16 %v2414, %v2413
      %v2472 = vpack.c.bf16 %v2416, %v2415
      %v2473 = vpack.c.bf16 %v2418, %v2417
      %v2474 = vpack.c.bf16 %v2420, %v2419
      %v2475 = vpack.c.bf16 %v2422, %v2421
      %v2476 = vpack.c.bf16 %v2424, %v2423
      %v2477 = vpack.c.bf16 %v2426, %v2425
      %v2478 = vpack.c.bf16 %v2428, %v2427
      %v2479 = vpack.c.bf16 %v2430, %v2429
      %v2480 = vpack.c.bf16 %v2432, %v2431
      %v2481 = vpack.c.bf16 %v2434, %v2433
      %v2482 = vpack.c.bf16 %v2436, %v2435
      %v2483 = vpack.c.bf16 %v2438, %v2437
      %v2484 = vpack.c.bf16 %v2440, %v2439
      %v2485 = vpack.c.bf16 %v2442, %v2441
      %v2486 = vpack.c.bf16 %v2444, %v2443
      %v2487 = vpack.c.bf16 %v2446, %v2445
      %v2488 = vpack.c.bf16 %v2448, %v2447
      %v2489 = vpack.c.bf16 %v2450, %v2449
      %v2490 = vpack.c.bf16 %v2452, %v2451
      %v2491 = vpack.c.bf16 %v2454, %v2453
      %v2492 = vpack.c.bf16 %v2456, %v2455
      %v2493 = vpack.c.bf16 %v2458, %v2457
      %v2494 = vpack.c.bf16 %v2460, %v2459
      %v2495 = vpack.c.bf16 %v2462, %v2461
      %v2496 = vpack.c.bf16 %v2464, %v2463
      %s2497 = scalar_lea.vmem %s1, 384
      %v2498 = vld [vmem:[%s2497] sm:$0xf]
      %v2499 = vld [vmem:[%s2497 + $0x4] sm:$0xf]
      %v2500 = vld [vmem:[%s2497 + $0x8] sm:$0xf]
      %v2501 = vld [vmem:[%s2497 + $0xc] sm:$0xf]
      %v2502 = vld [vmem:[%s2497 + $0x10] sm:$0xf]
      %v2503 = vld [vmem:[%s2497 + $0x14] sm:$0xf]
      %v2504 = vld [vmem:[%s2497 + $0x18] sm:$0xf]
      %v2505 = vld [vmem:[%s2497 + $0x1c] sm:$0xf]
      %v2506 = vld [vmem:[%s2497 + $0x20] sm:$0xf]
      %v2507 = vld [vmem:[%s2497 + $0x24] sm:$0xf]
      %v2508 = vld [vmem:[%s2497 + $0x28] sm:$0xf]
      %v2509 = vld [vmem:[%s2497 + $0x2c] sm:$0xf]
      %v2510 = vld [vmem:[%s2497 + $0x30] sm:$0xf]
      %v2511 = vld [vmem:[%s2497 + $0x34] sm:$0xf]
      %v2512 = vld [vmem:[%s2497 + $0x38] sm:$0xf]
      %v2513 = vld [vmem:[%s2497 + $0x3c] sm:$0xf]
      %v2530 = vunpack.c.l.b16 %v2498
      %v2531 = vunpack.c.l.b16 %v2499
      %v2532 = vunpack.c.l.b16 %v2500
      %v2533 = vunpack.c.l.b16 %v2501
      %v2534 = vunpack.c.l.b16 %v2502
      %v2535 = vunpack.c.l.b16 %v2503
      %v2536 = vunpack.c.l.b16 %v2504
      %v2537 = vunpack.c.l.b16 %v2505
      %v2538 = vunpack.c.l.b16 %v2506
      %v2539 = vunpack.c.l.b16 %v2507
      %v2540 = vunpack.c.l.b16 %v2508
      %v2541 = vunpack.c.l.b16 %v2509
      %v2542 = vunpack.c.l.b16 %v2510
      %v2543 = vunpack.c.l.b16 %v2511
      %v2544 = vunpack.c.l.b16 %v2512
      %v2545 = vunpack.c.l.b16 %v2513
      %v2546 = vpack.c.b16 %v2531, %v2530
      %v2547 = vpack.c.b16 %v2533, %v2532
      %v2548 = vpack.c.b16 %v2535, %v2534
      %v2549 = vpack.c.b16 %v2537, %v2536
      %v2550 = vpack.c.b16 %v2539, %v2538
      %v2551 = vpack.c.b16 %v2541, %v2540
      %v2552 = vpack.c.b16 %v2543, %v2542
      %v2553 = vpack.c.b16 %v2545, %v2544
      %2562 = vmatpush.bf16.msra.mxu0 %v2553
      %2563 = vmatpush.bf16.msra.mxu0 %v2552
      %2564 = vmatpush.bf16.msra.mxu0 %v2551
      %2565 = vmatpush.bf16.msra.mxu0 %v2550
      %2566 = vmatpush.bf16.msra.mxu0 %v2549
      %2567 = vmatpush.bf16.msra.mxu0 %v2548
      %2568 = vmatpush.bf16.msra.mxu0 %v2547
      %2569 = vmatpush.bf16.msra.mxu0 %v2546
      %2570 = vmatmul.bf16.gmra.mxu0 %v2465
      %v2571 = vpop.f32.mrf.mxu0
      %v2572 = vadd.f32 0.0, %v2571
      %v2573 = vpop.f32.mrf.mxu0
      %v2574 = vadd.f32 0.0, %v2573
      %2575 = vmatmul.bf16.gmra.mxu0 %v2466
      %v2576 = vpop.f32.mrf.mxu0
      %v2577 = vadd.f32 0.0, %v2576
      %v2578 = vpop.f32.mrf.mxu0
      %v2579 = vadd.f32 0.0, %v2578
      %2580 = vmatmul.bf16.gmra.mxu0 %v2467
      %v2581 = vpop.f32.mrf.mxu0
      %v2582 = vadd.f32 0.0, %v2581
      %v2583 = vpop.f32.mrf.mxu0
      %v2584 = vadd.f32 0.0, %v2583
      %2585 = vmatmul.bf16.gmra.mxu0 %v2468
      %v2586 = vpop.f32.mrf.mxu0
      %v2587 = vadd.f32 0.0, %v2586
      %v2588 = vpop.f32.mrf.mxu0
      %v2589 = vadd.f32 0.0, %v2588
      %2590 = vmatmul.bf16.gmra.mxu0 %v2469
      %v2591 = vpop.f32.mrf.mxu0
      %v2592 = vadd.f32 0.0, %v2591
      %v2593 = vpop.f32.mrf.mxu0
      %v2594 = vadd.f32 0.0, %v2593
      %2595 = vmatmul.bf16.gmra.mxu0 %v2470
      %v2596 = vpop.f32.mrf.mxu0
      %v2597 = vadd.f32 0.0, %v2596
      %v2598 = vpop.f32.mrf.mxu0
      %v2599 = vadd.f32 0.0, %v2598
      %2600 = vmatmul.bf16.gmra.mxu0 %v2471
      %v2601 = vpop.f32.mrf.mxu0
      %v2602 = vadd.f32 0.0, %v2601
      %v2603 = vpop.f32.mrf.mxu0
      %v2604 = vadd.f32 0.0, %v2603
      %2605 = vmatmul.bf16.gmra.mxu0 %v2472
      %v2606 = vpop.f32.mrf.mxu0
      %v2607 = vadd.f32 0.0, %v2606
      %v2608 = vpop.f32.mrf.mxu0
      %v2609 = vadd.f32 0.0, %v2608
      %2610 = vmatmul.bf16.gmra.mxu0 %v2473
      %v2611 = vpop.f32.mrf.mxu0
      %v2612 = vadd.f32 0.0, %v2611
      %v2613 = vpop.f32.mrf.mxu0
      %v2614 = vadd.f32 0.0, %v2613
      %2615 = vmatmul.bf16.gmra.mxu0 %v2474
      %v2616 = vpop.f32.mrf.mxu0
      %v2617 = vadd.f32 0.0, %v2616
      %v2618 = vpop.f32.mrf.mxu0
      %v2619 = vadd.f32 0.0, %v2618
      %2620 = vmatmul.bf16.gmra.mxu0 %v2475
      %v2621 = vpop.f32.mrf.mxu0
      %v2622 = vadd.f32 0.0, %v2621
      %v2623 = vpop.f32.mrf.mxu0
      %v2624 = vadd.f32 0.0, %v2623
      %2625 = vmatmul.bf16.gmra.mxu0 %v2476
      %v2626 = vpop.f32.mrf.mxu0
      %v2627 = vadd.f32 0.0, %v2626
      %v2628 = vpop.f32.mrf.mxu0
      %v2629 = vadd.f32 0.0, %v2628
      %2630 = vmatmul.bf16.gmra.mxu0 %v2477
      %v2631 = vpop.f32.mrf.mxu0
      %v2632 = vadd.f32 0.0, %v2631
      %v2633 = vpop.f32.mrf.mxu0
      %v2634 = vadd.f32 0.0, %v2633
      %2635 = vmatmul.bf16.gmra.mxu0 %v2478
      %v2636 = vpop.f32.mrf.mxu0
      %v2637 = vadd.f32 0.0, %v2636
      %v2638 = vpop.f32.mrf.mxu0
      %v2639 = vadd.f32 0.0, %v2638
      %2640 = vmatmul.bf16.gmra.mxu0 %v2479
      %v2641 = vpop.f32.mrf.mxu0
      %v2642 = vadd.f32 0.0, %v2641
      %v2643 = vpop.f32.mrf.mxu0
      %v2644 = vadd.f32 0.0, %v2643
      %2645 = vmatmul.bf16.gmra.mxu0 %v2480
      %v2646 = vpop.f32.mrf.mxu0
      %v2647 = vadd.f32 0.0, %v2646
      %v2648 = vpop.f32.mrf.mxu0
      %v2649 = vadd.f32 0.0, %v2648
      %2650 = vmatmul.bf16.gmra.mxu0 %v2481
      %v2651 = vpop.f32.mrf.mxu0
      %v2652 = vadd.f32 0.0, %v2651
      %v2653 = vpop.f32.mrf.mxu0
      %v2654 = vadd.f32 0.0, %v2653
      %2655 = vmatmul.bf16.gmra.mxu0 %v2482
      %v2656 = vpop.f32.mrf.mxu0
      %v2657 = vadd.f32 0.0, %v2656
      %v2658 = vpop.f32.mrf.mxu0
      %v2659 = vadd.f32 0.0, %v2658
      %2660 = vmatmul.bf16.gmra.mxu0 %v2483
      %v2661 = vpop.f32.mrf.mxu0
      %v2662 = vadd.f32 0.0, %v2661
      %v2663 = vpop.f32.mrf.mxu0
      %v2664 = vadd.f32 0.0, %v2663
      %2665 = vmatmul.bf16.gmra.mxu0 %v2484
      %v2666 = vpop.f32.mrf.mxu0
      %v2667 = vadd.f32 0.0, %v2666
      %v2668 = vpop.f32.mrf.mxu0
      %v2669 = vadd.f32 0.0, %v2668
      %2670 = vmatmul.bf16.gmra.mxu0 %v2485
      %v2671 = vpop.f32.mrf.mxu0
      %v2672 = vadd.f32 0.0, %v2671
      %v2673 = vpop.f32.mrf.mxu0
      %v2674 = vadd.f32 0.0, %v2673
      %2675 = vmatmul.bf16.gmra.mxu0 %v2486
      %v2676 = vpop.f32.mrf.mxu0
      %v2677 = vadd.f32 0.0, %v2676
      %v2678 = vpop.f32.mrf.mxu0
      %v2679 = vadd.f32 0.0, %v2678
      %2680 = vmatmul.bf16.gmra.mxu0 %v2487
      %v2681 = vpop.f32.mrf.mxu0
      %v2682 = vadd.f32 0.0, %v2681
      %v2683 = vpop.f32.mrf.mxu0
      %v2684 = vadd.f32 0.0, %v2683
      %2685 = vmatmul.bf16.gmra.mxu0 %v2488
      %v2686 = vpop.f32.mrf.mxu0
      %v2687 = vadd.f32 0.0, %v2686
      %v2688 = vpop.f32.mrf.mxu0
      %v2689 = vadd.f32 0.0, %v2688
      %2690 = vmatmul.bf16.gmra.mxu0 %v2489
      %v2691 = vpop.f32.mrf.mxu0
      %v2692 = vadd.f32 0.0, %v2691
      %v2693 = vpop.f32.mrf.mxu0
      %v2694 = vadd.f32 0.0, %v2693
      %2695 = vmatmul.bf16.gmra.mxu0 %v2490
      %v2696 = vpop.f32.mrf.mxu0
      %v2697 = vadd.f32 0.0, %v2696
      %v2698 = vpop.f32.mrf.mxu0
      %v2699 = vadd.f32 0.0, %v2698
      %2700 = vmatmul.bf16.gmra.mxu0 %v2491
      %v2701 = vpop.f32.mrf.mxu0
      %v2702 = vadd.f32 0.0, %v2701
      %v2703 = vpop.f32.mrf.mxu0
      %v2704 = vadd.f32 0.0, %v2703
      %2705 = vmatmul.bf16.gmra.mxu0 %v2492
      %v2706 = vpop.f32.mrf.mxu0
      %v2707 = vadd.f32 0.0, %v2706
      %v2708 = vpop.f32.mrf.mxu0
      %v2709 = vadd.f32 0.0, %v2708
      %2710 = vmatmul.bf16.gmra.mxu0 %v2493
      %v2711 = vpop.f32.mrf.mxu0
      %v2712 = vadd.f32 0.0, %v2711
      %v2713 = vpop.f32.mrf.mxu0
      %v2714 = vadd.f32 0.0, %v2713
      %2715 = vmatmul.bf16.gmra.mxu0 %v2494
      %v2716 = vpop.f32.mrf.mxu0
      %v2717 = vadd.f32 0.0, %v2716
      %v2718 = vpop.f32.mrf.mxu0
      %v2719 = vadd.f32 0.0, %v2718
      %2720 = vmatmul.bf16.gmra.mxu0 %v2495
      %v2721 = vpop.f32.mrf.mxu0
      %v2722 = vadd.f32 0.0, %v2721
      %v2723 = vpop.f32.mrf.mxu0
      %v2724 = vadd.f32 0.0, %v2723
      %2725 = vmatmul.bf16.gmra.mxu0 %v2496
      %v2726 = vpop.f32.mrf.mxu0
      %v2727 = vadd.f32 0.0, %v2726
      %v2728 = vpop.f32.mrf.mxu0
      %v2729 = vadd.f32 0.0, %v2728
      %2730 = vdwg.mxu0
      %v2731 = vadd.f32 %v2335, %v2572
      %v2732 = vadd.f32 %v2336, %v2574
      %v2733 = vadd.f32 %v2337, %v2577
      %v2734 = vadd.f32 %v2338, %v2579
      %v2735 = vadd.f32 %v2339, %v2582
      %v2736 = vadd.f32 %v2340, %v2584
      %v2737 = vadd.f32 %v2341, %v2587
      %v2738 = vadd.f32 %v2342, %v2589
      %v2739 = vadd.f32 %v2343, %v2592
      %v2740 = vadd.f32 %v2344, %v2594
      %v2741 = vadd.f32 %v2345, %v2597
      %v2742 = vadd.f32 %v2346, %v2599
      %v2743 = vadd.f32 %v2347, %v2602
      %v2744 = vadd.f32 %v2348, %v2604
      %v2745 = vadd.f32 %v2349, %v2607
      %v2746 = vadd.f32 %v2350, %v2609
      %v2747 = vadd.f32 %v2351, %v2612
      %v2748 = vadd.f32 %v2352, %v2614
      %v2749 = vadd.f32 %v2353, %v2617
      %v2750 = vadd.f32 %v2354, %v2619
      %v2751 = vadd.f32 %v2355, %v2622
      %v2752 = vadd.f32 %v2356, %v2624
      %v2753 = vadd.f32 %v2357, %v2627
      %v2754 = vadd.f32 %v2358, %v2629
      %v2755 = vadd.f32 %v2359, %v2632
      %v2756 = vadd.f32 %v2360, %v2634
      %v2757 = vadd.f32 %v2361, %v2637
      %v2758 = vadd.f32 %v2362, %v2639
      %v2759 = vadd.f32 %v2363, %v2642
      %v2760 = vadd.f32 %v2364, %v2644
      %v2761 = vadd.f32 %v2365, %v2647
      %v2762 = vadd.f32 %v2366, %v2649
      %v2763 = vadd.f32 %v2367, %v2652
      %v2764 = vadd.f32 %v2368, %v2654
      %v2765 = vadd.f32 %v2369, %v2657
      %v2766 = vadd.f32 %v2370, %v2659
      %v2767 = vadd.f32 %v2371, %v2662
      %v2768 = vadd.f32 %v2372, %v2664
      %v2769 = vadd.f32 %v2373, %v2667
      %v2770 = vadd.f32 %v2374, %v2669
      %v2771 = vadd.f32 %v2375, %v2672
      %v2772 = vadd.f32 %v2376, %v2674
      %v2773 = vadd.f32 %v2377, %v2677
      %v2774 = vadd.f32 %v2378, %v2679
      %v2775 = vadd.f32 %v2379, %v2682
      %v2776 = vadd.f32 %v2380, %v2684
      %v2777 = vadd.f32 %v2381, %v2687
      %v2778 = vadd.f32 %v2382, %v2689
      %v2779 = vadd.f32 %v2383, %v2692
      %v2780 = vadd.f32 %v2384, %v2694
      %v2781 = vadd.f32 %v2385, %v2697
      %v2782 = vadd.f32 %v2386, %v2699
      %v2783 = vadd.f32 %v2387, %v2702
      %v2784 = vadd.f32 %v2388, %v2704
      %v2785 = vadd.f32 %v2389, %v2707
      %v2786 = vadd.f32 %v2390, %v2709
      %v2787 = vadd.f32 %v2391, %v2712
      %v2788 = vadd.f32 %v2392, %v2714
      %v2789 = vadd.f32 %v2393, %v2717
      %v2790 = vadd.f32 %v2394, %v2719
      %v2791 = vadd.f32 %v2395, %v2722
      %v2792 = vadd.f32 %v2396, %v2724
      %v2793 = vadd.f32 %v2397, %v2727
      %v2794 = vadd.f32 %v2398, %v2729
      %s2795 = sadd.s32 %s152, 37
      %s2796 = scalar_lea.vmem %s0, %s2795
      %v2797 = vld [vmem:[%s2796] sm:$0xff]
      %v2798 = vld [vmem:[%s2796 + $0x8] sm:$0xff]
      %v2799 = vld [vmem:[%s2796 + $0x10] sm:$0xff]
      %v2800 = vld [vmem:[%s2796 + $0x18] sm:$0xff]
      %v2801 = vld [vmem:[%s2796 + $0x20] sm:$0xff]
      %v2802 = vld [vmem:[%s2796 + $0x28] sm:$0xff]
      %v2803 = vld [vmem:[%s2796 + $0x30] sm:$0xff]
      %v2804 = vld [vmem:[%s2796 + $0x38] sm:$0xff]
      %v2805 = vld [vmem:[%s2796 + $0x40] sm:$0xff]
      %v2806 = vld [vmem:[%s2796 + $0x48] sm:$0xff]
      %v2807 = vld [vmem:[%s2796 + $0x50] sm:$0xff]
      %v2808 = vld [vmem:[%s2796 + $0x58] sm:$0xff]
      %v2809 = vld [vmem:[%s2796 + $0x60] sm:$0xff]
      %v2810 = vld [vmem:[%s2796 + $0x68] sm:$0xff]
      %v2811 = vld [vmem:[%s2796 + $0x70] sm:$0xff]
      %v2812 = vld [vmem:[%s2796 + $0x78] sm:$0xff]
      %v2813 = vld [vmem:[%s2796 + $0x80] sm:$0xff]
      %v2814 = vld [vmem:[%s2796 + $0x88] sm:$0xff]
      %v2815 = vld [vmem:[%s2796 + $0x90] sm:$0xff]
      %v2816 = vld [vmem:[%s2796 + $0x98] sm:$0xff]
      %v2817 = vld [vmem:[%s2796 + $0xa0] sm:$0xff]
      %v2818 = vld [vmem:[%s2796 + $0xa8] sm:$0xff]
      %v2819 = vld [vmem:[%s2796 + $0xb0] sm:$0xff]
      %v2820 = vld [vmem:[%s2796 + $0xb8] sm:$0xff]
      %v2821 = vld [vmem:[%s2796 + $0xc0] sm:$0xff]
      %v2822 = vld [vmem:[%s2796 + $0xc8] sm:$0xff]
      %v2823 = vld [vmem:[%s2796 + $0xd0] sm:$0xff]
      %v2824 = vld [vmem:[%s2796 + $0xd8] sm:$0xff]
      %v2825 = vld [vmem:[%s2796 + $0xe0] sm:$0xff]
      %v2826 = vld [vmem:[%s2796 + $0xe8] sm:$0xff]
      %v2827 = vld [vmem:[%s2796 + $0xf0] sm:$0xff]
      %v2828 = vld [vmem:[%s2796 + $0xf8] sm:$0xff]
      %v2829 = vld [vmem:[%s2796 + $0x100] sm:$0xff]
      %v2830 = vld [vmem:[%s2796 + $0x108] sm:$0xff]
      %v2831 = vld [vmem:[%s2796 + $0x110] sm:$0xff]
      %v2832 = vld [vmem:[%s2796 + $0x118] sm:$0xff]
      %v2833 = vld [vmem:[%s2796 + $0x120] sm:$0xff]
      %v2834 = vld [vmem:[%s2796 + $0x128] sm:$0xff]
      %v2835 = vld [vmem:[%s2796 + $0x130] sm:$0xff]
      %v2836 = vld [vmem:[%s2796 + $0x138] sm:$0xff]
      %v2837 = vld [vmem:[%s2796 + $0x140] sm:$0xff]
      %v2838 = vld [vmem:[%s2796 + $0x148] sm:$0xff]
      %v2839 = vld [vmem:[%s2796 + $0x150] sm:$0xff]
      %v2840 = vld [vmem:[%s2796 + $0x158] sm:$0xff]
      %v2841 = vld [vmem:[%s2796 + $0x160] sm:$0xff]
      %v2842 = vld [vmem:[%s2796 + $0x168] sm:$0xff]
      %v2843 = vld [vmem:[%s2796 + $0x170] sm:$0xff]
      %v2844 = vld [vmem:[%s2796 + $0x178] sm:$0xff]
      %v2845 = vld [vmem:[%s2796 + $0x180] sm:$0xff]
      %v2846 = vld [vmem:[%s2796 + $0x188] sm:$0xff]
      %v2847 = vld [vmem:[%s2796 + $0x190] sm:$0xff]
      %v2848 = vld [vmem:[%s2796 + $0x198] sm:$0xff]
      %v2849 = vld [vmem:[%s2796 + $0x1a0] sm:$0xff]
      %v2850 = vld [vmem:[%s2796 + $0x1a8] sm:$0xff]
      %v2851 = vld [vmem:[%s2796 + $0x1b0] sm:$0xff]
      %v2852 = vld [vmem:[%s2796 + $0x1b8] sm:$0xff]
      %v2853 = vld [vmem:[%s2796 + $0x1c0] sm:$0xff]
      %v2854 = vld [vmem:[%s2796 + $0x1c8] sm:$0xff]
      %v2855 = vld [vmem:[%s2796 + $0x1d0] sm:$0xff]
      %v2856 = vld [vmem:[%s2796 + $0x1d8] sm:$0xff]
      %v2857 = vld [vmem:[%s2796 + $0x1e0] sm:$0xff]
      %v2858 = vld [vmem:[%s2796 + $0x1e8] sm:$0xff]
      %v2859 = vld [vmem:[%s2796 + $0x1f0] sm:$0xff]
      %v2860 = vld [vmem:[%s2796 + $0x1f8] sm:$0xff]
      %v2861 = vpack.c.bf16 %v2798, %v2797
      %v2862 = vpack.c.bf16 %v2800, %v2799
      %v2863 = vpack.c.bf16 %v2802, %v2801
      %v2864 = vpack.c.bf16 %v2804, %v2803
      %v2865 = vpack.c.bf16 %v2806, %v2805
      %v2866 = vpack.c.bf16 %v2808, %v2807
      %v2867 = vpack.c.bf16 %v2810, %v2809
      %v2868 = vpack.c.bf16 %v2812, %v2811
      %v2869 = vpack.c.bf16 %v2814, %v2813
      %v2870 = vpack.c.bf16 %v2816, %v2815
      %v2871 = vpack.c.bf16 %v2818, %v2817
      %v2872 = vpack.c.bf16 %v2820, %v2819
      %v2873 = vpack.c.bf16 %v2822, %v2821
      %v2874 = vpack.c.bf16 %v2824, %v2823
      %v2875 = vpack.c.bf16 %v2826, %v2825
      %v2876 = vpack.c.bf16 %v2828, %v2827
      %v2877 = vpack.c.bf16 %v2830, %v2829
      %v2878 = vpack.c.bf16 %v2832, %v2831
      %v2879 = vpack.c.bf16 %v2834, %v2833
      %v2880 = vpack.c.bf16 %v2836, %v2835
      %v2881 = vpack.c.bf16 %v2838, %v2837
      %v2882 = vpack.c.bf16 %v2840, %v2839
      %v2883 = vpack.c.bf16 %v2842, %v2841
      %v2884 = vpack.c.bf16 %v2844, %v2843
      %v2885 = vpack.c.bf16 %v2846, %v2845
      %v2886 = vpack.c.bf16 %v2848, %v2847
      %v2887 = vpack.c.bf16 %v2850, %v2849
      %v2888 = vpack.c.bf16 %v2852, %v2851
      %v2889 = vpack.c.bf16 %v2854, %v2853
      %v2890 = vpack.c.bf16 %v2856, %v2855
      %v2891 = vpack.c.bf16 %v2858, %v2857
      %v2892 = vpack.c.bf16 %v2860, %v2859
      %s2893 = scalar_lea.vmem %s1, 448
      %v2894 = vld [vmem:[%s2893] sm:$0xf]
      %v2895 = vld [vmem:[%s2893 + $0x4] sm:$0xf]
      %v2896 = vld [vmem:[%s2893 + $0x8] sm:$0xf]
      %v2897 = vld [vmem:[%s2893 + $0xc] sm:$0xf]
      %v2898 = vld [vmem:[%s2893 + $0x10] sm:$0xf]
      %v2899 = vld [vmem:[%s2893 + $0x14] sm:$0xf]
      %v2900 = vld [vmem:[%s2893 + $0x18] sm:$0xf]
      %v2901 = vld [vmem:[%s2893 + $0x1c] sm:$0xf]
      %v2902 = vld [vmem:[%s2893 + $0x20] sm:$0xf]
      %v2903 = vld [vmem:[%s2893 + $0x24] sm:$0xf]
      %v2904 = vld [vmem:[%s2893 + $0x28] sm:$0xf]
      %v2905 = vld [vmem:[%s2893 + $0x2c] sm:$0xf]
      %v2906 = vld [vmem:[%s2893 + $0x30] sm:$0xf]
      %v2907 = vld [vmem:[%s2893 + $0x34] sm:$0xf]
      %v2908 = vld [vmem:[%s2893 + $0x38] sm:$0xf]
      %v2909 = vld [vmem:[%s2893 + $0x3c] sm:$0xf]
      %v2926 = vunpack.c.l.b16 %v2894
      %v2927 = vunpack.c.l.b16 %v2895
      %v2928 = vunpack.c.l.b16 %v2896
      %v2929 = vunpack.c.l.b16 %v2897
      %v2930 = vunpack.c.l.b16 %v2898
      %v2931 = vunpack.c.l.b16 %v2899
      %v2932 = vunpack.c.l.b16 %v2900
      %v2933 = vunpack.c.l.b16 %v2901
      %v2934 = vunpack.c.l.b16 %v2902
      %v2935 = vunpack.c.l.b16 %v2903
      %v2936 = vunpack.c.l.b16 %v2904
      %v2937 = vunpack.c.l.b16 %v2905
      %v2938 = vunpack.c.l.b16 %v2906
      %v2939 = vunpack.c.l.b16 %v2907
      %v2940 = vunpack.c.l.b16 %v2908
      %v2941 = vunpack.c.l.b16 %v2909
      %v2942 = vpack.c.b16 %v2927, %v2926
      %v2943 = vpack.c.b16 %v2929, %v2928
      %v2944 = vpack.c.b16 %v2931, %v2930
      %v2945 = vpack.c.b16 %v2933, %v2932
      %v2946 = vpack.c.b16 %v2935, %v2934
      %v2947 = vpack.c.b16 %v2937, %v2936
      %v2948 = vpack.c.b16 %v2939, %v2938
      %v2949 = vpack.c.b16 %v2941, %v2940
      %2958 = vmatpush.bf16.msra.mxu0 %v2949
      %2959 = vmatpush.bf16.msra.mxu0 %v2948
      %2960 = vmatpush.bf16.msra.mxu0 %v2947
      %2961 = vmatpush.bf16.msra.mxu0 %v2946
      %2962 = vmatpush.bf16.msra.mxu0 %v2945
      %2963 = vmatpush.bf16.msra.mxu0 %v2944
      %2964 = vmatpush.bf16.msra.mxu0 %v2943
      %2965 = vmatpush.bf16.msra.mxu0 %v2942
      %2966 = vmatmul.bf16.gmra.mxu0 %v2861
      %v2967 = vpop.f32.mrf.mxu0
      %v2968 = vadd.f32 0.0, %v2967
      %v2969 = vpop.f32.mrf.mxu0
      %v2970 = vadd.f32 0.0, %v2969
      %2971 = vmatmul.bf16.gmra.mxu0 %v2862
      %v2972 = vpop.f32.mrf.mxu0
      %v2973 = vadd.f32 0.0, %v2972
      %v2974 = vpop.f32.mrf.mxu0
      %v2975 = vadd.f32 0.0, %v2974
      %2976 = vmatmul.bf16.gmra.mxu0 %v2863
      %v2977 = vpop.f32.mrf.mxu0
      %v2978 = vadd.f32 0.0, %v2977
      %v2979 = vpop.f32.mrf.mxu0
      %v2980 = vadd.f32 0.0, %v2979
      %2981 = vmatmul.bf16.gmra.mxu0 %v2864
      %v2982 = vpop.f32.mrf.mxu0
      %v2983 = vadd.f32 0.0, %v2982
      %v2984 = vpop.f32.mrf.mxu0
      %v2985 = vadd.f32 0.0, %v2984
      %2986 = vmatmul.bf16.gmra.mxu0 %v2865
      %v2987 = vpop.f32.mrf.mxu0
      %v2988 = vadd.f32 0.0, %v2987
      %v2989 = vpop.f32.mrf.mxu0
      %v2990 = vadd.f32 0.0, %v2989
      %2991 = vmatmul.bf16.gmra.mxu0 %v2866
      %v2992 = vpop.f32.mrf.mxu0
      %v2993 = vadd.f32 0.0, %v2992
      %v2994 = vpop.f32.mrf.mxu0
      %v2995 = vadd.f32 0.0, %v2994
      %2996 = vmatmul.bf16.gmra.mxu0 %v2867
      %v2997 = vpop.f32.mrf.mxu0
      %v2998 = vadd.f32 0.0, %v2997
      %v2999 = vpop.f32.mrf.mxu0
      %v3000 = vadd.f32 0.0, %v2999
      %3001 = vmatmul.bf16.gmra.mxu0 %v2868
      %v3002 = vpop.f32.mrf.mxu0
      %v3003 = vadd.f32 0.0, %v3002
      %v3004 = vpop.f32.mrf.mxu0
      %v3005 = vadd.f32 0.0, %v3004
      %3006 = vmatmul.bf16.gmra.mxu0 %v2869
      %v3007 = vpop.f32.mrf.mxu0
      %v3008 = vadd.f32 0.0, %v3007
      %v3009 = vpop.f32.mrf.mxu0
      %v3010 = vadd.f32 0.0, %v3009
      %3011 = vmatmul.bf16.gmra.mxu0 %v2870
      %v3012 = vpop.f32.mrf.mxu0
      %v3013 = vadd.f32 0.0, %v3012
      %v3014 = vpop.f32.mrf.mxu0
      %v3015 = vadd.f32 0.0, %v3014
      %3016 = vmatmul.bf16.gmra.mxu0 %v2871
      %v3017 = vpop.f32.mrf.mxu0
      %v3018 = vadd.f32 0.0, %v3017
      %v3019 = vpop.f32.mrf.mxu0
      %v3020 = vadd.f32 0.0, %v3019
      %3021 = vmatmul.bf16.gmra.mxu0 %v2872
      %v3022 = vpop.f32.mrf.mxu0
      %v3023 = vadd.f32 0.0, %v3022
      %v3024 = vpop.f32.mrf.mxu0
      %v3025 = vadd.f32 0.0, %v3024
      %3026 = vmatmul.bf16.gmra.mxu0 %v2873
      %v3027 = vpop.f32.mrf.mxu0
      %v3028 = vadd.f32 0.0, %v3027
      %v3029 = vpop.f32.mrf.mxu0
      %v3030 = vadd.f32 0.0, %v3029
      %3031 = vmatmul.bf16.gmra.mxu0 %v2874
      %v3032 = vpop.f32.mrf.mxu0
      %v3033 = vadd.f32 0.0, %v3032
      %v3034 = vpop.f32.mrf.mxu0
      %v3035 = vadd.f32 0.0, %v3034
      %3036 = vmatmul.bf16.gmra.mxu0 %v2875
      %v3037 = vpop.f32.mrf.mxu0
      %v3038 = vadd.f32 0.0, %v3037
      %v3039 = vpop.f32.mrf.mxu0
      %v3040 = vadd.f32 0.0, %v3039
      %3041 = vmatmul.bf16.gmra.mxu0 %v2876
      %v3042 = vpop.f32.mrf.mxu0
      %v3043 = vadd.f32 0.0, %v3042
      %v3044 = vpop.f32.mrf.mxu0
      %v3045 = vadd.f32 0.0, %v3044
      %3046 = vmatmul.bf16.gmra.mxu0 %v2877
      %v3047 = vpop.f32.mrf.mxu0
      %v3048 = vadd.f32 0.0, %v3047
      %v3049 = vpop.f32.mrf.mxu0
      %v3050 = vadd.f32 0.0, %v3049
      %3051 = vmatmul.bf16.gmra.mxu0 %v2878
      %v3052 = vpop.f32.mrf.mxu0
      %v3053 = vadd.f32 0.0, %v3052
      %v3054 = vpop.f32.mrf.mxu0
      %v3055 = vadd.f32 0.0, %v3054
      %3056 = vmatmul.bf16.gmra.mxu0 %v2879
      %v3057 = vpop.f32.mrf.mxu0
      %v3058 = vadd.f32 0.0, %v3057
      %v3059 = vpop.f32.mrf.mxu0
      %v3060 = vadd.f32 0.0, %v3059
      %3061 = vmatmul.bf16.gmra.mxu0 %v2880
      %v3062 = vpop.f32.mrf.mxu0
      %v3063 = vadd.f32 0.0, %v3062
      %v3064 = vpop.f32.mrf.mxu0
      %v3065 = vadd.f32 0.0, %v3064
      %3066 = vmatmul.bf16.gmra.mxu0 %v2881
      %v3067 = vpop.f32.mrf.mxu0
      %v3068 = vadd.f32 0.0, %v3067
      %v3069 = vpop.f32.mrf.mxu0
      %v3070 = vadd.f32 0.0, %v3069
      %3071 = vmatmul.bf16.gmra.mxu0 %v2882
      %v3072 = vpop.f32.mrf.mxu0
      %v3073 = vadd.f32 0.0, %v3072
      %v3074 = vpop.f32.mrf.mxu0
      %v3075 = vadd.f32 0.0, %v3074
      %3076 = vmatmul.bf16.gmra.mxu0 %v2883
      %v3077 = vpop.f32.mrf.mxu0
      %v3078 = vadd.f32 0.0, %v3077
      %v3079 = vpop.f32.mrf.mxu0
      %v3080 = vadd.f32 0.0, %v3079
      %3081 = vmatmul.bf16.gmra.mxu0 %v2884
      %v3082 = vpop.f32.mrf.mxu0
      %v3083 = vadd.f32 0.0, %v3082
      %v3084 = vpop.f32.mrf.mxu0
      %v3085 = vadd.f32 0.0, %v3084
      %3086 = vmatmul.bf16.gmra.mxu0 %v2885
      %v3087 = vpop.f32.mrf.mxu0
      %v3088 = vadd.f32 0.0, %v3087
      %v3089 = vpop.f32.mrf.mxu0
      %v3090 = vadd.f32 0.0, %v3089
      %3091 = vmatmul.bf16.gmra.mxu0 %v2886
      %v3092 = vpop.f32.mrf.mxu0
      %v3093 = vadd.f32 0.0, %v3092
      %v3094 = vpop.f32.mrf.mxu0
      %v3095 = vadd.f32 0.0, %v3094
      %3096 = vmatmul.bf16.gmra.mxu0 %v2887
      %v3097 = vpop.f32.mrf.mxu0
      %v3098 = vadd.f32 0.0, %v3097
      %v3099 = vpop.f32.mrf.mxu0
      %v3100 = vadd.f32 0.0, %v3099
      %3101 = vmatmul.bf16.gmra.mxu0 %v2888
      %v3102 = vpop.f32.mrf.mxu0
      %v3103 = vadd.f32 0.0, %v3102
      %v3104 = vpop.f32.mrf.mxu0
      %v3105 = vadd.f32 0.0, %v3104
      %3106 = vmatmul.bf16.gmra.mxu0 %v2889
      %v3107 = vpop.f32.mrf.mxu0
      %v3108 = vadd.f32 0.0, %v3107
      %v3109 = vpop.f32.mrf.mxu0
      %v3110 = vadd.f32 0.0, %v3109
      %3111 = vmatmul.bf16.gmra.mxu0 %v2890
      %v3112 = vpop.f32.mrf.mxu0
      %v3113 = vadd.f32 0.0, %v3112
      %v3114 = vpop.f32.mrf.mxu0
      %v3115 = vadd.f32 0.0, %v3114
      %3116 = vmatmul.bf16.gmra.mxu0 %v2891
      %v3117 = vpop.f32.mrf.mxu0
      %v3118 = vadd.f32 0.0, %v3117
      %v3119 = vpop.f32.mrf.mxu0
      %v3120 = vadd.f32 0.0, %v3119
      %3121 = vmatmul.bf16.gmra.mxu0 %v2892
      %v3122 = vpop.f32.mrf.mxu0
      %v3123 = vadd.f32 0.0, %v3122
      %v3124 = vpop.f32.mrf.mxu0
      %v3125 = vadd.f32 0.0, %v3124
      %3126 = vdwg.mxu0
      %v3127 = vadd.f32 %v2731, %v2968
      %v3128 = vadd.f32 %v2732, %v2970
      %v3129 = vadd.f32 %v2733, %v2973
      %v3130 = vadd.f32 %v2734, %v2975
      %v3131 = vadd.f32 %v2735, %v2978
      %v3132 = vadd.f32 %v2736, %v2980
      %v3133 = vadd.f32 %v2737, %v2983
      %v3134 = vadd.f32 %v2738, %v2985
      %v3135 = vadd.f32 %v2739, %v2988
      %v3136 = vadd.f32 %v2740, %v2990
      %v3137 = vadd.f32 %v2741, %v2993
      %v3138 = vadd.f32 %v2742, %v2995
      %v3139 = vadd.f32 %v2743, %v2998
      %v3140 = vadd.f32 %v2744, %v3000
      %v3141 = vadd.f32 %v2745, %v3003
      %v3142 = vadd.f32 %v2746, %v3005
      %v3143 = vadd.f32 %v2747, %v3008
      %v3144 = vadd.f32 %v2748, %v3010
      %v3145 = vadd.f32 %v2749, %v3013
      %v3146 = vadd.f32 %v2750, %v3015
      %v3147 = vadd.f32 %v2751, %v3018
      %v3148 = vadd.f32 %v2752, %v3020
      %v3149 = vadd.f32 %v2753, %v3023
      %v3150 = vadd.f32 %v2754, %v3025
      %v3151 = vadd.f32 %v2755, %v3028
      %v3152 = vadd.f32 %v2756, %v3030
      %v3153 = vadd.f32 %v2757, %v3033
      %v3154 = vadd.f32 %v2758, %v3035
      %v3155 = vadd.f32 %v2759, %v3038
      %v3156 = vadd.f32 %v2760, %v3040
      %v3157 = vadd.f32 %v2761, %v3043
      %v3158 = vadd.f32 %v2762, %v3045
      %v3159 = vadd.f32 %v2763, %v3048
      %v3160 = vadd.f32 %v2764, %v3050
      %v3161 = vadd.f32 %v2765, %v3053
      %v3162 = vadd.f32 %v2766, %v3055
      %v3163 = vadd.f32 %v2767, %v3058
      %v3164 = vadd.f32 %v2768, %v3060
      %v3165 = vadd.f32 %v2769, %v3063
      %v3166 = vadd.f32 %v2770, %v3065
      %v3167 = vadd.f32 %v2771, %v3068
      %v3168 = vadd.f32 %v2772, %v3070
      %v3169 = vadd.f32 %v2773, %v3073
      %v3170 = vadd.f32 %v2774, %v3075
      %v3171 = vadd.f32 %v2775, %v3078
      %v3172 = vadd.f32 %v2776, %v3080
      %v3173 = vadd.f32 %v2777, %v3083
      %v3174 = vadd.f32 %v2778, %v3085
      %v3175 = vadd.f32 %v2779, %v3088
      %v3176 = vadd.f32 %v2780, %v3090
      %v3177 = vadd.f32 %v2781, %v3093
      %v3178 = vadd.f32 %v2782, %v3095
      %v3179 = vadd.f32 %v2783, %v3098
      %v3180 = vadd.f32 %v2784, %v3100
      %v3181 = vadd.f32 %v2785, %v3103
      %v3182 = vadd.f32 %v2786, %v3105
      %v3183 = vadd.f32 %v2787, %v3108
      %v3184 = vadd.f32 %v2788, %v3110
      %v3185 = vadd.f32 %v2789, %v3113
      %v3186 = vadd.f32 %v2790, %v3115
      %v3187 = vadd.f32 %v2791, %v3118
      %v3188 = vadd.f32 %v2792, %v3120
      %v3189 = vadd.f32 %v2793, %v3123
      %v3190 = vadd.f32 %v2794, %v3125
      %s3191 = sadd.s32 %s152, 38
      %s3192 = scalar_lea.vmem %s0, %s3191
      %v3193 = vld [vmem:[%s3192] sm:$0xff]
      %v3194 = vld [vmem:[%s3192 + $0x8] sm:$0xff]
      %v3195 = vld [vmem:[%s3192 + $0x10] sm:$0xff]
      %v3196 = vld [vmem:[%s3192 + $0x18] sm:$0xff]
      %v3197 = vld [vmem:[%s3192 + $0x20] sm:$0xff]
      %v3198 = vld [vmem:[%s3192 + $0x28] sm:$0xff]
      %v3199 = vld [vmem:[%s3192 + $0x30] sm:$0xff]
      %v3200 = vld [vmem:[%s3192 + $0x38] sm:$0xff]
      %v3201 = vld [vmem:[%s3192 + $0x40] sm:$0xff]
      %v3202 = vld [vmem:[%s3192 + $0x48] sm:$0xff]
      %v3203 = vld [vmem:[%s3192 + $0x50] sm:$0xff]
      %v3204 = vld [vmem:[%s3192 + $0x58] sm:$0xff]
      %v3205 = vld [vmem:[%s3192 + $0x60] sm:$0xff]
      %v3206 = vld [vmem:[%s3192 + $0x68] sm:$0xff]
      %v3207 = vld [vmem:[%s3192 + $0x70] sm:$0xff]
      %v3208 = vld [vmem:[%s3192 + $0x78] sm:$0xff]
      %v3209 = vld [vmem:[%s3192 + $0x80] sm:$0xff]
      %v3210 = vld [vmem:[%s3192 + $0x88] sm:$0xff]
      %v3211 = vld [vmem:[%s3192 + $0x90] sm:$0xff]
      %v3212 = vld [vmem:[%s3192 + $0x98] sm:$0xff]
      %v3213 = vld [vmem:[%s3192 + $0xa0] sm:$0xff]
      %v3214 = vld [vmem:[%s3192 + $0xa8] sm:$0xff]
      %v3215 = vld [vmem:[%s3192 + $0xb0] sm:$0xff]
      %v3216 = vld [vmem:[%s3192 + $0xb8] sm:$0xff]
      %v3217 = vld [vmem:[%s3192 + $0xc0] sm:$0xff]
      %v3218 = vld [vmem:[%s3192 + $0xc8] sm:$0xff]
      %v3219 = vld [vmem:[%s3192 + $0xd0] sm:$0xff]
      %v3220 = vld [vmem:[%s3192 + $0xd8] sm:$0xff]
      %v3221 = vld [vmem:[%s3192 + $0xe0] sm:$0xff]
      %v3222 = vld [vmem:[%s3192 + $0xe8] sm:$0xff]
      %v3223 = vld [vmem:[%s3192 + $0xf0] sm:$0xff]
      %v3224 = vld [vmem:[%s3192 + $0xf8] sm:$0xff]
      %v3225 = vld [vmem:[%s3192 + $0x100] sm:$0xff]
      %v3226 = vld [vmem:[%s3192 + $0x108] sm:$0xff]
      %v3227 = vld [vmem:[%s3192 + $0x110] sm:$0xff]
      %v3228 = vld [vmem:[%s3192 + $0x118] sm:$0xff]
      %v3229 = vld [vmem:[%s3192 + $0x120] sm:$0xff]
      %v3230 = vld [vmem:[%s3192 + $0x128] sm:$0xff]
      %v3231 = vld [vmem:[%s3192 + $0x130] sm:$0xff]
      %v3232 = vld [vmem:[%s3192 + $0x138] sm:$0xff]
      %v3233 = vld [vmem:[%s3192 + $0x140] sm:$0xff]
      %v3234 = vld [vmem:[%s3192 + $0x148] sm:$0xff]
      %v3235 = vld [vmem:[%s3192 + $0x150] sm:$0xff]
      %v3236 = vld [vmem:[%s3192 + $0x158] sm:$0xff]
      %v3237 = vld [vmem:[%s3192 + $0x160] sm:$0xff]
      %v3238 = vld [vmem:[%s3192 + $0x168] sm:$0xff]
      %v3239 = vld [vmem:[%s3192 + $0x170] sm:$0xff]
      %v3240 = vld [vmem:[%s3192 + $0x178] sm:$0xff]
      %v3241 = vld [vmem:[%s3192 + $0x180] sm:$0xff]
      %v3242 = vld [vmem:[%s3192 + $0x188] sm:$0xff]
      %v3243 = vld [vmem:[%s3192 + $0x190] sm:$0xff]
      %v3244 = vld [vmem:[%s3192 + $0x198] sm:$0xff]
      %v3245 = vld [vmem:[%s3192 + $0x1a0] sm:$0xff]
      %v3246 = vld [vmem:[%s3192 + $0x1a8] sm:$0xff]
      %v3247 = vld [vmem:[%s3192 + $0x1b0] sm:$0xff]
      %v3248 = vld [vmem:[%s3192 + $0x1b8] sm:$0xff]
      %v3249 = vld [vmem:[%s3192 + $0x1c0] sm:$0xff]
      %v3250 = vld [vmem:[%s3192 + $0x1c8] sm:$0xff]
      %v3251 = vld [vmem:[%s3192 + $0x1d0] sm:$0xff]
      %v3252 = vld [vmem:[%s3192 + $0x1d8] sm:$0xff]
      %v3253 = vld [vmem:[%s3192 + $0x1e0] sm:$0xff]
      %v3254 = vld [vmem:[%s3192 + $0x1e8] sm:$0xff]
      %v3255 = vld [vmem:[%s3192 + $0x1f0] sm:$0xff]
      %v3256 = vld [vmem:[%s3192 + $0x1f8] sm:$0xff]
      %v3257 = vpack.c.bf16 %v3194, %v3193
      %v3258 = vpack.c.bf16 %v3196, %v3195
      %v3259 = vpack.c.bf16 %v3198, %v3197
      %v3260 = vpack.c.bf16 %v3200, %v3199
      %v3261 = vpack.c.bf16 %v3202, %v3201
      %v3262 = vpack.c.bf16 %v3204, %v3203
      %v3263 = vpack.c.bf16 %v3206, %v3205
      %v3264 = vpack.c.bf16 %v3208, %v3207
      %v3265 = vpack.c.bf16 %v3210, %v3209
      %v3266 = vpack.c.bf16 %v3212, %v3211
      %v3267 = vpack.c.bf16 %v3214, %v3213
      %v3268 = vpack.c.bf16 %v3216, %v3215
      %v3269 = vpack.c.bf16 %v3218, %v3217
      %v3270 = vpack.c.bf16 %v3220, %v3219
      %v3271 = vpack.c.bf16 %v3222, %v3221
      %v3272 = vpack.c.bf16 %v3224, %v3223
      %v3273 = vpack.c.bf16 %v3226, %v3225
      %v3274 = vpack.c.bf16 %v3228, %v3227
      %v3275 = vpack.c.bf16 %v3230, %v3229
      %v3276 = vpack.c.bf16 %v3232, %v3231
      %v3277 = vpack.c.bf16 %v3234, %v3233
      %v3278 = vpack.c.bf16 %v3236, %v3235
      %v3279 = vpack.c.bf16 %v3238, %v3237
      %v3280 = vpack.c.bf16 %v3240, %v3239
      %v3281 = vpack.c.bf16 %v3242, %v3241
      %v3282 = vpack.c.bf16 %v3244, %v3243
      %v3283 = vpack.c.bf16 %v3246, %v3245
      %v3284 = vpack.c.bf16 %v3248, %v3247
      %v3285 = vpack.c.bf16 %v3250, %v3249
      %v3286 = vpack.c.bf16 %v3252, %v3251
      %v3287 = vpack.c.bf16 %v3254, %v3253
      %v3288 = vpack.c.bf16 %v3256, %v3255
      %s3289 = scalar_lea.vmem %s1, 512
      %v3290 = vld [vmem:[%s3289] sm:$0xf]
      %v3291 = vld [vmem:[%s3289 + $0x4] sm:$0xf]
      %v3292 = vld [vmem:[%s3289 + $0x8] sm:$0xf]
      %v3293 = vld [vmem:[%s3289 + $0xc] sm:$0xf]
      %v3294 = vld [vmem:[%s3289 + $0x10] sm:$0xf]
      %v3295 = vld [vmem:[%s3289 + $0x14] sm:$0xf]
      %v3296 = vld [vmem:[%s3289 + $0x18] sm:$0xf]
      %v3297 = vld [vmem:[%s3289 + $0x1c] sm:$0xf]
      %v3298 = vld [vmem:[%s3289 + $0x20] sm:$0xf]
      %v3299 = vld [vmem:[%s3289 + $0x24] sm:$0xf]
      %v3300 = vld [vmem:[%s3289 + $0x28] sm:$0xf]
      %v3301 = vld [vmem:[%s3289 + $0x2c] sm:$0xf]
      %v3302 = vld [vmem:[%s3289 + $0x30] sm:$0xf]
      %v3303 = vld [vmem:[%s3289 + $0x34] sm:$0xf]
      %v3304 = vld [vmem:[%s3289 + $0x38] sm:$0xf]
      %v3305 = vld [vmem:[%s3289 + $0x3c] sm:$0xf]
      %v3322 = vunpack.c.l.b16 %v3290
      %v3323 = vunpack.c.l.b16 %v3291
      %v3324 = vunpack.c.l.b16 %v3292
      %v3325 = vunpack.c.l.b16 %v3293
      %v3326 = vunpack.c.l.b16 %v3294
      %v3327 = vunpack.c.l.b16 %v3295
      %v3328 = vunpack.c.l.b16 %v3296
      %v3329 = vunpack.c.l.b16 %v3297
      %v3330 = vunpack.c.l.b16 %v3298
      %v3331 = vunpack.c.l.b16 %v3299
      %v3332 = vunpack.c.l.b16 %v3300
      %v3333 = vunpack.c.l.b16 %v3301
      %v3334 = vunpack.c.l.b16 %v3302
      %v3335 = vunpack.c.l.b16 %v3303
      %v3336 = vunpack.c.l.b16 %v3304
      %v3337 = vunpack.c.l.b16 %v3305
      %v3338 = vpack.c.b16 %v3323, %v3322
      %v3339 = vpack.c.b16 %v3325, %v3324
      %v3340 = vpack.c.b16 %v3327, %v3326
      %v3341 = vpack.c.b16 %v3329, %v3328
      %v3342 = vpack.c.b16 %v3331, %v3330
      %v3343 = vpack.c.b16 %v3333, %v3332
      %v3344 = vpack.c.b16 %v3335, %v3334
      %v3345 = vpack.c.b16 %v3337, %v3336
      %3354 = vmatpush.bf16.msra.mxu0 %v3345
      %3355 = vmatpush.bf16.msra.mxu0 %v3344
      %3356 = vmatpush.bf16.msra.mxu0 %v3343
      %3357 = vmatpush.bf16.msra.mxu0 %v3342
      %3358 = vmatpush.bf16.msra.mxu0 %v3341
      %3359 = vmatpush.bf16.msra.mxu0 %v3340
      %3360 = vmatpush.bf16.msra.mxu0 %v3339
      %3361 = vmatpush.bf16.msra.mxu0 %v3338
      %3362 = vmatmul.bf16.gmra.mxu0 %v3257
      %v3363 = vpop.f32.mrf.mxu0
      %v3364 = vadd.f32 0.0, %v3363
      %v3365 = vpop.f32.mrf.mxu0
      %v3366 = vadd.f32 0.0, %v3365
      %3367 = vmatmul.bf16.gmra.mxu0 %v3258
      %v3368 = vpop.f32.mrf.mxu0
      %v3369 = vadd.f32 0.0, %v3368
      %v3370 = vpop.f32.mrf.mxu0
      %v3371 = vadd.f32 0.0, %v3370
      %3372 = vmatmul.bf16.gmra.mxu0 %v3259
      %v3373 = vpop.f32.mrf.mxu0
      %v3374 = vadd.f32 0.0, %v3373
      %v3375 = vpop.f32.mrf.mxu0
      %v3376 = vadd.f32 0.0, %v3375
      %3377 = vmatmul.bf16.gmra.mxu0 %v3260
      %v3378 = vpop.f32.mrf.mxu0
      %v3379 = vadd.f32 0.0, %v3378
      %v3380 = vpop.f32.mrf.mxu0
      %v3381 = vadd.f32 0.0, %v3380
      %3382 = vmatmul.bf16.gmra.mxu0 %v3261
      %v3383 = vpop.f32.mrf.mxu0
      %v3384 = vadd.f32 0.0, %v3383
      %v3385 = vpop.f32.mrf.mxu0
      %v3386 = vadd.f32 0.0, %v3385
      %3387 = vmatmul.bf16.gmra.mxu0 %v3262
      %v3388 = vpop.f32.mrf.mxu0
      %v3389 = vadd.f32 0.0, %v3388
      %v3390 = vpop.f32.mrf.mxu0
      %v3391 = vadd.f32 0.0, %v3390
      %3392 = vmatmul.bf16.gmra.mxu0 %v3263
      %v3393 = vpop.f32.mrf.mxu0
      %v3394 = vadd.f32 0.0, %v3393
      %v3395 = vpop.f32.mrf.mxu0
      %v3396 = vadd.f32 0.0, %v3395
      %3397 = vmatmul.bf16.gmra.mxu0 %v3264
      %v3398 = vpop.f32.mrf.mxu0
      %v3399 = vadd.f32 0.0, %v3398
      %v3400 = vpop.f32.mrf.mxu0
      %v3401 = vadd.f32 0.0, %v3400
      %3402 = vmatmul.bf16.gmra.mxu0 %v3265
      %v3403 = vpop.f32.mrf.mxu0
      %v3404 = vadd.f32 0.0, %v3403
      %v3405 = vpop.f32.mrf.mxu0
      %v3406 = vadd.f32 0.0, %v3405
      %3407 = vmatmul.bf16.gmra.mxu0 %v3266
      %v3408 = vpop.f32.mrf.mxu0
      %v3409 = vadd.f32 0.0, %v3408
      %v3410 = vpop.f32.mrf.mxu0
      %v3411 = vadd.f32 0.0, %v3410
      %3412 = vmatmul.bf16.gmra.mxu0 %v3267
      %v3413 = vpop.f32.mrf.mxu0
      %v3414 = vadd.f32 0.0, %v3413
      %v3415 = vpop.f32.mrf.mxu0
      %v3416 = vadd.f32 0.0, %v3415
      %3417 = vmatmul.bf16.gmra.mxu0 %v3268
      %v3418 = vpop.f32.mrf.mxu0
      %v3419 = vadd.f32 0.0, %v3418
      %v3420 = vpop.f32.mrf.mxu0
      %v3421 = vadd.f32 0.0, %v3420
      %3422 = vmatmul.bf16.gmra.mxu0 %v3269
      %v3423 = vpop.f32.mrf.mxu0
      %v3424 = vadd.f32 0.0, %v3423
      %v3425 = vpop.f32.mrf.mxu0
      %v3426 = vadd.f32 0.0, %v3425
      %3427 = vmatmul.bf16.gmra.mxu0 %v3270
      %v3428 = vpop.f32.mrf.mxu0
      %v3429 = vadd.f32 0.0, %v3428
      %v3430 = vpop.f32.mrf.mxu0
      %v3431 = vadd.f32 0.0, %v3430
      %3432 = vmatmul.bf16.gmra.mxu0 %v3271
      %v3433 = vpop.f32.mrf.mxu0
      %v3434 = vadd.f32 0.0, %v3433
      %v3435 = vpop.f32.mrf.mxu0
      %v3436 = vadd.f32 0.0, %v3435
      %3437 = vmatmul.bf16.gmra.mxu0 %v3272
      %v3438 = vpop.f32.mrf.mxu0
      %v3439 = vadd.f32 0.0, %v3438
      %v3440 = vpop.f32.mrf.mxu0
      %v3441 = vadd.f32 0.0, %v3440
      %3442 = vmatmul.bf16.gmra.mxu0 %v3273
      %v3443 = vpop.f32.mrf.mxu0
      %v3444 = vadd.f32 0.0, %v3443
      %v3445 = vpop.f32.mrf.mxu0
      %v3446 = vadd.f32 0.0, %v3445
      %3447 = vmatmul.bf16.gmra.mxu0 %v3274
      %v3448 = vpop.f32.mrf.mxu0
      %v3449 = vadd.f32 0.0, %v3448
      %v3450 = vpop.f32.mrf.mxu0
      %v3451 = vadd.f32 0.0, %v3450
      %3452 = vmatmul.bf16.gmra.mxu0 %v3275
      %v3453 = vpop.f32.mrf.mxu0
      %v3454 = vadd.f32 0.0, %v3453
      %v3455 = vpop.f32.mrf.mxu0
      %v3456 = vadd.f32 0.0, %v3455
      %3457 = vmatmul.bf16.gmra.mxu0 %v3276
      %v3458 = vpop.f32.mrf.mxu0
      %v3459 = vadd.f32 0.0, %v3458
      %v3460 = vpop.f32.mrf.mxu0
      %v3461 = vadd.f32 0.0, %v3460
      %3462 = vmatmul.bf16.gmra.mxu0 %v3277
      %v3463 = vpop.f32.mrf.mxu0
      %v3464 = vadd.f32 0.0, %v3463
      %v3465 = vpop.f32.mrf.mxu0
      %v3466 = vadd.f32 0.0, %v3465
      %3467 = vmatmul.bf16.gmra.mxu0 %v3278
      %v3468 = vpop.f32.mrf.mxu0
      %v3469 = vadd.f32 0.0, %v3468
      %v3470 = vpop.f32.mrf.mxu0
      %v3471 = vadd.f32 0.0, %v3470
      %3472 = vmatmul.bf16.gmra.mxu0 %v3279
      %v3473 = vpop.f32.mrf.mxu0
      %v3474 = vadd.f32 0.0, %v3473
      %v3475 = vpop.f32.mrf.mxu0
      %v3476 = vadd.f32 0.0, %v3475
      %3477 = vmatmul.bf16.gmra.mxu0 %v3280
      %v3478 = vpop.f32.mrf.mxu0
      %v3479 = vadd.f32 0.0, %v3478
      %v3480 = vpop.f32.mrf.mxu0
      %v3481 = vadd.f32 0.0, %v3480
      %3482 = vmatmul.bf16.gmra.mxu0 %v3281
      %v3483 = vpop.f32.mrf.mxu0
      %v3484 = vadd.f32 0.0, %v3483
      %v3485 = vpop.f32.mrf.mxu0
      %v3486 = vadd.f32 0.0, %v3485
      %3487 = vmatmul.bf16.gmra.mxu0 %v3282
      %v3488 = vpop.f32.mrf.mxu0
      %v3489 = vadd.f32 0.0, %v3488
      %v3490 = vpop.f32.mrf.mxu0
      %v3491 = vadd.f32 0.0, %v3490
      %3492 = vmatmul.bf16.gmra.mxu0 %v3283
      %v3493 = vpop.f32.mrf.mxu0
      %v3494 = vadd.f32 0.0, %v3493
      %v3495 = vpop.f32.mrf.mxu0
      %v3496 = vadd.f32 0.0, %v3495
      %3497 = vmatmul.bf16.gmra.mxu0 %v3284
      %v3498 = vpop.f32.mrf.mxu0
      %v3499 = vadd.f32 0.0, %v3498
      %v3500 = vpop.f32.mrf.mxu0
      %v3501 = vadd.f32 0.0, %v3500
      %3502 = vmatmul.bf16.gmra.mxu0 %v3285
      %v3503 = vpop.f32.mrf.mxu0
      %v3504 = vadd.f32 0.0, %v3503
      %v3505 = vpop.f32.mrf.mxu0
      %v3506 = vadd.f32 0.0, %v3505
      %3507 = vmatmul.bf16.gmra.mxu0 %v3286
      %v3508 = vpop.f32.mrf.mxu0
      %v3509 = vadd.f32 0.0, %v3508
      %v3510 = vpop.f32.mrf.mxu0
      %v3511 = vadd.f32 0.0, %v3510
      %3512 = vmatmul.bf16.gmra.mxu0 %v3287
      %v3513 = vpop.f32.mrf.mxu0
      %v3514 = vadd.f32 0.0, %v3513
      %v3515 = vpop.f32.mrf.mxu0
      %v3516 = vadd.f32 0.0, %v3515
      %3517 = vmatmul.bf16.gmra.mxu0 %v3288
      %v3518 = vpop.f32.mrf.mxu0
      %v3519 = vadd.f32 0.0, %v3518
      %v3520 = vpop.f32.mrf.mxu0
      %v3521 = vadd.f32 0.0, %v3520
      %3522 = vdwg.mxu0
      %v3523 = vadd.f32 %v3127, %v3364
      %v3524 = vadd.f32 %v3128, %v3366
      %v3525 = vadd.f32 %v3129, %v3369
      %v3526 = vadd.f32 %v3130, %v3371
      %v3527 = vadd.f32 %v3131, %v3374
      %v3528 = vadd.f32 %v3132, %v3376
      %v3529 = vadd.f32 %v3133, %v3379
      %v3530 = vadd.f32 %v3134, %v3381
      %v3531 = vadd.f32 %v3135, %v3384
      %v3532 = vadd.f32 %v3136, %v3386
      %v3533 = vadd.f32 %v3137, %v3389
      %v3534 = vadd.f32 %v3138, %v3391
      %v3535 = vadd.f32 %v3139, %v3394
      %v3536 = vadd.f32 %v3140, %v3396
      %v3537 = vadd.f32 %v3141, %v3399
      %v3538 = vadd.f32 %v3142, %v3401
      %v3539 = vadd.f32 %v3143, %v3404
      %v3540 = vadd.f32 %v3144, %v3406
      %v3541 = vadd.f32 %v3145, %v3409
      %v3542 = vadd.f32 %v3146, %v3411
      %v3543 = vadd.f32 %v3147, %v3414
      %v3544 = vadd.f32 %v3148, %v3416
      %v3545 = vadd.f32 %v3149, %v3419
      %v3546 = vadd.f32 %v3150, %v3421
      %v3547 = vadd.f32 %v3151, %v3424
      %v3548 = vadd.f32 %v3152, %v3426
      %v3549 = vadd.f32 %v3153, %v3429
      %v3550 = vadd.f32 %v3154, %v3431
      %v3551 = vadd.f32 %v3155, %v3434
      %v3552 = vadd.f32 %v3156, %v3436
      %v3553 = vadd.f32 %v3157, %v3439
      %v3554 = vadd.f32 %v3158, %v3441
      %v3555 = vadd.f32 %v3159, %v3444
      %v3556 = vadd.f32 %v3160, %v3446
      %v3557 = vadd.f32 %v3161, %v3449
      %v3558 = vadd.f32 %v3162, %v3451
      %v3559 = vadd.f32 %v3163, %v3454
      %v3560 = vadd.f32 %v3164, %v3456
      %v3561 = vadd.f32 %v3165, %v3459
      %v3562 = vadd.f32 %v3166, %v3461
      %v3563 = vadd.f32 %v3167, %v3464
      %v3564 = vadd.f32 %v3168, %v3466
      %v3565 = vadd.f32 %v3169, %v3469
      %v3566 = vadd.f32 %v3170, %v3471
      %v3567 = vadd.f32 %v3171, %v3474
      %v3568 = vadd.f32 %v3172, %v3476
      %v3569 = vadd.f32 %v3173, %v3479
      %v3570 = vadd.f32 %v3174, %v3481
      %v3571 = vadd.f32 %v3175, %v3484
      %v3572 = vadd.f32 %v3176, %v3486
      %v3573 = vadd.f32 %v3177, %v3489
      %v3574 = vadd.f32 %v3178, %v3491
      %v3575 = vadd.f32 %v3179, %v3494
      %v3576 = vadd.f32 %v3180, %v3496
      %v3577 = vadd.f32 %v3181, %v3499
      %v3578 = vadd.f32 %v3182, %v3501
      %v3579 = vadd.f32 %v3183, %v3504
      %v3580 = vadd.f32 %v3184, %v3506
      %v3581 = vadd.f32 %v3185, %v3509
      %v3582 = vadd.f32 %v3186, %v3511
      %v3583 = vadd.f32 %v3187, %v3514
      %v3584 = vadd.f32 %v3188, %v3516
      %v3585 = vadd.f32 %v3189, %v3519
      %v3586 = vadd.f32 %v3190, %v3521
      %v3587 = vld [vmem:[%s2] sm:$0x1]
      %v3589 = vperm.slane %v3587, 0
      %v3591 = vadd.f32 %v3523, %v3589
      %v3592 = vadd.f32 %v3524, %v3589
      %v3593 = vadd.f32 %v3525, %v3589
      %v3594 = vadd.f32 %v3526, %v3589
      %v3595 = vadd.f32 %v3527, %v3589
      %v3596 = vadd.f32 %v3528, %v3589
      %v3597 = vadd.f32 %v3529, %v3589
      %v3598 = vadd.f32 %v3530, %v3589
      %v3599 = vadd.f32 %v3531, %v3589
      %v3600 = vadd.f32 %v3532, %v3589
      %v3601 = vadd.f32 %v3533, %v3589
      %v3602 = vadd.f32 %v3534, %v3589
      %v3603 = vadd.f32 %v3535, %v3589
      %v3604 = vadd.f32 %v3536, %v3589
      %v3605 = vadd.f32 %v3537, %v3589
      %v3606 = vadd.f32 %v3538, %v3589
      %v3607 = vadd.f32 %v3539, %v3589
      %v3608 = vadd.f32 %v3540, %v3589
      %v3609 = vadd.f32 %v3541, %v3589
      %v3610 = vadd.f32 %v3542, %v3589
      %v3611 = vadd.f32 %v3543, %v3589
      %v3612 = vadd.f32 %v3544, %v3589
      %v3613 = vadd.f32 %v3545, %v3589
      %v3614 = vadd.f32 %v3546, %v3589
      %v3615 = vadd.f32 %v3547, %v3589
      %v3616 = vadd.f32 %v3548, %v3589
      %v3617 = vadd.f32 %v3549, %v3589
      %v3618 = vadd.f32 %v3550, %v3589
      %v3619 = vadd.f32 %v3551, %v3589
      %v3620 = vadd.f32 %v3552, %v3589
      %v3621 = vadd.f32 %v3553, %v3589
      %v3622 = vadd.f32 %v3554, %v3589
      %v3623 = vadd.f32 %v3555, %v3589
      %v3624 = vadd.f32 %v3556, %v3589
      %v3625 = vadd.f32 %v3557, %v3589
      %v3626 = vadd.f32 %v3558, %v3589
      %v3627 = vadd.f32 %v3559, %v3589
      %v3628 = vadd.f32 %v3560, %v3589
      %v3629 = vadd.f32 %v3561, %v3589
      %v3630 = vadd.f32 %v3562, %v3589
      %v3631 = vadd.f32 %v3563, %v3589
      %v3632 = vadd.f32 %v3564, %v3589
      %v3633 = vadd.f32 %v3565, %v3589
      %v3634 = vadd.f32 %v3566, %v3589
      %v3635 = vadd.f32 %v3567, %v3589
      %v3636 = vadd.f32 %v3568, %v3589
      %v3637 = vadd.f32 %v3569, %v3589
      %v3638 = vadd.f32 %v3570, %v3589
      %v3639 = vadd.f32 %v3571, %v3589
      %v3640 = vadd.f32 %v3572, %v3589
      %v3641 = vadd.f32 %v3573, %v3589
      %v3642 = vadd.f32 %v3574, %v3589
      %v3643 = vadd.f32 %v3575, %v3589
      %v3644 = vadd.f32 %v3576, %v3589
      %v3645 = vadd.f32 %v3577, %v3589
      %v3646 = vadd.f32 %v3578, %v3589
      %v3647 = vadd.f32 %v3579, %v3589
      %v3648 = vadd.f32 %v3580, %v3589
      %v3649 = vadd.f32 %v3581, %v3589
      %v3650 = vadd.f32 %v3582, %v3589
      %v3651 = vadd.f32 %v3583, %v3589
      %v3652 = vadd.f32 %v3584, %v3589
      %v3653 = vadd.f32 %v3585, %v3589
      %v3654 = vadd.f32 %v3586, %v3589
      %v3655 = vmax.f32 %v3591, 0.0
      %v3656 = vmax.f32 %v3592, 0.0
      %v3657 = vmax.f32 %v3593, 0.0
      %v3658 = vmax.f32 %v3594, 0.0
      %v3659 = vmax.f32 %v3595, 0.0
      %v3660 = vmax.f32 %v3596, 0.0
      %v3661 = vmax.f32 %v3597, 0.0
      %v3662 = vmax.f32 %v3598, 0.0
      %v3663 = vmax.f32 %v3599, 0.0
      %v3664 = vmax.f32 %v3600, 0.0
      %v3665 = vmax.f32 %v3601, 0.0
      %v3666 = vmax.f32 %v3602, 0.0
      %v3667 = vmax.f32 %v3603, 0.0
      %v3668 = vmax.f32 %v3604, 0.0
      %v3669 = vmax.f32 %v3605, 0.0
      %v3670 = vmax.f32 %v3606, 0.0
      %v3671 = vmax.f32 %v3607, 0.0
      %v3672 = vmax.f32 %v3608, 0.0
      %v3673 = vmax.f32 %v3609, 0.0
      %v3674 = vmax.f32 %v3610, 0.0
      %v3675 = vmax.f32 %v3611, 0.0
      %v3676 = vmax.f32 %v3612, 0.0
      %v3677 = vmax.f32 %v3613, 0.0
      %v3678 = vmax.f32 %v3614, 0.0
      %v3679 = vmax.f32 %v3615, 0.0
      %v3680 = vmax.f32 %v3616, 0.0
      %v3681 = vmax.f32 %v3617, 0.0
      %v3682 = vmax.f32 %v3618, 0.0
      %v3683 = vmax.f32 %v3619, 0.0
      %v3684 = vmax.f32 %v3620, 0.0
      %v3685 = vmax.f32 %v3621, 0.0
      %v3686 = vmax.f32 %v3622, 0.0
      %v3687 = vmax.f32 %v3623, 0.0
      %v3688 = vmax.f32 %v3624, 0.0
      %v3689 = vmax.f32 %v3625, 0.0
      %v3690 = vmax.f32 %v3626, 0.0
      %v3691 = vmax.f32 %v3627, 0.0
      %v3692 = vmax.f32 %v3628, 0.0
      %v3693 = vmax.f32 %v3629, 0.0
      %v3694 = vmax.f32 %v3630, 0.0
      %v3695 = vmax.f32 %v3631, 0.0
      %v3696 = vmax.f32 %v3632, 0.0
      %v3697 = vmax.f32 %v3633, 0.0
      %v3698 = vmax.f32 %v3634, 0.0
      %v3699 = vmax.f32 %v3635, 0.0
      %v3700 = vmax.f32 %v3636, 0.0
      %v3701 = vmax.f32 %v3637, 0.0
      %v3702 = vmax.f32 %v3638, 0.0
      %v3703 = vmax.f32 %v3639, 0.0
      %v3704 = vmax.f32 %v3640, 0.0
      %v3705 = vmax.f32 %v3641, 0.0
      %v3706 = vmax.f32 %v3642, 0.0
      %v3707 = vmax.f32 %v3643, 0.0
      %v3708 = vmax.f32 %v3644, 0.0
      %v3709 = vmax.f32 %v3645, 0.0
      %v3710 = vmax.f32 %v3646, 0.0
      %v3711 = vmax.f32 %v3647, 0.0
      %v3712 = vmax.f32 %v3648, 0.0
      %v3713 = vmax.f32 %v3649, 0.0
      %v3714 = vmax.f32 %v3650, 0.0
      %v3715 = vmax.f32 %v3651, 0.0
      %v3716 = vmax.f32 %v3652, 0.0
      %v3717 = vmax.f32 %v3653, 0.0
      %v3718 = vmax.f32 %v3654, 0.0
      %v3719 = vadd.f32 %v3655, %v1609
      %v3720 = vadd.f32 %v3656, %v1610
      %v3721 = vadd.f32 %v3657, %v1611
      %v3722 = vadd.f32 %v3658, %v1612
      %v3723 = vadd.f32 %v3659, %v1613
      %v3724 = vadd.f32 %v3660, %v1614
      %v3725 = vadd.f32 %v3661, %v1615
      %v3726 = vadd.f32 %v3662, %v1616
      %v3727 = vadd.f32 %v3663, %v1617
      %v3728 = vadd.f32 %v3664, %v1618
      %v3729 = vadd.f32 %v3665, %v1619
      %v3730 = vadd.f32 %v3666, %v1620
      %v3731 = vadd.f32 %v3667, %v1621
      %v3732 = vadd.f32 %v3668, %v1622
      %v3733 = vadd.f32 %v3669, %v1623
      %v3734 = vadd.f32 %v3670, %v1624
      %v3735 = vadd.f32 %v3671, %v1625
      %v3736 = vadd.f32 %v3672, %v1626
      %v3737 = vadd.f32 %v3673, %v1627
      %v3738 = vadd.f32 %v3674, %v1628
      %v3739 = vadd.f32 %v3675, %v1629
      %v3740 = vadd.f32 %v3676, %v1630
      %v3741 = vadd.f32 %v3677, %v1631
      %v3742 = vadd.f32 %v3678, %v1632
      %v3743 = vadd.f32 %v3679, %v1633
      %v3744 = vadd.f32 %v3680, %v1634
      %v3745 = vadd.f32 %v3681, %v1635
      %v3746 = vadd.f32 %v3682, %v1636
      %v3747 = vadd.f32 %v3683, %v1637
      %v3748 = vadd.f32 %v3684, %v1638
      %v3749 = vadd.f32 %v3685, %v1639
      %v3750 = vadd.f32 %v3686, %v1640
      %v3751 = vadd.f32 %v3687, %v1641
      %v3752 = vadd.f32 %v3688, %v1642
      %v3753 = vadd.f32 %v3689, %v1643
      %v3754 = vadd.f32 %v3690, %v1644
      %v3755 = vadd.f32 %v3691, %v1645
      %v3756 = vadd.f32 %v3692, %v1646
      %v3757 = vadd.f32 %v3693, %v1647
      %v3758 = vadd.f32 %v3694, %v1648
      %v3759 = vadd.f32 %v3695, %v1649
      %v3760 = vadd.f32 %v3696, %v1650
      %v3761 = vadd.f32 %v3697, %v1651
      %v3762 = vadd.f32 %v3698, %v1652
      %v3763 = vadd.f32 %v3699, %v1653
      %v3764 = vadd.f32 %v3700, %v1654
      %v3765 = vadd.f32 %v3701, %v1655
      %v3766 = vadd.f32 %v3702, %v1656
      %v3767 = vadd.f32 %v3703, %v1657
      %v3768 = vadd.f32 %v3704, %v1658
      %v3769 = vadd.f32 %v3705, %v1659
      %v3770 = vadd.f32 %v3706, %v1660
      %v3771 = vadd.f32 %v3707, %v1661
      %v3772 = vadd.f32 %v3708, %v1662
      %v3773 = vadd.f32 %v3709, %v1663
      %v3774 = vadd.f32 %v3710, %v1664
      %v3775 = vadd.f32 %v3711, %v1665
      %v3776 = vadd.f32 %v3712, %v1666
      %v3777 = vadd.f32 %v3713, %v1667
      %v3778 = vadd.f32 %v3714, %v1668
      %v3779 = vadd.f32 %v3715, %v1669
      %v3780 = vadd.f32 %v3716, %v1670
      %v3781 = vadd.f32 %v3717, %v1671
      %v3782 = vadd.f32 %v3718, %v1672
      %3783 = vst [vmem:[%s150] sm:$0xff] %v3719
      %3784 = vst [vmem:[%s150 + $0x8] sm:$0xff] %v3720
      %3785 = vst [vmem:[%s150 + $0x10] sm:$0xff] %v3721
      %3786 = vst [vmem:[%s150 + $0x18] sm:$0xff] %v3722
      %3787 = vst [vmem:[%s150 + $0x20] sm:$0xff] %v3723
      %3788 = vst [vmem:[%s150 + $0x28] sm:$0xff] %v3724
      %3789 = vst [vmem:[%s150 + $0x30] sm:$0xff] %v3725
      %3790 = vst [vmem:[%s150 + $0x38] sm:$0xff] %v3726
      %3791 = vst [vmem:[%s150 + $0x40] sm:$0xff] %v3727
      %3792 = vst [vmem:[%s150 + $0x48] sm:$0xff] %v3728
      %3793 = vst [vmem:[%s150 + $0x50] sm:$0xff] %v3729
      %3794 = vst [vmem:[%s150 + $0x58] sm:$0xff] %v3730
      %3795 = vst [vmem:[%s150 + $0x60] sm:$0xff] %v3731
      %3796 = vst [vmem:[%s150 + $0x68] sm:$0xff] %v3732
      %3797 = vst [vmem:[%s150 + $0x70] sm:$0xff] %v3733
      %3798 = vst [vmem:[%s150 + $0x78] sm:$0xff] %v3734
      %3799 = vst [vmem:[%s150 + $0x80] sm:$0xff] %v3735
      %3800 = vst [vmem:[%s150 + $0x88] sm:$0xff] %v3736
      %3801 = vst [vmem:[%s150 + $0x90] sm:$0xff] %v3737
      %3802 = vst [vmem:[%s150 + $0x98] sm:$0xff] %v3738
      %3803 = vst [vmem:[%s150 + $0xa0] sm:$0xff] %v3739
      %3804 = vst [vmem:[%s150 + $0xa8] sm:$0xff] %v3740
      %3805 = vst [vmem:[%s150 + $0xb0] sm:$0xff] %v3741
      %3806 = vst [vmem:[%s150 + $0xb8] sm:$0xff] %v3742
      %3807 = vst [vmem:[%s150 + $0xc0] sm:$0xff] %v3743
      %3808 = vst [vmem:[%s150 + $0xc8] sm:$0xff] %v3744
      %3809 = vst [vmem:[%s150 + $0xd0] sm:$0xff] %v3745
      %3810 = vst [vmem:[%s150 + $0xd8] sm:$0xff] %v3746
      %3811 = vst [vmem:[%s150 + $0xe0] sm:$0xff] %v3747
      %3812 = vst [vmem:[%s150 + $0xe8] sm:$0xff] %v3748
      %3813 = vst [vmem:[%s150 + $0xf0] sm:$0xff] %v3749
      %3814 = vst [vmem:[%s150 + $0xf8] sm:$0xff] %v3750
      %3815 = vst [vmem:[%s150 + $0x100] sm:$0xff] %v3751
      %3816 = vst [vmem:[%s150 + $0x108] sm:$0xff] %v3752
      %3817 = vst [vmem:[%s150 + $0x110] sm:$0xff] %v3753
      %3818 = vst [vmem:[%s150 + $0x118] sm:$0xff] %v3754
      %3819 = vst [vmem:[%s150 + $0x120] sm:$0xff] %v3755
      %3820 = vst [vmem:[%s150 + $0x128] sm:$0xff] %v3756
      %3821 = vst [vmem:[%s150 + $0x130] sm:$0xff] %v3757
      %3822 = vst [vmem:[%s150 + $0x138] sm:$0xff] %v3758
      %3823 = vst [vmem:[%s150 + $0x140] sm:$0xff] %v3759
      %3824 = vst [vmem:[%s150 + $0x148] sm:$0xff] %v3760
      %3825 = vst [vmem:[%s150 + $0x150] sm:$0xff] %v3761
      %3826 = vst [vmem:[%s150 + $0x158] sm:$0xff] %v3762
      %3827 = vst [vmem:[%s150 + $0x160] sm:$0xff] %v3763
      %3828 = vst [vmem:[%s150 + $0x168] sm:$0xff] %v3764
      %3829 = vst [vmem:[%s150 + $0x170] sm:$0xff] %v3765
      %3830 = vst [vmem:[%s150 + $0x178] sm:$0xff] %v3766
      %3831 = vst [vmem:[%s150 + $0x180] sm:$0xff] %v3767
      %3832 = vst [vmem:[%s150 + $0x188] sm:$0xff] %v3768
      %3833 = vst [vmem:[%s150 + $0x190] sm:$0xff] %v3769
      %3834 = vst [vmem:[%s150 + $0x198] sm:$0xff] %v3770
      %3835 = vst [vmem:[%s150 + $0x1a0] sm:$0xff] %v3771
      %3836 = vst [vmem:[%s150 + $0x1a8] sm:$0xff] %v3772
      %3837 = vst [vmem:[%s150 + $0x1b0] sm:$0xff] %v3773
      %3838 = vst [vmem:[%s150 + $0x1b8] sm:$0xff] %v3774
      %3839 = vst [vmem:[%s150 + $0x1c0] sm:$0xff] %v3775
      %3840 = vst [vmem:[%s150 + $0x1c8] sm:$0xff] %v3776
      %3841 = vst [vmem:[%s150 + $0x1d0] sm:$0xff] %v3777
      %3842 = vst [vmem:[%s150 + $0x1d8] sm:$0xff] %v3778
      %3843 = vst [vmem:[%s150 + $0x1e0] sm:$0xff] %v3779
      %3844 = vst [vmem:[%s150 + $0x1e8] sm:$0xff] %v3780
      %3845 = vst [vmem:[%s150 + $0x1f0] sm:$0xff] %v3781
      %3846 = vst [vmem:[%s150 + $0x1f8] sm:$0xff] %v3782
      %s3847 = smul.u32 64, %s14
      %p3848 = scmp.lt.s32.totalorder %s3847, 127
      %s3849 = scalar_select %p3848, %s3847, 127
      %s3850 = smul.addr %s3849, 8
      %s3851 = scalar_lea.vmem %s3, %s3850
      // Predicated region
      $region33: #{rdb_conv_forward.1} parent=31 // pred_check
        %p3852 = pneg %p95
      $region34: #{rdb_conv_forward.1} parent=31 // pred_check_branch
        %3854 = sbr.rel (%p3852) target = $region36
      $region35: #{rdb_conv_forward.1} parent=31 // pred_region
        %s3855 = smul.u32 64, %s14
      $region36: #{rdb_conv_forward.1} parent=31 // pred_fallthru
        _
    $region32: #{rdb_conv_forward.1} parent=5 // pred_fallthru
      _
    %p3856 = scmp.le.s32.totalorder 2, %s9
    // Predicated region
    $region37: #{rdb_conv_forward.1} parent=5 // pred_check
      %p3857 = pneg %p3856
    $region38: #{rdb_conv_forward.1} parent=5 // pred_check_branch
      %3859 = sbr.rel (%p3857) target = $region40
    $region39: #{rdb_conv_forward.1} parent=5 // pred_region
      %s3860 = ssub.s32 %s9, 2
      // Predicated region
      $region41: #{rdb_conv_forward.1} parent=39 // pred_check
        %p3861 = pneg %p101
      $region42: #{rdb_conv_forward.1} parent=39 // pred_check_branch
        %3863 = sbr.rel (%p3861) target = $region44
      $region43: #{rdb_conv_forward.1} parent=39 // pred_region
        %s3864 = smul.u32 64, %s15
        %p3865 = scmp.lt.s32.totalorder %s3864, 127
        %s3866 = scalar_select %p3865, %s3864, 127
        %s3867 = smul.addr %s3866, 8
        %s3868 = scalar_lea.vmem %s3, %s3867
      $region44: #{rdb_conv_forward.1} parent=39 // pred_fallthru
        _
    $region40: #{rdb_conv_forward.1} parent=5 // pred_fallthru
      _
  $region6: #{rdb_conv_forward.1} parent=0 // loop_footer
    %s13 = sadd.s32 1, %s9
  $region7: #{rdb_conv_forward.1} parent=0 // loop_footer_branch
    %8 = sbr.rel target = $region3
  $region8: #{rdb_conv_forward.1} parent=0 // loop_exit
    _

</llo_original>
